<compile_context>
chip_gen: v6e
topology: v6e:2x2x1
jax: 0.10.0
libtpu: 0.0.40
codegen_flags: <defaults>
</compile_context>

<pallas_src>
import functools

import jax
import jax.numpy as jnp
import numpy as np
from jax import lax
from jax.experimental import pallas as pl
from jax.experimental.pallas import tpu as pltpu

# Finite "minus infinity": avoids 0 * (-inf) = NaN in the online-softmax update.
_NEG_BIG = -1e30
_TN = 256                        # MXU-native column tile
_TM_CANDIDATES = (1024, 512)     # row-tile candidates (falls back to _TN)
_TM_BUDGET = 36 * 1024 * 1024    # VMEM working-set target (fits v7x 64 MiB w/ slack)


def _supcon_kernel(*refs, inv_temp, loss_scale, n_valid, tm, tn,
                   use_labels, has_padding):
    """Tiled SupCon forward with an online (flash-style) masked log-softmax.

    Grid: (row_tiles, col_tiles); the column axis is the reduction axis (last).
    labels mode refs : lab_row[tm,1] i32, lab_col[1,tn] i32, a[tm,D] bf16, b[tn,D] bf16
    mask mode refs   : mask[tm,tn] bf16, a[tm,D] bf16, b[tn,D] bf16
    output           : out[tm,128] f32 (per-anchor loss broadcast across lanes)
    scratch          : a_sc[tm,D] bf16 (scaled row tile); m,d,num,cnt [tm,1] f32
    """
    if use_labels:
        (lab_row_ref, lab_col_ref, a_ref, b_ref, out_ref,
         a_sc, m_sc, d_sc, num_sc, cnt_sc) = refs
    else:
        (mask_ref, a_ref, b_ref, out_ref,
         a_sc, m_sc, d_sc, num_sc, cnt_sc) = refs

    i = pl.program_id(0)
    j = pl.program_id(1)
    n_j = pl.num_programs(1)

    @pl.when(j == 0)
    def _init():
        # Fold 1/temperature into the resident bf16 row tile ONCE per row sweep
        # (not once per column tile), f32 intermediate for the scale.
        a_sc[...] = (a_ref[...].astype(jnp.float32) * inv_temp).astype(jnp.bfloat16)
        m_sc[...] = jnp.full_like(m_sc, _NEG_BIG)
        d_sc[...] = jnp.zeros_like(d_sc)
        num_sc[...] = jnp.zeros_like(num_sc)
        cnt_sc[...] = jnp.zeros_like(cnt_sc)

    # bf16 x bf16 -> f32 on the MXU; A @ B^T expressed via dot_general (no .T).
    s = lax.dot_general(a_sc[...], b_ref[...],
                        dimension_numbers=(((1,), (1,)), ((), ())),
                        preferred_element_type=jnp.float32)          # [tm, tn]

    # Positive-pair mask (before diagonal/padding exclusion) — needed everywhere.
    if use_labels:
        pos_raw = (lab_row_ref[...] == lab_col_ref[...]).astype(jnp.float32)
    else:
        pos_raw = mask_ref[...].astype(jnp.float32)

    def online_update(keep, valid_col):
        m_prev = m_sc[...]                                           # [tm, 1]
        if valid_col is None:
            tile_max = jnp.max(s, axis=1, keepdims=True)
        else:
            tile_max = jnp.max(jnp.where(valid_col, s, _NEG_BIG),
                               axis=1, keepdims=True)
        # The running row max includes the diagonal (reference subtracts the max
        # before masking); only padded columns are excluded from the max.
        m_new = jnp.maximum(m_prev, tile_max)
        alpha = jnp.exp(m_prev - m_new)
        p = jnp.exp(s - m_new)
        if keep is None:
            pos = pos_raw
        else:
            p = jnp.where(keep, p, 0.0)
            pos = jnp.where(keep, pos_raw, 0.0)
        d_sc[...] = alpha * d_sc[...] + jnp.sum(p, axis=1, keepdims=True)
        num_tile = jnp.sum(pos * (s - m_new), axis=1, keepdims=True)
        num_sc[...] = num_sc[...] + cnt_sc[...] * (m_prev - m_new) + num_tile
        cnt_sc[...] = cnt_sc[...] + jnp.sum(pos, axis=1, keepdims=True)
        m_sc[...] = m_new

    # Does this tile touch the diagonal or the padded tail?  (scalar tests)
    row_lo = i * tm
    col_lo = j * tn
    has_diag = jnp.logical_and(row_lo < col_lo + tn, col_lo < row_lo + tm)
    if has_padding:
        needs_mask = jnp.logical_or(has_diag, j == n_j - 1)
    else:
        needs_mask = has_diag

    @pl.when(needs_mask)
    def _masked_tile():
        # Cheap (tm,1)/(1,tn) iotas instead of two full (tm,tn) iota matrices.
        row_g = row_lo + lax.broadcasted_iota(jnp.int32, (tm, 1), 0)
        col_g = col_lo + lax.broadcasted_iota(jnp.int32, (1, tn), 1)
        keep = row_g != col_g                                        # [tm, tn]
        if has_padding:
            valid_col = col_g < n_valid                              # [1, tn]
            keep = jnp.logical_and(keep, valid_col)
        else:
            valid_col = None
        online_update(keep, valid_col)

    @pl.when(jnp.logical_not(needs_mask))
    def _clean_tile():
        # Fully valid, fully off-diagonal tile: no masking work at all.
        online_update(None, None)

    @pl.when(j == n_j - 1)
    def _finalize():
        cnt = cnt_sc[...]
        cnt_safe = jnp.where(cnt < 1e-6, 1.0, cnt)
        # TODO(synk): pl.reciprocal(approx=True) would move this divide to the
        # EUP but perturbs numerics; kept exact.
        mean_log_prob_pos = (num_sc[...] - cnt * jnp.log(d_sc[...])) / cnt_safe
        loss_row = loss_scale * mean_log_prob_pos                    # [tm, 1]
        # Lane-dense output block: full-width unmasked stores.
        out_ref[...] = jnp.broadcast_to(loss_row, (tm, 128))


def _round_up(x, m):
    return ((x + m - 1) // m) * m


def supcon_loss(features, labels=None, mask=None,
                temperature=0.07, contrast_mode='all', base_temperature=0.07):
    """JAX / Pallas port of SupConLoss.forward (contrast_mode='all')."""
    if features.ndim < 3:
        raise ValueError('`features` needs to be [bsz, n_views, ...]')
    if features.ndim > 3:
        features = features.reshape(features.shape[0], features.shape[1], -1)
    if contrast_mode != 'all':
        # TODO(synk): contrast_mode='one' (anchor = first view only) not implemented.
        raise ValueError('Only contrast_mode="all" is implemented')
    if labels is not None and mask is not None:
        raise ValueError('Cannot define both `labels` and `mask`')

    bsz, n_views, dim = features.shape
    n_total = n_views * bsz

    # contrast_feature = cat(unbind(features, dim=1), dim=0)  -> view-major [N, D]
    contrast_feature = jnp.swapaxes(features.astype(jnp.float32), 0, 1
                                    ).reshape(n_total, dim)

    # Always pad N to a multiple of 256 so tn is MXU-native.
    tn = _TN
    n_pad = _round_up(n_total, tn)
    pad = n_pad - n_total

    # bf16 feature stream (f32 accumulation happens in-kernel on the MXU).
    feat_p = jnp.pad(contrast_feature, ((0, pad), (0, 0))).astype(jnp.bfloat16)

    use_labels = mask is None

    def vmem_estimate(tm):
        e = 2 * tm * dim * 2          # row features, bf16, double-buffered
        e += 2 * tn * dim * 2         # col features, bf16, double-buffered
        e += tm * dim * 2             # scaled-row scratch (bf16)
        e += 2 * tm * 128 * 4         # out blocks (double-buffered)
        e += 4 * tm * 128 * 4         # four (tm,1) stat scratches (lane-padded)
        if use_labels:
            e += 2 * tm * 128 * 4 + 2 * 8 * tn * 4    # label col/row blocks
        else:
            e += 2 * tm * tn * 2      # mask tiles, bf16, double-buffered
        e += 4 * tm * tn * 4          # [tm,tn] f32 intermediates headroom
        return e

    # Rectangular tiles: tn = 256 fixed, tm as big as the VMEM budget allows.
    tm = tn
    for cand in _TM_CANDIDATES:
        if n_pad % cand == 0 and vmem_estimate(cand) <= _TM_BUDGET:
            tm = cand
            break
    vmem_limit = int(min(max(2 * vmem_estimate(tm), 32 * 1024 * 1024),
                         56 * 1024 * 1024))

    grid = (n_pad // tm, n_pad // tn)
    feat_row_spec = pl.BlockSpec((tm, dim), lambda i, j: (i, 0))
    feat_col_spec = pl.BlockSpec((tn, dim), lambda i, j: (j, 0))
    out_spec = pl.BlockSpec((tm, 128), lambda i, j: (i, 0))

    if use_labels:
        if labels is None:
            # SimCLR / eye-mask case == "every sample is its own class".
            labels_b = jnp.arange(bsz, dtype=jnp.int32)
        else:
            labels_b = jnp.asarray(labels).reshape(-1).astype(jnp.int32)
            if labels_b.shape[0] != bsz:
                raise ValueError('Num of labels does not match num of features')
        labels_all = jnp.tile(labels_b, (n_views,))                   # [N]
        labels_all = jnp.pad(labels_all, (0, pad), constant_values=-1)
        inputs = (labels_all.reshape(n_pad, 1), labels_all.reshape(1, n_pad),
                  feat_p, feat_p)
        in_specs = [
            pl.BlockSpec((tm, 1), lambda i, j: (i, 0)),
            pl.BlockSpec((1, tn), lambda i, j: (0, j)),
            feat_row_spec, feat_col_spec,
        ]
    else:
        # TODO(synk): the tiled [N, N] mask is still materialized in the wrapper;
        # streamed as bf16 (binary per the spec) to halve HBM traffic vs f32.
        mask_b = jnp.asarray(mask).astype(jnp.float32)
        mask_full = jnp.pad(jnp.tile(mask_b, (n_views, n_views)),
                            ((0, pad), (0, pad))).astype(jnp.bfloat16)
        inputs = (mask_full, feat_p, feat_p)
        in_specs = [
            pl.BlockSpec((tm, tn), lambda i, j: (i, j)),
            feat_row_spec, feat_col_spec,
        ]

    kernel = functools.partial(
        _supcon_kernel,
        inv_temp=float(1.0 / temperature),
        loss_scale=float(-(temperature / base_temperature)),
        n_valid=n_total,
        tm=tm, tn=tn,
        use_labels=use_labels,
        has_padding=(pad > 0),
    )

    out = pl.pallas_call(
        kernel,
        out_shape=jax.ShapeDtypeStruct((n_pad, 128), jnp.float32),
        grid=grid,
        in_specs=in_specs,
        out_specs=out_spec,
        scratch_shapes=[pltpu.VMEM((tm, dim), jnp.bfloat16)]
                       + [pltpu.VMEM((tm, 1), jnp.float32)] * 4,
        compiler_params=pltpu.CompilerParams(
            dimension_semantics=("parallel", "arbitrary"),
            vmem_limit_bytes=vmem_limit,
        ),
    )(*inputs)

    # Per-anchor loss (column 0 of the lane-broadcast output); mean over real
    # anchors == loss.view(anchor_count, batch_size).mean().
    return jnp.mean(out[:n_total, 0])


def _reference_supcon(features, labels=None, mask=None,
                      temperature=0.07, base_temperature=0.07):
    """Pure-JAX f32 reference mirroring the PyTorch code (contrast_mode='all')."""
    bsz, n_views, dim = features.shape
    if labels is None and mask is None:
        mask = jnp.eye(bsz, dtype=jnp.float32)
    elif labels is not None:
        labels = labels.reshape(-1, 1)
        mask = (labels == labels.T).astype(jnp.float32)
    else:
        mask = mask.astype(jnp.float32)
    contrast = jnp.swapaxes(features, 0, 1).reshape(n_views * bsz, dim)
    logits = contrast @ contrast.T / temperature
    logits = logits - jnp.max(logits, axis=1, keepdims=True)
    n = n_views * bsz
    logits_mask = 1.0 - jnp.eye(n, dtype=jnp.float32)
    mask = jnp.tile(mask, (n_views, n_views)) * logits_mask
    exp_logits = jnp.exp(logits) * logits_mask
    log_prob = logits - jnp.log(exp_logits.sum(1, keepdims=True))
    mpp = mask.sum(1)
    mpp = jnp.where(mpp < 1e-6, 1.0, mpp)
    mean_log_prob_pos = (mask * log_prob).sum(1) / mpp
    loss = -(temperature / base_temperature) * mean_log_prob_pos
    return loss.mean()


if __name__ == "__main__":
    key = jax.random.PRNGKey(0)
    k_feat, k_lab, k_mask = jax.random.split(key, 3)

    bsz, n_views, dim = 8, 2, 32
    features = jax.random.normal(k_feat, (bsz, n_views, dim), dtype=jnp.float32)
    features = features / jnp.linalg.norm(features, axis=-1, keepdims=True)
    labels = jax.random.randint(k_lab, (bsz,), 0, 3)

    # Kernel uses bf16 feature tiles (f32 accumulation); compare against the
    # f32 reference with a correspondingly relaxed tolerance.
    tol = dict(rtol=2e-2, atol=2e-2)

    # Supervised (labels) path.
    loss = jax.block_until_ready(supcon_loss(features, labels=labels))
    ref = jax.block_until_ready(_reference_supcon(features, labels=labels))
    assert np.allclose(np.asarray(loss), np.asarray(ref), **tol), (loss, ref)

    # Unsupervised SimCLR path (no labels, no mask).
    loss_u = jax.block_until_ready(supcon_loss(features))
    ref_u = jax.block_until_ready(_reference_supcon(features))
    assert np.allclose(np.asarray(loss_u), np.asarray(ref_u), **tol), (loss_u, ref_u)

    # Explicit mask path.
    ext_mask = (jax.random.uniform(k_mask, (bsz, bsz)) > 0.5).astype(jnp.float32)
    loss_m = jax.block_until_ready(supcon_loss(features, mask=ext_mask))
    ref_m = jax.block_until_ready(_reference_supcon(features, mask=ext_mask))
    assert np.allclose(np.asarray(loss_m), np.asarray(ref_m), **tol), (loss_m, ref_m)

    print("KERNEL_OK")
</pallas_src>

<mosaic_0001>
module attributes {stable_mosaic.version = 11 : i64} {
  func.func @_supcon_kernel(%arg0: i32, %arg1: i32, %arg2: memref<256x1xi32, #tpu.memory_space<vmem>>, %arg3: memref<1x256xi32, #tpu.memory_space<vmem>>, %arg4: memref<256x32xbf16, #tpu.memory_space<vmem>>, %arg5: memref<256x32xbf16, #tpu.memory_space<vmem>>, %arg6: memref<256x128xf32, #tpu.memory_space<vmem>>, %arg7: memref<256x32xbf16, #tpu.memory_space<vmem>>, %arg8: memref<256x1xf32, #tpu.memory_space<vmem>>, %arg9: memref<256x1xf32, #tpu.memory_space<vmem>>, %arg10: memref<256x1xf32, #tpu.memory_space<vmem>>, %arg11: memref<256x1xf32, #tpu.memory_space<vmem>>) attributes {dimension_semantics = [#tpu.dimension_semantics<parallel>, #tpu.dimension_semantics<arbitrary>], iteration_bounds = array<i64: 1, 1>, scalar_prefetch = 0 : i64, scratch_operands = 5 : i64, tpu.core_type = #tpu.core_type<tc>, window_params = [{transform_indices = @transform_0, window_bounds = array<i64: 256, 1>}, {transform_indices = @transform_1, window_bounds = array<i64: 1, 256>}, {transform_indices = @transform_2, window_bounds = array<i64: 256, 32>}, {transform_indices = @transform_3, window_bounds = array<i64: 256, 32>}, {transform_indices = @transform_4, window_bounds = array<i64: 256, 128>}]} {
    %c0_i32 = arith.constant 0 : i32
    %0 = arith.cmpi eq, %arg1, %c0_i32 : i32
    %1 = arith.extui %0 : i1 to i32
    %c0_i32_0 = arith.constant 0 : i32
    %2 = arith.cmpi ne, %1, %c0_i32_0 : i32
    scf.if %2 {
      %c0_16 = arith.constant 0 : index
      %c0_17 = arith.constant 0 : index
      %30 = vector.load %arg4[%c0_16, %c0_17] : memref<256x32xbf16, #tpu.memory_space<vmem>>, vector<256x32xbf16>
      %31 = arith.extf %30 : vector<256x32xbf16> to vector<256x32xf32>
      %cst_18 = arith.constant 14.2857141 : f32
      %32 = vector.broadcast %cst_18 : f32 to vector<256x32xf32>
      %33 = arith.mulf %31, %32 : vector<256x32xf32>
      %34 = arith.truncf %33 : vector<256x32xf32> to vector<256x32xbf16>
      %c0_19 = arith.constant 0 : index
      %c0_20 = arith.constant 0 : index
      %35 = vector.load %arg7[%c0_19, %c0_20] : memref<256x32xbf16, #tpu.memory_space<vmem>>, vector<256x32xbf16>
      tpu.vector_store %arg7[%c0_19, %c0_20], %34 {strides = array<i32>} : memref<256x32xbf16, #tpu.memory_space<vmem>>, vector<256x32xbf16>,
      %cst_21 = arith.constant -1.000000e+30 : f32
      %36 = vector.broadcast %cst_21 : f32 to vector<256x1xf32>
      %c0_22 = arith.constant 0 : index
      %c0_23 = arith.constant 0 : index
      %37 = vector.load %arg8[%c0_22, %c0_23] : memref<256x1xf32, #tpu.memory_space<vmem>>, vector<256x1xf32>
      tpu.vector_store %arg8[%c0_22, %c0_23], %36 {strides = array<i32>} : memref<256x1xf32, #tpu.memory_space<vmem>>, vector<256x1xf32>,
      %cst_24 = arith.constant 0.000000e+00 : f32
      %38 = vector.broadcast %cst_24 : f32 to vector<256x1xf32>
      %c0_25 = arith.constant 0 : index
      %c0_26 = arith.constant 0 : index
      %39 = vector.load %arg9[%c0_25, %c0_26] : memref<256x1xf32, #tpu.memory_space<vmem>>, vector<256x1xf32>
      tpu.vector_store %arg9[%c0_25, %c0_26], %38 {strides = array<i32>} : memref<256x1xf32, #tpu.memory_space<vmem>>, vector<256x1xf32>,
      %cst_27 = arith.constant 0.000000e+00 : f32
      %40 = vector.broadcast %cst_27 : f32 to vector<256x1xf32>
      %c0_28 = arith.constant 0 : index
      %c0_29 = arith.constant 0 : index
      %41 = vector.load %arg10[%c0_28, %c0_29] : memref<256x1xf32, #tpu.memory_space<vmem>>, vector<256x1xf32>
      tpu.vector_store %arg10[%c0_28, %c0_29], %40 {strides = array<i32>} : memref<256x1xf32, #tpu.memory_space<vmem>>, vector<256x1xf32>,
      %cst_30 = arith.constant 0.000000e+00 : f32
      %42 = vector.broadcast %cst_30 : f32 to vector<256x1xf32>
      %c0_31 = arith.constant 0 : index
      %c0_32 = arith.constant 0 : index
      %43 = vector.load %arg11[%c0_31, %c0_32] : memref<256x1xf32, #tpu.memory_space<vmem>>, vector<256x1xf32>
      tpu.vector_store %arg11[%c0_31, %c0_32], %42 {strides = array<i32>} : memref<256x1xf32, #tpu.memory_space<vmem>>, vector<256x1xf32>,
    } else {
    }
    %c0 = arith.constant 0 : index
    %c0_1 = arith.constant 0 : index
    %3 = vector.load %arg7[%c0, %c0_1] : memref<256x32xbf16, #tpu.memory_space<vmem>>, vector<256x32xbf16>
    %c0_2 = arith.constant 0 : index
    %c0_3 = arith.constant 0 : index
    %4 = vector.load %arg5[%c0_2, %c0_3] : memref<256x32xbf16, #tpu.memory_space<vmem>>, vector<256x32xbf16>
    %cst = arith.constant dense<0.000000e+00> : vector<256x256xf32>
    %5 = tpu.matmul %3, %4, %cst {dimension_numbers = #tpu.dot_dimension_numbers<[1], [1], [0], [0], [0, 0, 1, 0], [], []>} : vector<256x32xbf16>, vector<256x32xbf16>, vector<256x256xf32> -> vector<256x256xf32>
    %c0_4 = arith.constant 0 : index
    %c0_5 = arith.constant 0 : index
    %6 = vector.load %arg2[%c0_4, %c0_5] : memref<256x1xi32, #tpu.memory_space<vmem>>, vector<256x1xi32>
    %c0_6 = arith.constant 0 : index
    %c0_7 = arith.constant 0 : index
    %7 = vector.load %arg3[%c0_6, %c0_7] : memref<1x256xi32, #tpu.memory_space<vmem>>, vector<1x256xi32>
    %8 = vector.broadcast %6 : vector<256x1xi32> to vector<256x256xi32>
    %9 = vector.broadcast %7 : vector<1x256xi32> to vector<256x256xi32>
    %10 = arith.cmpi eq, %8, %9 : vector<256x256xi32>
    %11 = arith.extui %10 : vector<256x256xi1> to vector<256x256xi32>
    %12 = arith.sitofp %11 : vector<256x256xi32> to vector<256x256xf32>
    %c256_i32 = arith.constant 256 : i32
    %13 = arith.muli %arg0, %c256_i32 : i32
    %c256_i32_8 = arith.constant 256 : i32
    %14 = arith.muli %arg1, %c256_i32_8 : i32
    %c256_i32_9 = arith.constant 256 : i32
    %15 = arith.addi %14, %c256_i32_9 : i32
    %16 = arith.cmpi slt, %13, %15 : i32
    %c256_i32_10 = arith.constant 256 : i32
    %17 = arith.addi %13, %c256_i32_10 : i32
    %18 = arith.cmpi slt, %14, %17 : i32
    %19 = arith.andi %16, %18 : i1
    %c0_i32_11 = arith.constant 0 : i32
    %20 = arith.cmpi eq, %arg1, %c0_i32_11 : i32
    %21 = arith.ori %19, %20 : i1
    %22 = arith.extui %21 : i1 to i32
    %c0_i32_12 = arith.constant 0 : i32
    %23 = arith.cmpi ne, %22, %c0_i32_12 : i32
    scf.if %23 {
      %30 = tpu.iota {dimensions = array<i32: 0>} : vector<256x1xi32>
      %31 = vector.broadcast %13 : i32 to vector<256x1xi32>
      %32 = arith.addi %31, %30 : vector<256x1xi32>
      %33 = tpu.iota {dimensions = array<i32: 1>} : vector<1x256xi32>
      %34 = vector.broadcast %14 : i32 to vector<1x256xi32>
      %35 = arith.addi %34, %33 : vector<1x256xi32>
      %36 = vector.broadcast %32 : vector<256x1xi32> to vector<256x256xi32>
      %37 = vector.broadcast %35 : vector<1x256xi32> to vector<256x256xi32>
      %38 = arith.cmpi ne, %36, %37 : vector<256x256xi32>
      %c16_i32 = arith.constant 16 : i32
      %39 = vector.broadcast %c16_i32 : i32 to vector<1x256xi32>
      %40 = arith.cmpi slt, %35, %39 : vector<1x256xi32>
      %41 = vector.broadcast %40 : vector<1x256xi1> to vector<256x256xi1>
      %42 = arith.andi %38, %41 : vector<256x256xi1>
      %c0_16 = arith.constant 0 : index
      %c0_17 = arith.constant 0 : index
      %43 = vector.load %arg8[%c0_16, %c0_17] : memref<256x1xf32, #tpu.memory_space<vmem>>, vector<256x1xf32>
      %cst_18 = arith.constant -1.000000e+30 : f32
      %44 = vector.shape_cast %40 : vector<1x256xi1> to vector<1x256xi1>
      %45 = vector.broadcast %44 : vector<1x256xi1> to vector<256x256xi1>
      %46 = vector.broadcast %cst_18 : f32 to vector<256x256xf32>
      %47 = arith.select %45, %5, %46 : vector<256x256xi1>, vector<256x256xf32>
      %cst_19 = arith.constant dense<0xFF800000> : vector<256xf32>
      %48 = vector.multi_reduction <maximumf>, %47, %cst_19 [1] : vector<256x256xf32> to vector<256xf32>
      %49 = vector.shape_cast %48 : vector<256xf32> to vector<256x1xf32>
      %50 = arith.maximumf %43, %49 : vector<256x1xf32>
      %51 = arith.subf %43, %50 : vector<256x1xf32>
      %52 = math.exp %51 : vector<256x1xf32>
      %53 = vector.broadcast %50 : vector<256x1xf32> to vector<256x256xf32>
      %54 = arith.subf %5, %53 : vector<256x256xf32>
      %55 = math.exp %54 : vector<256x256xf32>
      %cst_20 = arith.constant 0.000000e+00 : f32
      %56 = vector.broadcast %cst_20 : f32 to vector<256x256xf32>
      %57 = arith.select %42, %55, %56 : vector<256x256xi1>, vector<256x256xf32>
      %cst_21 = arith.constant 0.000000e+00 : f32
      %58 = vector.broadcast %cst_21 : f32 to vector<256x256xf32>
      %59 = arith.select %42, %12, %58 : vector<256x256xi1>, vector<256x256xf32>
      %c0_22 = arith.constant 0 : index
      %c0_23 = arith.constant 0 : index
      %60 = vector.load %arg9[%c0_22, %c0_23] : memref<256x1xf32, #tpu.memory_space<vmem>>, vector<256x1xf32>
      %61 = arith.mulf %52, %60 : vector<256x1xf32>
      %cst_24 = arith.constant dense<0.000000e+00> : vector<256xf32>
      %62 = vector.multi_reduction <add>, %57, %cst_24 [1] : vector<256x256xf32> to vector<256xf32>
      %63 = vector.shape_cast %62 : vector<256xf32> to vector<256x1xf32>
      %64 = arith.addf %61, %63 : vector<256x1xf32>
      %c0_25 = arith.constant 0 : index
      %c0_26 = arith.constant 0 : index
      %65 = vector.load %arg9[%c0_25, %c0_26] : memref<256x1xf32, #tpu.memory_space<vmem>>, vector<256x1xf32>
      tpu.vector_store %arg9[%c0_25, %c0_26], %64 {strides = array<i32>} : memref<256x1xf32, #tpu.memory_space<vmem>>, vector<256x1xf32>,
      %66 = vector.broadcast %50 : vector<256x1xf32> to vector<256x256xf32>
      %67 = arith.subf %5, %66 : vector<256x256xf32>
      %68 = arith.mulf %59, %67 : vector<256x256xf32>
      %cst_27 = arith.constant dense<0.000000e+00> : vector<256xf32>
      %69 = vector.multi_reduction <add>, %68, %cst_27 [1] : vector<256x256xf32> to vector<256xf32>
      %70 = vector.shape_cast %69 : vector<256xf32> to vector<256x1xf32>
      %c0_28 = arith.constant 0 : index
      %c0_29 = arith.constant 0 : index
      %71 = vector.load %arg10[%c0_28, %c0_29] : memref<256x1xf32, #tpu.memory_space<vmem>>, vector<256x1xf32>
      %c0_30 = arith.constant 0 : index
      %c0_31 = arith.constant 0 : index
      %72 = vector.load %arg11[%c0_30, %c0_31] : memref<256x1xf32, #tpu.memory_space<vmem>>, vector<256x1xf32>
      %73 = arith.subf %43, %50 : vector<256x1xf32>
      %74 = arith.mulf %72, %73 : vector<256x1xf32>
      %75 = arith.addf %71, %74 : vector<256x1xf32>
      %76 = arith.addf %75, %70 : vector<256x1xf32>
      %c0_32 = arith.constant 0 : index
      %c0_33 = arith.constant 0 : index
      %77 = vector.load %arg10[%c0_32, %c0_33] : memref<256x1xf32, #tpu.memory_space<vmem>>, vector<256x1xf32>
      tpu.vector_store %arg10[%c0_32, %c0_33], %76 {strides = array<i32>} : memref<256x1xf32, #tpu.memory_space<vmem>>, vector<256x1xf32>,
      %c0_34 = arith.constant 0 : index
      %c0_35 = arith.constant 0 : index
      %78 = vector.load %arg11[%c0_34, %c0_35] : memref<256x1xf32, #tpu.memory_space<vmem>>, vector<256x1xf32>
      %cst_36 = arith.constant dense<0.000000e+00> : vector<256xf32>
      %79 = vector.multi_reduction <add>, %59, %cst_36 [1] : vector<256x256xf32> to vector<256xf32>
      %80 = vector.shape_cast %79 : vector<256xf32> to vector<256x1xf32>
      %81 = arith.addf %78, %80 : vector<256x1xf32>
      %c0_37 = arith.constant 0 : index
      %c0_38 = arith.constant 0 : index
      %82 = vector.load %arg11[%c0_37, %c0_38] : memref<256x1xf32, #tpu.memory_space<vmem>>, vector<256x1xf32>
      tpu.vector_store %arg11[%c0_37, %c0_38], %81 {strides = array<i32>} : memref<256x1xf32, #tpu.memory_space<vmem>>, vector<256x1xf32>,
      %c0_39 = arith.constant 0 : index
      %c0_40 = arith.constant 0 : index
      %83 = vector.load %arg8[%c0_39, %c0_40] : memref<256x1xf32, #tpu.memory_space<vmem>>, vector<256x1xf32>
      tpu.vector_store %arg8[%c0_39, %c0_40], %50 {strides = array<i32>} : memref<256x1xf32, #tpu.memory_space<vmem>>, vector<256x1xf32>,
    } else {
    }
    %true = arith.constant true
    %24 = arith.xori %21, %true : i1
    %25 = arith.extui %24 : i1 to i32
    %c0_i32_13 = arith.constant 0 : i32
    %26 = arith.cmpi ne, %25, %c0_i32_13 : i32
    scf.if %26 {
      %c0_16 = arith.constant 0 : index
      %c0_17 = arith.constant 0 : index
      %30 = vector.load %arg8[%c0_16, %c0_17] : memref<256x1xf32, #tpu.memory_space<vmem>>, vector<256x1xf32>
      %cst_18 = arith.constant dense<0xFF800000> : vector<256xf32>
      %31 = vector.multi_reduction <maximumf>, %5, %cst_18 [1] : vector<256x256xf32> to vector<256xf32>
      %32 = vector.shape_cast %31 : vector<256xf32> to vector<256x1xf32>
      %33 = arith.maximumf %30, %32 : vector<256x1xf32>
      %34 = arith.subf %30, %33 : vector<256x1xf32>
      %35 = math.exp %34 : vector<256x1xf32>
      %36 = vector.broadcast %33 : vector<256x1xf32> to vector<256x256xf32>
      %37 = arith.subf %5, %36 : vector<256x256xf32>
      %38 = math.exp %37 : vector<256x256xf32>
      %c0_19 = arith.constant 0 : index
      %c0_20 = arith.constant 0 : index
      %39 = vector.load %arg9[%c0_19, %c0_20] : memref<256x1xf32, #tpu.memory_space<vmem>>, vector<256x1xf32>
      %40 = arith.mulf %35, %39 : vector<256x1xf32>
      %cst_21 = arith.constant dense<0.000000e+00> : vector<256xf32>
      %41 = vector.multi_reduction <add>, %38, %cst_21 [1] : vector<256x256xf32> to vector<256xf32>
      %42 = vector.shape_cast %41 : vector<256xf32> to vector<256x1xf32>
      %43 = arith.addf %40, %42 : vector<256x1xf32>
      %c0_22 = arith.constant 0 : index
      %c0_23 = arith.constant 0 : index
      %44 = vector.load %arg9[%c0_22, %c0_23] : memref<256x1xf32, #tpu.memory_space<vmem>>, vector<256x1xf32>
      tpu.vector_store %arg9[%c0_22, %c0_23], %43 {strides = array<i32>} : memref<256x1xf32, #tpu.memory_space<vmem>>, vector<256x1xf32>,
      %45 = vector.broadcast %33 : vector<256x1xf32> to vector<256x256xf32>
      %46 = arith.subf %5, %45 : vector<256x256xf32>
      %47 = arith.mulf %12, %46 : vector<256x256xf32>
      %cst_24 = arith.constant dense<0.000000e+00> : vector<256xf32>
      %48 = vector.multi_reduction <add>, %47, %cst_24 [1] : vector<256x256xf32> to vector<256xf32>
      %49 = vector.shape_cast %48 : vector<256xf32> to vector<256x1xf32>
      %c0_25 = arith.constant 0 : index
      %c0_26 = arith.constant 0 : index
      %50 = vector.load %arg10[%c0_25, %c0_26] : memref<256x1xf32, #tpu.memory_space<vmem>>, vector<256x1xf32>
      %c0_27 = arith.constant 0 : index
      %c0_28 = arith.constant 0 : index
      %51 = vector.load %arg11[%c0_27, %c0_28] : memref<256x1xf32, #tpu.memory_space<vmem>>, vector<256x1xf32>
      %52 = arith.subf %30, %33 : vector<256x1xf32>
      %53 = arith.mulf %51, %52 : vector<256x1xf32>
      %54 = arith.addf %50, %53 : vector<256x1xf32>
      %55 = arith.addf %54, %49 : vector<256x1xf32>
      %c0_29 = arith.constant 0 : index
      %c0_30 = arith.constant 0 : index
      %56 = vector.load %arg10[%c0_29, %c0_30] : memref<256x1xf32, #tpu.memory_space<vmem>>, vector<256x1xf32>
      tpu.vector_store %arg10[%c0_29, %c0_30], %55 {strides = array<i32>} : memref<256x1xf32, #tpu.memory_space<vmem>>, vector<256x1xf32>,
      %c0_31 = arith.constant 0 : index
      %c0_32 = arith.constant 0 : index
      %57 = vector.load %arg11[%c0_31, %c0_32] : memref<256x1xf32, #tpu.memory_space<vmem>>, vector<256x1xf32>
      %cst_33 = arith.constant dense<0.000000e+00> : vector<256xf32>
      %58 = vector.multi_reduction <add>, %12, %cst_33 [1] : vector<256x256xf32> to vector<256xf32>
      %59 = vector.shape_cast %58 : vector<256xf32> to vector<256x1xf32>
      %60 = arith.addf %57, %59 : vector<256x1xf32>
      %c0_34 = arith.constant 0 : index
      %c0_35 = arith.constant 0 : index
      %61 = vector.load %arg11[%c0_34, %c0_35] : memref<256x1xf32, #tpu.memory_space<vmem>>, vector<256x1xf32>
      tpu.vector_store %arg11[%c0_34, %c0_35], %60 {strides = array<i32>} : memref<256x1xf32, #tpu.memory_space<vmem>>, vector<256x1xf32>,
      %c0_36 = arith.constant 0 : index
      %c0_37 = arith.constant 0 : index
      %62 = vector.load %arg8[%c0_36, %c0_37] : memref<256x1xf32, #tpu.memory_space<vmem>>, vector<256x1xf32>
      tpu.vector_store %arg8[%c0_36, %c0_37], %33 {strides = array<i32>} : memref<256x1xf32, #tpu.memory_space<vmem>>, vector<256x1xf32>,
    } else {
    }
    %c0_i32_14 = arith.constant 0 : i32
    %27 = arith.cmpi eq, %arg1, %c0_i32_14 : i32
    %28 = arith.extui %27 : i1 to i32
    %c0_i32_15 = arith.constant 0 : i32
    %29 = arith.cmpi ne, %28, %c0_i32_15 : i32
    scf.if %29 {
      %c0_16 = arith.constant 0 : index
      %c0_17 = arith.constant 0 : index
      %30 = vector.load %arg11[%c0_16, %c0_17] : memref<256x1xf32, #tpu.memory_space<vmem>>, vector<256x1xf32>
      %cst_18 = arith.constant 9.99999997E-7 : f32
      %31 = vector.broadcast %cst_18 : f32 to vector<256x1xf32>
      %32 = arith.cmpf olt, %30, %31 : vector<256x1xf32>
      %cst_19 = arith.constant 1.000000e+00 : f32
      %33 = vector.broadcast %cst_19 : f32 to vector<256x1xf32>
      %34 = arith.select %32, %33, %30 : vector<256x1xi1>, vector<256x1xf32>
      %c0_20 = arith.constant 0 : index
      %c0_21 = arith.constant 0 : index
      %35 = vector.load %arg10[%c0_20, %c0_21] : memref<256x1xf32, #tpu.memory_space<vmem>>, vector<256x1xf32>
      %c0_22 = arith.constant 0 : index
      %c0_23 = arith.constant 0 : index
      %36 = vector.load %arg9[%c0_22, %c0_23] : memref<256x1xf32, #tpu.memory_space<vmem>>, vector<256x1xf32>
      %37 = math.log %36 : vector<256x1xf32>
      %38 = arith.mulf %30, %37 : vector<256x1xf32>
      %39 = arith.subf %35, %38 : vector<256x1xf32>
      %40 = arith.divf %39, %34 : vector<256x1xf32>
      %cst_24 = arith.constant -1.000000e+00 : f32
      %41 = vector.broadcast %cst_24 : f32 to vector<256x1xf32>
      %42 = arith.mulf %41, %40 : vector<256x1xf32>
      %43 = vector.shape_cast %42 : vector<256x1xf32> to vector<256x1xf32>
      %44 = vector.broadcast %43 : vector<256x1xf32> to vector<256x128xf32>
      %c0_25 = arith.constant 0 : index
      %c0_26 = arith.constant 0 : index
      %45 = vector.load %arg6[%c0_25, %c0_26] : memref<256x128xf32, #tpu.memory_space<vmem>>, vector<256x128xf32>
      tpu.vector_store %arg6[%c0_25, %c0_26], %44 {strides = array<i32>} : memref<256x128xf32, #tpu.memory_space<vmem>>, vector<256x128xf32>,
    } else {
    }
    return
  }
  func.func @transform_0(%arg0: i32, %arg1: i32) -> (i32, i32) {
    %c0_i32 = arith.constant 0 : i32
    %c0_i32_0 = arith.constant 0 : i32
    return %arg0, %c0_i32 : i32, i32
  }
  func.func @transform_1(%arg0: i32, %arg1: i32) -> (i32, i32) {
    %c0_i32 = arith.constant 0 : i32
    %c0_i32_0 = arith.constant 0 : i32
    return %c0_i32, %arg1 : i32, i32
  }
  func.func @transform_2(%arg0: i32, %arg1: i32) -> (i32, i32) {
    %c0_i32 = arith.constant 0 : i32
    %c0_i32_0 = arith.constant 0 : i32
    return %arg0, %c0_i32 : i32, i32
  }
  func.func @transform_3(%arg0: i32, %arg1: i32) -> (i32, i32) {
    %c0_i32 = arith.constant 0 : i32
    %c0_i32_0 = arith.constant 0 : i32
    return %arg1, %c0_i32 : i32, i32
  }
  func.func @transform_4(%arg0: i32, %arg1: i32) -> (i32, i32) {
    %c0_i32 = arith.constant 0 : i32
    %c0_i32_0 = arith.constant 0 : i32
    return %arg0, %c0_i32 : i32, i32
  }
}

</mosaic_0001>

<llo_original>
// kernel: tpu_custom_call.1
$region0: #{tpu_custom_call.1}
  #allocation0 [shape = 'u32[]', space=smem, size = 0x4, offset = 0x4, fixed_abs, tag = 'smem constant byte address 0x4 - core index']
  #allocation1 [shape = 'u32[144,128]{1,0:T(1,128)}', space=vmem, size = 0x12000, scoped, tag = 'internal scratch']
  #allocation2 [shape = 'bf16[256,32]{1,0:T(8,128)(2,1)}', space=vmem, size = 0x10000, scoped, tag = 'scratch operand']
  #allocation3 [shape = 'f32[256,1]{1,0:T(8,128)}', space=vmem, size = 0x20000, scoped, tag = 'scratch operand']
  #allocation4 [shape = 'f32[256,1]{1,0:T(8,128)}', space=vmem, size = 0x20000, scoped, tag = 'scratch operand']
  #allocation5 [shape = 'f32[256,1]{1,0:T(8,128)}', space=vmem, size = 0x20000, scoped, tag = 'scratch operand']
  #allocation6 [shape = 'f32[256,1]{1,0:T(8,128)}', space=vmem, size = 0x20000, scoped, tag = 'scratch operand']
  %s0 = inlined_call_operand.vmem [shape: s32[256,1], index: 0, kind: input, shape index: {}]
  %s1 = inlined_call_operand.vmem [shape: s32[1,256], index: 1, kind: input, shape index: {}]
  %s2 = inlined_call_operand.vmem [shape: bf16[256,32], index: 2, kind: input, shape index: {}]
  %s3 = inlined_call_operand.vmem [shape: bf16[256,32], index: 3, kind: input, shape index: {}]
  %s4 = inlined_call_operand.hbm [shape: f32[256,128], index: 4, kind: output, shape index: {}]
  %s5 = sld [smem:[#allocation0]]
  $region42: #{tpu_custom_call.1} parent=0
    _
  %s7 = ssub.s32 1, %s5
  %s8 = scalar_select 0, %s7, %s5
  $region1: #{tpu_custom_call.1} parent=0
    #allocation7 [shape = 'u8[131072]{0}', space=vmem, size = 0x20000, scoped, tag = 'output window, operand 0, single buffered']
    #allocation8 [shape = 's32[1]{0}', space=sflag, size = 0x4, scoped, tag = 'scoped memory for tpu_custom_call.1']
    %9 = vsyncpa [#allocation8], 0
    // Predicated region
    $region2: #{tpu_custom_call.1} parent=1 // pred_check
      _
    $region3: #{tpu_custom_call.1} parent=1 // pred_check_branch
      %11 = sbr.rel (0) target = $region5
    $region4: #{tpu_custom_call.1} parent=1 // pred_region
      _
    $region5: #{tpu_custom_call.1} parent=1 // pred_fallthru
      _
    // Predicated region
    $region6: #{tpu_custom_call.1} parent=1 // pred_check
      _
    $region7: #{tpu_custom_call.1} parent=1 // pred_check_branch
      %13 = sbr.rel (0) target = $region9
    $region8: #{tpu_custom_call.1} parent=1 // pred_region
      _
    $region9: #{tpu_custom_call.1} parent=1 // pred_fallthru
      _
    // Predicated region
    $region10: #{tpu_custom_call.1} parent=1 // pred_check
      _
    $region11: #{tpu_custom_call.1} parent=1 // pred_check_branch
      %15 = sbr.rel (0) target = $region13
    $region12: #{tpu_custom_call.1} parent=1 // pred_region
      _
    $region13: #{tpu_custom_call.1} parent=1 // pred_fallthru
      _
    // Predicated region
    $region14: #{tpu_custom_call.1} parent=1 // pred_check
      _
    $region15: #{tpu_custom_call.1} parent=1 // pred_check_branch
      %17 = sbr.rel (0) target = $region17
    $region16: #{tpu_custom_call.1} parent=1 // pred_region
      _
    $region17: #{tpu_custom_call.1} parent=1 // pred_fallthru
      _
    %p19 = scmp.eq.s32.totalorder 0, 0
    // Predicated region
    $region18: #{tpu_custom_call.1} parent=1 // pred_check
      %p20 = pneg %p19
    $region19: #{tpu_custom_call.1} parent=1 // pred_check_branch
      %22 = sbr.rel (%p20) target = $region21
    $region20: #{tpu_custom_call.1} parent=1 // pred_region
      %v23 = vld [vmem:[%s2] sm:$0xf]
      %v24 = vld [vmem:[%s2 + $0x4] sm:$0xf]
      %v25 = vld [vmem:[%s2 + $0x8] sm:$0xf]
      %v26 = vld [vmem:[%s2 + $0xc] sm:$0xf]
      %v27 = vld [vmem:[%s2 + $0x10] sm:$0xf]
      %v28 = vld [vmem:[%s2 + $0x14] sm:$0xf]
      %v29 = vld [vmem:[%s2 + $0x18] sm:$0xf]
      %v30 = vld [vmem:[%s2 + $0x1c] sm:$0xf]
      %v31 = vld [vmem:[%s2 + $0x20] sm:$0xf]
      %v32 = vld [vmem:[%s2 + $0x24] sm:$0xf]
      %v33 = vld [vmem:[%s2 + $0x28] sm:$0xf]
      %v34 = vld [vmem:[%s2 + $0x2c] sm:$0xf]
      %v35 = vld [vmem:[%s2 + $0x30] sm:$0xf]
      %v36 = vld [vmem:[%s2 + $0x34] sm:$0xf]
      %v37 = vld [vmem:[%s2 + $0x38] sm:$0xf]
      %v38 = vld [vmem:[%s2 + $0x3c] sm:$0xf]
      %v39 = vld [vmem:[%s2 + $0x40] sm:$0xf]
      %v40 = vld [vmem:[%s2 + $0x44] sm:$0xf]
      %v41 = vld [vmem:[%s2 + $0x48] sm:$0xf]
      %v42 = vld [vmem:[%s2 + $0x4c] sm:$0xf]
      %v43 = vld [vmem:[%s2 + $0x50] sm:$0xf]
      %v44 = vld [vmem:[%s2 + $0x54] sm:$0xf]
      %v45 = vld [vmem:[%s2 + $0x58] sm:$0xf]
      %v46 = vld [vmem:[%s2 + $0x5c] sm:$0xf]
      %v47 = vld [vmem:[%s2 + $0x60] sm:$0xf]
      %v48 = vld [vmem:[%s2 + $0x64] sm:$0xf]
      %v49 = vld [vmem:[%s2 + $0x68] sm:$0xf]
      %v50 = vld [vmem:[%s2 + $0x6c] sm:$0xf]
      %v51 = vld [vmem:[%s2 + $0x70] sm:$0xf]
      %v52 = vld [vmem:[%s2 + $0x74] sm:$0xf]
      %v53 = vld [vmem:[%s2 + $0x78] sm:$0xf]
      %v54 = vld [vmem:[%s2 + $0x7c] sm:$0xf]
      %v55 = vunpack.c.l.bf16 %v23
      %v56 = vunpack.c.l.bf16 %v24
      %v57 = vunpack.c.l.bf16 %v25
      %v58 = vunpack.c.l.bf16 %v26
      %v59 = vunpack.c.l.bf16 %v27
      %v60 = vunpack.c.l.bf16 %v28
      %v61 = vunpack.c.l.bf16 %v29
      %v62 = vunpack.c.l.bf16 %v30
      %v63 = vunpack.c.l.bf16 %v31
      %v64 = vunpack.c.l.bf16 %v32
      %v65 = vunpack.c.l.bf16 %v33
      %v66 = vunpack.c.l.bf16 %v34
      %v67 = vunpack.c.l.bf16 %v35
      %v68 = vunpack.c.l.bf16 %v36
      %v69 = vunpack.c.l.bf16 %v37
      %v70 = vunpack.c.l.bf16 %v38
      %v71 = vunpack.c.l.bf16 %v39
      %v72 = vunpack.c.l.bf16 %v40
      %v73 = vunpack.c.l.bf16 %v41
      %v74 = vunpack.c.l.bf16 %v42
      %v75 = vunpack.c.l.bf16 %v43
      %v76 = vunpack.c.l.bf16 %v44
      %v77 = vunpack.c.l.bf16 %v45
      %v78 = vunpack.c.l.bf16 %v46
      %v79 = vunpack.c.l.bf16 %v47
      %v80 = vunpack.c.l.bf16 %v48
      %v81 = vunpack.c.l.bf16 %v49
      %v82 = vunpack.c.l.bf16 %v50
      %v83 = vunpack.c.l.bf16 %v51
      %v84 = vunpack.c.l.bf16 %v52
      %v85 = vunpack.c.l.bf16 %v53
      %v86 = vunpack.c.l.bf16 %v54
      %v87 = vmul.f32 %v55, 14.285714
      %v88 = vmul.f32 %v56, 14.285714
      %v89 = vmul.f32 %v57, 14.285714
      %v90 = vmul.f32 %v58, 14.285714
      %v91 = vmul.f32 %v59, 14.285714
      %v92 = vmul.f32 %v60, 14.285714
      %v93 = vmul.f32 %v61, 14.285714
      %v94 = vmul.f32 %v62, 14.285714
      %v95 = vmul.f32 %v63, 14.285714
      %v96 = vmul.f32 %v64, 14.285714
      %v97 = vmul.f32 %v65, 14.285714
      %v98 = vmul.f32 %v66, 14.285714
      %v99 = vmul.f32 %v67, 14.285714
      %v100 = vmul.f32 %v68, 14.285714
      %v101 = vmul.f32 %v69, 14.285714
      %v102 = vmul.f32 %v70, 14.285714
      %v103 = vmul.f32 %v71, 14.285714
      %v104 = vmul.f32 %v72, 14.285714
      %v105 = vmul.f32 %v73, 14.285714
      %v106 = vmul.f32 %v74, 14.285714
      %v107 = vmul.f32 %v75, 14.285714
      %v108 = vmul.f32 %v76, 14.285714
      %v109 = vmul.f32 %v77, 14.285714
      %v110 = vmul.f32 %v78, 14.285714
      %v111 = vmul.f32 %v79, 14.285714
      %v112 = vmul.f32 %v80, 14.285714
      %v113 = vmul.f32 %v81, 14.285714
      %v114 = vmul.f32 %v82, 14.285714
      %v115 = vmul.f32 %v83, 14.285714
      %v116 = vmul.f32 %v84, 14.285714
      %v117 = vmul.f32 %v85, 14.285714
      %v118 = vmul.f32 %v86, 14.285714
      %v119 = vpack.c.bf16 %v88, %v87
      %v120 = vpack.c.bf16 %v90, %v89
      %v121 = vpack.c.bf16 %v92, %v91
      %v122 = vpack.c.bf16 %v94, %v93
      %v123 = vpack.c.bf16 %v96, %v95
      %v124 = vpack.c.bf16 %v98, %v97
      %v125 = vpack.c.bf16 %v100, %v99
      %v126 = vpack.c.bf16 %v102, %v101
      %v127 = vpack.c.bf16 %v104, %v103
      %v128 = vpack.c.bf16 %v106, %v105
      %v129 = vpack.c.bf16 %v108, %v107
      %v130 = vpack.c.bf16 %v110, %v109
      %v131 = vpack.c.bf16 %v112, %v111
      %v132 = vpack.c.bf16 %v114, %v113
      %v133 = vpack.c.bf16 %v116, %v115
      %v134 = vpack.c.bf16 %v118, %v117
      %v151 = vunpack.c.l.b16 %v119
      %v152 = vunpack.c.h.b16 %v119
      %v153 = vunpack.c.l.b16 %v120
      %v154 = vunpack.c.h.b16 %v120
      %v155 = vunpack.c.l.b16 %v121
      %v156 = vunpack.c.h.b16 %v121
      %v157 = vunpack.c.l.b16 %v122
      %v158 = vunpack.c.h.b16 %v122
      %v159 = vunpack.c.l.b16 %v123
      %v160 = vunpack.c.h.b16 %v123
      %v161 = vunpack.c.l.b16 %v124
      %v162 = vunpack.c.h.b16 %v124
      %v163 = vunpack.c.l.b16 %v125
      %v164 = vunpack.c.h.b16 %v125
      %v165 = vunpack.c.l.b16 %v126
      %v166 = vunpack.c.h.b16 %v126
      %v167 = vunpack.c.l.b16 %v127
      %v168 = vunpack.c.h.b16 %v127
      %v169 = vunpack.c.l.b16 %v128
      %v170 = vunpack.c.h.b16 %v128
      %v171 = vunpack.c.l.b16 %v129
      %v172 = vunpack.c.h.b16 %v129
      %v173 = vunpack.c.l.b16 %v130
      %v174 = vunpack.c.h.b16 %v130
      %v175 = vunpack.c.l.b16 %v131
      %v176 = vunpack.c.h.b16 %v131
      %v177 = vunpack.c.l.b16 %v132
      %v178 = vunpack.c.h.b16 %v132
      %v179 = vunpack.c.l.b16 %v133
      %v180 = vunpack.c.h.b16 %v133
      %v181 = vunpack.c.l.b16 %v134
      %v182 = vunpack.c.h.b16 %v134
      %v183 = vpack.c.b16 %v151, %v151
      %v184 = vpack.c.b16 %v152, %v152
      %v185 = vpack.c.b16 %v153, %v153
      %v186 = vpack.c.b16 %v154, %v154
      %v187 = vpack.c.b16 %v155, %v155
      %v188 = vpack.c.b16 %v156, %v156
      %v189 = vpack.c.b16 %v157, %v157
      %v190 = vpack.c.b16 %v158, %v158
      %v191 = vpack.c.b16 %v159, %v159
      %v192 = vpack.c.b16 %v160, %v160
      %v193 = vpack.c.b16 %v161, %v161
      %v194 = vpack.c.b16 %v162, %v162
      %v195 = vpack.c.b16 %v163, %v163
      %v196 = vpack.c.b16 %v164, %v164
      %v197 = vpack.c.b16 %v165, %v165
      %v198 = vpack.c.b16 %v166, %v166
      %v199 = vpack.c.b16 %v167, %v167
      %v200 = vpack.c.b16 %v168, %v168
      %v201 = vpack.c.b16 %v169, %v169
      %v202 = vpack.c.b16 %v170, %v170
      %v203 = vpack.c.b16 %v171, %v171
      %v204 = vpack.c.b16 %v172, %v172
      %v205 = vpack.c.b16 %v173, %v173
      %v206 = vpack.c.b16 %v174, %v174
      %v207 = vpack.c.b16 %v175, %v175
      %v208 = vpack.c.b16 %v176, %v176
      %v209 = vpack.c.b16 %v177, %v177
      %v210 = vpack.c.b16 %v178, %v178
      %v211 = vpack.c.b16 %v179, %v179
      %v212 = vpack.c.b16 %v180, %v180
      %v213 = vpack.c.b16 %v181, %v181
      %v214 = vpack.c.b16 %v182, %v182
      %vm247 = vcmask 257024
      %248 = vst.msk [vmem:[#allocation2] sm:$0xf] %vm247, %v183
      %249 = vst.msk [vmem:[#allocation2 + $0x4] sm:$0xf] %vm247, %v184
      %250 = vst.msk [vmem:[#allocation2 + $0x8] sm:$0xf] %vm247, %v185
      %251 = vst.msk [vmem:[#allocation2 + $0xc] sm:$0xf] %vm247, %v186
      %252 = vst.msk [vmem:[#allocation2 + $0x10] sm:$0xf] %vm247, %v187
      %253 = vst.msk [vmem:[#allocation2 + $0x14] sm:$0xf] %vm247, %v188
      %254 = vst.msk [vmem:[#allocation2 + $0x18] sm:$0xf] %vm247, %v189
      %255 = vst.msk [vmem:[#allocation2 + $0x1c] sm:$0xf] %vm247, %v190
      %256 = vst.msk [vmem:[#allocation2 + $0x20] sm:$0xf] %vm247, %v191
      %257 = vst.msk [vmem:[#allocation2 + $0x24] sm:$0xf] %vm247, %v192
      %258 = vst.msk [vmem:[#allocation2 + $0x28] sm:$0xf] %vm247, %v193
      %259 = vst.msk [vmem:[#allocation2 + $0x2c] sm:$0xf] %vm247, %v194
      %260 = vst.msk [vmem:[#allocation2 + $0x30] sm:$0xf] %vm247, %v195
      %261 = vst.msk [vmem:[#allocation2 + $0x34] sm:$0xf] %vm247, %v196
      %262 = vst.msk [vmem:[#allocation2 + $0x38] sm:$0xf] %vm247, %v197
      %263 = vst.msk [vmem:[#allocation2 + $0x3c] sm:$0xf] %vm247, %v198
      %264 = vst.msk [vmem:[#allocation2 + $0x40] sm:$0xf] %vm247, %v199
      %265 = vst.msk [vmem:[#allocation2 + $0x44] sm:$0xf] %vm247, %v200
      %266 = vst.msk [vmem:[#allocation2 + $0x48] sm:$0xf] %vm247, %v201
      %267 = vst.msk [vmem:[#allocation2 + $0x4c] sm:$0xf] %vm247, %v202
      %268 = vst.msk [vmem:[#allocation2 + $0x50] sm:$0xf] %vm247, %v203
      %269 = vst.msk [vmem:[#allocation2 + $0x54] sm:$0xf] %vm247, %v204
      %270 = vst.msk [vmem:[#allocation2 + $0x58] sm:$0xf] %vm247, %v205
      %271 = vst.msk [vmem:[#allocation2 + $0x5c] sm:$0xf] %vm247, %v206
      %272 = vst.msk [vmem:[#allocation2 + $0x60] sm:$0xf] %vm247, %v207
      %273 = vst.msk [vmem:[#allocation2 + $0x64] sm:$0xf] %vm247, %v208
      %274 = vst.msk [vmem:[#allocation2 + $0x68] sm:$0xf] %vm247, %v209
      %275 = vst.msk [vmem:[#allocation2 + $0x6c] sm:$0xf] %vm247, %v210
      %276 = vst.msk [vmem:[#allocation2 + $0x70] sm:$0xf] %vm247, %v211
      %277 = vst.msk [vmem:[#allocation2 + $0x74] sm:$0xf] %vm247, %v212
      %278 = vst.msk [vmem:[#allocation2 + $0x78] sm:$0xf] %vm247, %v213
      %279 = vst.msk [vmem:[#allocation2 + $0x7c] sm:$0xf] %vm247, %v214
      %vm280 = vcmask 7168
      %281 = vst.msk [vmem:[#allocation3] sm:$0xff] %vm280, -1e+30
      %282 = vst.msk [vmem:[#allocation3 + $0x8] sm:$0xff] %vm280, -1e+30
      %283 = vst.msk [vmem:[#allocation3 + $0x10] sm:$0xff] %vm280, -1e+30
      %284 = vst.msk [vmem:[#allocation3 + $0x18] sm:$0xff] %vm280, -1e+30
      %285 = vst.msk [vmem:[#allocation3 + $0x20] sm:$0xff] %vm280, -1e+30
      %286 = vst.msk [vmem:[#allocation3 + $0x28] sm:$0xff] %vm280, -1e+30
      %287 = vst.msk [vmem:[#allocation3 + $0x30] sm:$0xff] %vm280, -1e+30
      %288 = vst.msk [vmem:[#allocation3 + $0x38] sm:$0xff] %vm280, -1e+30
      %289 = vst.msk [vmem:[#allocation3 + $0x40] sm:$0xff] %vm280, -1e+30
      %290 = vst.msk [vmem:[#allocation3 + $0x48] sm:$0xff] %vm280, -1e+30
      %291 = vst.msk [vmem:[#allocation3 + $0x50] sm:$0xff] %vm280, -1e+30
      %292 = vst.msk [vmem:[#allocation3 + $0x58] sm:$0xff] %vm280, -1e+30
      %293 = vst.msk [vmem:[#allocation3 + $0x60] sm:$0xff] %vm280, -1e+30
      %294 = vst.msk [vmem:[#allocation3 + $0x68] sm:$0xff] %vm280, -1e+30
      %295 = vst.msk [vmem:[#allocation3 + $0x70] sm:$0xff] %vm280, -1e+30
      %296 = vst.msk [vmem:[#allocation3 + $0x78] sm:$0xff] %vm280, -1e+30
      %297 = vst.msk [vmem:[#allocation3 + $0x80] sm:$0xff] %vm280, -1e+30
      %298 = vst.msk [vmem:[#allocation3 + $0x88] sm:$0xff] %vm280, -1e+30
      %299 = vst.msk [vmem:[#allocation3 + $0x90] sm:$0xff] %vm280, -1e+30
      %300 = vst.msk [vmem:[#allocation3 + $0x98] sm:$0xff] %vm280, -1e+30
      %301 = vst.msk [vmem:[#allocation3 + $0xa0] sm:$0xff] %vm280, -1e+30
      %302 = vst.msk [vmem:[#allocation3 + $0xa8] sm:$0xff] %vm280, -1e+30
      %303 = vst.msk [vmem:[#allocation3 + $0xb0] sm:$0xff] %vm280, -1e+30
      %304 = vst.msk [vmem:[#allocation3 + $0xb8] sm:$0xff] %vm280, -1e+30
      %305 = vst.msk [vmem:[#allocation3 + $0xc0] sm:$0xff] %vm280, -1e+30
      %306 = vst.msk [vmem:[#allocation3 + $0xc8] sm:$0xff] %vm280, -1e+30
      %307 = vst.msk [vmem:[#allocation3 + $0xd0] sm:$0xff] %vm280, -1e+30
      %308 = vst.msk [vmem:[#allocation3 + $0xd8] sm:$0xff] %vm280, -1e+30
      %309 = vst.msk [vmem:[#allocation3 + $0xe0] sm:$0xff] %vm280, -1e+30
      %310 = vst.msk [vmem:[#allocation3 + $0xe8] sm:$0xff] %vm280, -1e+30
      %311 = vst.msk [vmem:[#allocation3 + $0xf0] sm:$0xff] %vm280, -1e+30
      %312 = vst.msk [vmem:[#allocation3 + $0xf8] sm:$0xff] %vm280, -1e+30
      %313 = vst.msk [vmem:[#allocation4] sm:$0xff] %vm280, 0.0
      %314 = vst.msk [vmem:[#allocation4 + $0x8] sm:$0xff] %vm280, 0.0
      %315 = vst.msk [vmem:[#allocation4 + $0x10] sm:$0xff] %vm280, 0.0
      %316 = vst.msk [vmem:[#allocation4 + $0x18] sm:$0xff] %vm280, 0.0
      %317 = vst.msk [vmem:[#allocation4 + $0x20] sm:$0xff] %vm280, 0.0
      %318 = vst.msk [vmem:[#allocation4 + $0x28] sm:$0xff] %vm280, 0.0
      %319 = vst.msk [vmem:[#allocation4 + $0x30] sm:$0xff] %vm280, 0.0
      %320 = vst.msk [vmem:[#allocation4 + $0x38] sm:$0xff] %vm280, 0.0
      %321 = vst.msk [vmem:[#allocation4 + $0x40] sm:$0xff] %vm280, 0.0
      %322 = vst.msk [vmem:[#allocation4 + $0x48] sm:$0xff] %vm280, 0.0
      %323 = vst.msk [vmem:[#allocation4 + $0x50] sm:$0xff] %vm280, 0.0
      %324 = vst.msk [vmem:[#allocation4 + $0x58] sm:$0xff] %vm280, 0.0
      %325 = vst.msk [vmem:[#allocation4 + $0x60] sm:$0xff] %vm280, 0.0
      %326 = vst.msk [vmem:[#allocation4 + $0x68] sm:$0xff] %vm280, 0.0
      %327 = vst.msk [vmem:[#allocation4 + $0x70] sm:$0xff] %vm280, 0.0
      %328 = vst.msk [vmem:[#allocation4 + $0x78] sm:$0xff] %vm280, 0.0
      %329 = vst.msk [vmem:[#allocation4 + $0x80] sm:$0xff] %vm280, 0.0
      %330 = vst.msk [vmem:[#allocation4 + $0x88] sm:$0xff] %vm280, 0.0
      %331 = vst.msk [vmem:[#allocation4 + $0x90] sm:$0xff] %vm280, 0.0
      %332 = vst.msk [vmem:[#allocation4 + $0x98] sm:$0xff] %vm280, 0.0
      %333 = vst.msk [vmem:[#allocation4 + $0xa0] sm:$0xff] %vm280, 0.0
      %334 = vst.msk [vmem:[#allocation4 + $0xa8] sm:$0xff] %vm280, 0.0
      %335 = vst.msk [vmem:[#allocation4 + $0xb0] sm:$0xff] %vm280, 0.0
      %336 = vst.msk [vmem:[#allocation4 + $0xb8] sm:$0xff] %vm280, 0.0
      %337 = vst.msk [vmem:[#allocation4 + $0xc0] sm:$0xff] %vm280, 0.0
      %338 = vst.msk [vmem:[#allocation4 + $0xc8] sm:$0xff] %vm280, 0.0
      %339 = vst.msk [vmem:[#allocation4 + $0xd0] sm:$0xff] %vm280, 0.0
      %340 = vst.msk [vmem:[#allocation4 + $0xd8] sm:$0xff] %vm280, 0.0
      %341 = vst.msk [vmem:[#allocation4 + $0xe0] sm:$0xff] %vm280, 0.0
      %342 = vst.msk [vmem:[#allocation4 + $0xe8] sm:$0xff] %vm280, 0.0
      %343 = vst.msk [vmem:[#allocation4 + $0xf0] sm:$0xff] %vm280, 0.0
      %344 = vst.msk [vmem:[#allocation4 + $0xf8] sm:$0xff] %vm280, 0.0
      %345 = vst.msk [vmem:[#allocation5] sm:$0xff] %vm280, 0.0
      %346 = vst.msk [vmem:[#allocation5 + $0x8] sm:$0xff] %vm280, 0.0
      %347 = vst.msk [vmem:[#allocation5 + $0x10] sm:$0xff] %vm280, 0.0
      %348 = vst.msk [vmem:[#allocation5 + $0x18] sm:$0xff] %vm280, 0.0
      %349 = vst.msk [vmem:[#allocation5 + $0x20] sm:$0xff] %vm280, 0.0
      %350 = vst.msk [vmem:[#allocation5 + $0x28] sm:$0xff] %vm280, 0.0
      %351 = vst.msk [vmem:[#allocation5 + $0x30] sm:$0xff] %vm280, 0.0
      %352 = vst.msk [vmem:[#allocation5 + $0x38] sm:$0xff] %vm280, 0.0
      %353 = vst.msk [vmem:[#allocation5 + $0x40] sm:$0xff] %vm280, 0.0
      %354 = vst.msk [vmem:[#allocation5 + $0x48] sm:$0xff] %vm280, 0.0
      %355 = vst.msk [vmem:[#allocation5 + $0x50] sm:$0xff] %vm280, 0.0
      %356 = vst.msk [vmem:[#allocation5 + $0x58] sm:$0xff] %vm280, 0.0
      %357 = vst.msk [vmem:[#allocation5 + $0x60] sm:$0xff] %vm280, 0.0
      %358 = vst.msk [vmem:[#allocation5 + $0x68] sm:$0xff] %vm280, 0.0
      %359 = vst.msk [vmem:[#allocation5 + $0x70] sm:$0xff] %vm280, 0.0
      %360 = vst.msk [vmem:[#allocation5 + $0x78] sm:$0xff] %vm280, 0.0
      %361 = vst.msk [vmem:[#allocation5 + $0x80] sm:$0xff] %vm280, 0.0
      %362 = vst.msk [vmem:[#allocation5 + $0x88] sm:$0xff] %vm280, 0.0
      %363 = vst.msk [vmem:[#allocation5 + $0x90] sm:$0xff] %vm280, 0.0
      %364 = vst.msk [vmem:[#allocation5 + $0x98] sm:$0xff] %vm280, 0.0
      %365 = vst.msk [vmem:[#allocation5 + $0xa0] sm:$0xff] %vm280, 0.0
      %366 = vst.msk [vmem:[#allocation5 + $0xa8] sm:$0xff] %vm280, 0.0
      %367 = vst.msk [vmem:[#allocation5 + $0xb0] sm:$0xff] %vm280, 0.0
      %368 = vst.msk [vmem:[#allocation5 + $0xb8] sm:$0xff] %vm280, 0.0
      %369 = vst.msk [vmem:[#allocation5 + $0xc0] sm:$0xff] %vm280, 0.0
      %370 = vst.msk [vmem:[#allocation5 + $0xc8] sm:$0xff] %vm280, 0.0
      %371 = vst.msk [vmem:[#allocation5 + $0xd0] sm:$0xff] %vm280, 0.0
      %372 = vst.msk [vmem:[#allocation5 + $0xd8] sm:$0xff] %vm280, 0.0
      %373 = vst.msk [vmem:[#allocation5 + $0xe0] sm:$0xff] %vm280, 0.0
      %374 = vst.msk [vmem:[#allocation5 + $0xe8] sm:$0xff] %vm280, 0.0
      %375 = vst.msk [vmem:[#allocation5 + $0xf0] sm:$0xff] %vm280, 0.0
      %376 = vst.msk [vmem:[#allocation5 + $0xf8] sm:$0xff] %vm280, 0.0
      %377 = vst.msk [vmem:[#allocation6] sm:$0xff] %vm280, 0.0
      %378 = vst.msk [vmem:[#allocation6 + $0x8] sm:$0xff] %vm280, 0.0
      %379 = vst.msk [vmem:[#allocation6 + $0x10] sm:$0xff] %vm280, 0.0
      %380 = vst.msk [vmem:[#allocation6 + $0x18] sm:$0xff] %vm280, 0.0
      %381 = vst.msk [vmem:[#allocation6 + $0x20] sm:$0xff] %vm280, 0.0
      %382 = vst.msk [vmem:[#allocation6 + $0x28] sm:$0xff] %vm280, 0.0
      %383 = vst.msk [vmem:[#allocation6 + $0x30] sm:$0xff] %vm280, 0.0
      %384 = vst.msk [vmem:[#allocation6 + $0x38] sm:$0xff] %vm280, 0.0
      %385 = vst.msk [vmem:[#allocation6 + $0x40] sm:$0xff] %vm280, 0.0
      %386 = vst.msk [vmem:[#allocation6 + $0x48] sm:$0xff] %vm280, 0.0
      %387 = vst.msk [vmem:[#allocation6 + $0x50] sm:$0xff] %vm280, 0.0
      %388 = vst.msk [vmem:[#allocation6 + $0x58] sm:$0xff] %vm280, 0.0
      %389 = vst.msk [vmem:[#allocation6 + $0x60] sm:$0xff] %vm280, 0.0
      %390 = vst.msk [vmem:[#allocation6 + $0x68] sm:$0xff] %vm280, 0.0
      %391 = vst.msk [vmem:[#allocation6 + $0x70] sm:$0xff] %vm280, 0.0
      %392 = vst.msk [vmem:[#allocation6 + $0x78] sm:$0xff] %vm280, 0.0
      %393 = vst.msk [vmem:[#allocation6 + $0x80] sm:$0xff] %vm280, 0.0
      %394 = vst.msk [vmem:[#allocation6 + $0x88] sm:$0xff] %vm280, 0.0
      %395 = vst.msk [vmem:[#allocation6 + $0x90] sm:$0xff] %vm280, 0.0
      %396 = vst.msk [vmem:[#allocation6 + $0x98] sm:$0xff] %vm280, 0.0
      %397 = vst.msk [vmem:[#allocation6 + $0xa0] sm:$0xff] %vm280, 0.0
      %398 = vst.msk [vmem:[#allocation6 + $0xa8] sm:$0xff] %vm280, 0.0
      %399 = vst.msk [vmem:[#allocation6 + $0xb0] sm:$0xff] %vm280, 0.0
      %400 = vst.msk [vmem:[#allocation6 + $0xb8] sm:$0xff] %vm280, 0.0
      %401 = vst.msk [vmem:[#allocation6 + $0xc0] sm:$0xff] %vm280, 0.0
      %402 = vst.msk [vmem:[#allocation6 + $0xc8] sm:$0xff] %vm280, 0.0
      %403 = vst.msk [vmem:[#allocation6 + $0xd0] sm:$0xff] %vm280, 0.0
      %404 = vst.msk [vmem:[#allocation6 + $0xd8] sm:$0xff] %vm280, 0.0
      %405 = vst.msk [vmem:[#allocation6 + $0xe0] sm:$0xff] %vm280, 0.0
      %406 = vst.msk [vmem:[#allocation6 + $0xe8] sm:$0xff] %vm280, 0.0
      %407 = vst.msk [vmem:[#allocation6 + $0xf0] sm:$0xff] %vm280, 0.0
      %408 = vst.msk [vmem:[#allocation6 + $0xf8] sm:$0xff] %vm280, 0.0
    $region21: #{tpu_custom_call.1} parent=1 // pred_fallthru
      _
    %v409 = vld [vmem:[#allocation2] sm:$0xf]
    %v410 = vld [vmem:[#allocation2 + $0x4] sm:$0xf]
    %v411 = vld [vmem:[#allocation2 + $0x8] sm:$0xf]
    %v412 = vld [vmem:[#allocation2 + $0xc] sm:$0xf]
    %v413 = vld [vmem:[#allocation2 + $0x10] sm:$0xf]
    %v414 = vld [vmem:[#allocation2 + $0x14] sm:$0xf]
    %v415 = vld [vmem:[#allocation2 + $0x18] sm:$0xf]
    %v416 = vld [vmem:[#allocation2 + $0x1c] sm:$0xf]
    %v417 = vld [vmem:[#allocation2 + $0x20] sm:$0xf]
    %v418 = vld [vmem:[#allocation2 + $0x24] sm:$0xf]
    %v419 = vld [vmem:[#allocation2 + $0x28] sm:$0xf]
    %v420 = vld [vmem:[#allocation2 + $0x2c] sm:$0xf]
    %v421 = vld [vmem:[#allocation2 + $0x30] sm:$0xf]
    %v422 = vld [vmem:[#allocation2 + $0x34] sm:$0xf]
    %v423 = vld [vmem:[#allocation2 + $0x38] sm:$0xf]
    %v424 = vld [vmem:[#allocation2 + $0x3c] sm:$0xf]
    %v425 = vld [vmem:[#allocation2 + $0x40] sm:$0xf]
    %v426 = vld [vmem:[#allocation2 + $0x44] sm:$0xf]
    %v427 = vld [vmem:[#allocation2 + $0x48] sm:$0xf]
    %v428 = vld [vmem:[#allocation2 + $0x4c] sm:$0xf]
    %v429 = vld [vmem:[#allocation2 + $0x50] sm:$0xf]
    %v430 = vld [vmem:[#allocation2 + $0x54] sm:$0xf]
    %v431 = vld [vmem:[#allocation2 + $0x58] sm:$0xf]
    %v432 = vld [vmem:[#allocation2 + $0x5c] sm:$0xf]
    %v433 = vld [vmem:[#allocation2 + $0x60] sm:$0xf]
    %v434 = vld [vmem:[#allocation2 + $0x64] sm:$0xf]
    %v435 = vld [vmem:[#allocation2 + $0x68] sm:$0xf]
    %v436 = vld [vmem:[#allocation2 + $0x6c] sm:$0xf]
    %v437 = vld [vmem:[#allocation2 + $0x70] sm:$0xf]
    %v438 = vld [vmem:[#allocation2 + $0x74] sm:$0xf]
    %v439 = vld [vmem:[#allocation2 + $0x78] sm:$0xf]
    %v440 = vld [vmem:[#allocation2 + $0x7c] sm:$0xf]
    %v441 = vld [vmem:[%s3] sm:$0xf]
    %v442 = vld [vmem:[%s3 + $0x4] sm:$0xf]
    %v443 = vld [vmem:[%s3 + $0x8] sm:$0xf]
    %v444 = vld [vmem:[%s3 + $0xc] sm:$0xf]
    %v445 = vld [vmem:[%s3 + $0x10] sm:$0xf]
    %v446 = vld [vmem:[%s3 + $0x14] sm:$0xf]
    %v447 = vld [vmem:[%s3 + $0x18] sm:$0xf]
    %v448 = vld [vmem:[%s3 + $0x1c] sm:$0xf]
    %v449 = vld [vmem:[%s3 + $0x20] sm:$0xf]
    %v450 = vld [vmem:[%s3 + $0x24] sm:$0xf]
    %v451 = vld [vmem:[%s3 + $0x28] sm:$0xf]
    %v452 = vld [vmem:[%s3 + $0x2c] sm:$0xf]
    %v453 = vld [vmem:[%s3 + $0x30] sm:$0xf]
    %v454 = vld [vmem:[%s3 + $0x34] sm:$0xf]
    %v455 = vld [vmem:[%s3 + $0x38] sm:$0xf]
    %v456 = vld [vmem:[%s3 + $0x3c] sm:$0xf]
    %v457 = vld [vmem:[%s3 + $0x40] sm:$0xf]
    %v458 = vld [vmem:[%s3 + $0x44] sm:$0xf]
    %v459 = vld [vmem:[%s3 + $0x48] sm:$0xf]
    %v460 = vld [vmem:[%s3 + $0x4c] sm:$0xf]
    %v461 = vld [vmem:[%s3 + $0x50] sm:$0xf]
    %v462 = vld [vmem:[%s3 + $0x54] sm:$0xf]
    %v463 = vld [vmem:[%s3 + $0x58] sm:$0xf]
    %v464 = vld [vmem:[%s3 + $0x5c] sm:$0xf]
    %v465 = vld [vmem:[%s3 + $0x60] sm:$0xf]
    %v466 = vld [vmem:[%s3 + $0x64] sm:$0xf]
    %v467 = vld [vmem:[%s3 + $0x68] sm:$0xf]
    %v468 = vld [vmem:[%s3 + $0x6c] sm:$0xf]
    %v469 = vld [vmem:[%s3 + $0x70] sm:$0xf]
    %v470 = vld [vmem:[%s3 + $0x74] sm:$0xf]
    %v471 = vld [vmem:[%s3 + $0x78] sm:$0xf]
    %v472 = vld [vmem:[%s3 + $0x7c] sm:$0xf]
    %v505 = vunpack.c.l.b16 %v409
    %v506 = vunpack.c.l.b16 %v410
    %v507 = vunpack.c.l.b16 %v411
    %v508 = vunpack.c.l.b16 %v412
    %v509 = vunpack.c.l.b16 %v413
    %v510 = vunpack.c.l.b16 %v414
    %v511 = vunpack.c.l.b16 %v415
    %v512 = vunpack.c.l.b16 %v416
    %v513 = vunpack.c.l.b16 %v417
    %v514 = vunpack.c.l.b16 %v418
    %v515 = vunpack.c.l.b16 %v419
    %v516 = vunpack.c.l.b16 %v420
    %v517 = vunpack.c.l.b16 %v421
    %v518 = vunpack.c.l.b16 %v422
    %v519 = vunpack.c.l.b16 %v423
    %v520 = vunpack.c.l.b16 %v424
    %v521 = vunpack.c.l.b16 %v425
    %v522 = vunpack.c.l.b16 %v426
    %v523 = vunpack.c.l.b16 %v427
    %v524 = vunpack.c.l.b16 %v428
    %v525 = vunpack.c.l.b16 %v429
    %v526 = vunpack.c.l.b16 %v430
    %v527 = vunpack.c.l.b16 %v431
    %v528 = vunpack.c.l.b16 %v432
    %v529 = vunpack.c.l.b16 %v433
    %v530 = vunpack.c.l.b16 %v434
    %v531 = vunpack.c.l.b16 %v435
    %v532 = vunpack.c.l.b16 %v436
    %v533 = vunpack.c.l.b16 %v437
    %v534 = vunpack.c.l.b16 %v438
    %v535 = vunpack.c.l.b16 %v439
    %v536 = vunpack.c.l.b16 %v440
    %v537 = vpack.c.b16 %v506, %v505
    %v538 = vpack.c.b16 %v508, %v507
    %v539 = vpack.c.b16 %v510, %v509
    %v540 = vpack.c.b16 %v512, %v511
    %v541 = vpack.c.b16 %v514, %v513
    %v542 = vpack.c.b16 %v516, %v515
    %v543 = vpack.c.b16 %v518, %v517
    %v544 = vpack.c.b16 %v520, %v519
    %v545 = vpack.c.b16 %v522, %v521
    %v546 = vpack.c.b16 %v524, %v523
    %v547 = vpack.c.b16 %v526, %v525
    %v548 = vpack.c.b16 %v528, %v527
    %v549 = vpack.c.b16 %v530, %v529
    %v550 = vpack.c.b16 %v532, %v531
    %v551 = vpack.c.b16 %v534, %v533
    %v552 = vpack.c.b16 %v536, %v535
    %v585 = vunpack.c.l.b16 %v441
    %v586 = vunpack.c.l.b16 %v442
    %v587 = vunpack.c.l.b16 %v443
    %v588 = vunpack.c.l.b16 %v444
    %v589 = vunpack.c.l.b16 %v445
    %v590 = vunpack.c.l.b16 %v446
    %v591 = vunpack.c.l.b16 %v447
    %v592 = vunpack.c.l.b16 %v448
    %v593 = vunpack.c.l.b16 %v449
    %v594 = vunpack.c.l.b16 %v450
    %v595 = vunpack.c.l.b16 %v451
    %v596 = vunpack.c.l.b16 %v452
    %v597 = vunpack.c.l.b16 %v453
    %v598 = vunpack.c.l.b16 %v454
    %v599 = vunpack.c.l.b16 %v455
    %v600 = vunpack.c.l.b16 %v456
    %v601 = vunpack.c.l.b16 %v457
    %v602 = vunpack.c.l.b16 %v458
    %v603 = vunpack.c.l.b16 %v459
    %v604 = vunpack.c.l.b16 %v460
    %v605 = vunpack.c.l.b16 %v461
    %v606 = vunpack.c.l.b16 %v462
    %v607 = vunpack.c.l.b16 %v463
    %v608 = vunpack.c.l.b16 %v464
    %v609 = vunpack.c.l.b16 %v465
    %v610 = vunpack.c.l.b16 %v466
    %v611 = vunpack.c.l.b16 %v467
    %v612 = vunpack.c.l.b16 %v468
    %v613 = vunpack.c.l.b16 %v469
    %v614 = vunpack.c.l.b16 %v470
    %v615 = vunpack.c.l.b16 %v471
    %v616 = vunpack.c.l.b16 %v472
    %v617 = vpack.c.b16 %v586, %v585
    %v618 = vpack.c.b16 %v588, %v587
    %v619 = vpack.c.b16 %v590, %v589
    %v620 = vpack.c.b16 %v592, %v591
    %v621 = vpack.c.b16 %v594, %v593
    %v622 = vpack.c.b16 %v596, %v595
    %v623 = vpack.c.b16 %v598, %v597
    %v624 = vpack.c.b16 %v600, %v599
    %v625 = vpack.c.b16 %v602, %v601
    %v626 = vpack.c.b16 %v604, %v603
    %v627 = vpack.c.b16 %v606, %v605
    %v628 = vpack.c.b16 %v608, %v607
    %v629 = vpack.c.b16 %v610, %v609
    %v630 = vpack.c.b16 %v612, %v611
    %v631 = vpack.c.b16 %v614, %v613
    %v632 = vpack.c.b16 %v616, %v615
    %vm633 = vcmask 261120
    %v635 = vsel %vm633, %v537, 0
    %v638 = vsel %vm633, %v538, 0
    %v641 = vsel %vm633, %v539, 0
    %v644 = vsel %vm633, %v540, 0
    %v647 = vsel %vm633, %v541, 0
    %v650 = vsel %vm633, %v542, 0
    %v653 = vsel %vm633, %v543, 0
    %v656 = vsel %vm633, %v544, 0
    %v659 = vsel %vm633, %v545, 0
    %v662 = vsel %vm633, %v546, 0
    %v665 = vsel %vm633, %v547, 0
    %v668 = vsel %vm633, %v548, 0
    %v671 = vsel %vm633, %v549, 0
    %v674 = vsel %vm633, %v550, 0
    %v677 = vsel %vm633, %v551, 0
    %v680 = vsel %vm633, %v552, 0
    %v683 = vsel %vm633, %v617, 0
    %v686 = vsel %vm633, %v618, 0
    %v689 = vsel %vm633, %v619, 0
    %v692 = vsel %vm633, %v620, 0
    %v695 = vsel %vm633, %v621, 0
    %v698 = vsel %vm633, %v622, 0
    %v701 = vsel %vm633, %v623, 0
    %v704 = vsel %vm633, %v624, 0
    %v707 = vsel %vm633, %v625, 0
    %v710 = vsel %vm633, %v626, 0
    %v713 = vsel %vm633, %v627, 0
    %v716 = vsel %vm633, %v628, 0
    %v719 = vsel %vm633, %v629, 0
    %v722 = vsel %vm633, %v630, 0
    %v725 = vsel %vm633, %v631, 0
    %v728 = vsel %vm633, %v632, 0
    %730 = vmatprep.subr.bf16.mxu0 0
    %731 = vmatpush1.bf16.xpose.msra.mxu0 %v704
    %732 = vmatprep.subr.bf16.mxu0 0
    %733 = vmatpush1.bf16.xpose.msra.mxu0 %v701
    %734 = vmatprep.subr.bf16.mxu0 0
    %735 = vmatpush1.bf16.xpose.msra.mxu0 %v698
    %736 = vmatprep.subr.bf16.mxu0 0
    %737 = vmatpush1.bf16.xpose.msra.mxu0 %v695
    %738 = vmatprep.subr.bf16.mxu0 0
    %739 = vmatpush1.bf16.xpose.msra.mxu0 %v692
    %740 = vmatprep.subr.bf16.mxu0 0
    %741 = vmatpush1.bf16.xpose.msra.mxu0 %v689
    %742 = vmatprep.subr.bf16.mxu0 0
    %743 = vmatpush1.bf16.xpose.msra.mxu0 %v686
    %744 = vmatprep.subr.bf16.mxu0 0
    %745 = vmatpush1.bf16.xpose.msra.mxu0 %v683
    %746 = vmatprep.subr.bf16.mxu0 0
    %747 = vmatpush2.bf16.xpose.msra.mxu0 %v728
    %748 = vmatprep.subr.bf16.mxu0 0
    %749 = vmatpush2.bf16.xpose.msra.mxu0 %v725
    %750 = vmatprep.subr.bf16.mxu0 0
    %751 = vmatpush2.bf16.xpose.msra.mxu0 %v722
    %752 = vmatprep.subr.bf16.mxu0 0
    %753 = vmatpush2.bf16.xpose.msra.mxu0 %v719
    %754 = vmatprep.subr.bf16.mxu0 0
    %755 = vmatpush2.bf16.xpose.msra.mxu0 %v716
    %756 = vmatprep.subr.bf16.mxu0 0
    %757 = vmatpush2.bf16.xpose.msra.mxu0 %v713
    %758 = vmatprep.subr.bf16.mxu0 0
    %759 = vmatpush2.bf16.xpose.msra.mxu0 %v710
    %760 = vmatprep.subr.bf16.mxu0 0
    %761 = vmatpush2.bf16.xpose.msra.mxu0 %v707
    %762 = vmatprep.mubr.bf16.mxu0 0
    %763 = vmatmul.mubr.bf16.gmra.mxu0 %v635
    %v764 = vpop.f32.mrf.mxu0
    %v765 = vadd.f32 0.0, %v764
    %v766 = vpop.f32.mrf.mxu0
    %v767 = vadd.f32 0.0, %v766
    %v768 = vpop.f32.mrf.mxu0
    %v769 = vadd.f32 0.0, %v768
    %v770 = vpop.f32.mrf.mxu0
    %v771 = vadd.f32 0.0, %v770
    %772 = vmatprep.mubr.bf16.mxu0 0
    %773 = vmatmul.mubr.bf16.gmra.mxu0 %v638
    %v774 = vpop.f32.mrf.mxu0
    %v775 = vadd.f32 0.0, %v774
    %v776 = vpop.f32.mrf.mxu0
    %v777 = vadd.f32 0.0, %v776
    %v778 = vpop.f32.mrf.mxu0
    %v779 = vadd.f32 0.0, %v778
    %v780 = vpop.f32.mrf.mxu0
    %v781 = vadd.f32 0.0, %v780
    %782 = vmatprep.mubr.bf16.mxu0 0
    %783 = vmatmul.mubr.bf16.gmra.mxu0 %v641
    %v784 = vpop.f32.mrf.mxu0
    %v785 = vadd.f32 0.0, %v784
    %v786 = vpop.f32.mrf.mxu0
    %v787 = vadd.f32 0.0, %v786
    %v788 = vpop.f32.mrf.mxu0
    %v789 = vadd.f32 0.0, %v788
    %v790 = vpop.f32.mrf.mxu0
    %v791 = vadd.f32 0.0, %v790
    %792 = vmatprep.mubr.bf16.mxu0 0
    %793 = vmatmul.mubr.bf16.gmra.mxu0 %v644
    %v794 = vpop.f32.mrf.mxu0
    %v795 = vadd.f32 0.0, %v794
    %v796 = vpop.f32.mrf.mxu0
    %v797 = vadd.f32 0.0, %v796
    %v798 = vpop.f32.mrf.mxu0
    %v799 = vadd.f32 0.0, %v798
    %v800 = vpop.f32.mrf.mxu0
    %v801 = vadd.f32 0.0, %v800
    %802 = vmatprep.mubr.bf16.mxu0 0
    %803 = vmatmul.mubr.bf16.gmra.mxu0 %v647
    %v804 = vpop.f32.mrf.mxu0
    %v805 = vadd.f32 0.0, %v804
    %v806 = vpop.f32.mrf.mxu0
    %v807 = vadd.f32 0.0, %v806
    %v808 = vpop.f32.mrf.mxu0
    %v809 = vadd.f32 0.0, %v808
    %v810 = vpop.f32.mrf.mxu0
    %v811 = vadd.f32 0.0, %v810
    %812 = vmatprep.mubr.bf16.mxu0 0
    %813 = vmatmul.mubr.bf16.gmra.mxu0 %v650
    %v814 = vpop.f32.mrf.mxu0
    %v815 = vadd.f32 0.0, %v814
    %v816 = vpop.f32.mrf.mxu0
    %v817 = vadd.f32 0.0, %v816
    %v818 = vpop.f32.mrf.mxu0
    %v819 = vadd.f32 0.0, %v818
    %v820 = vpop.f32.mrf.mxu0
    %v821 = vadd.f32 0.0, %v820
    %822 = vmatprep.mubr.bf16.mxu0 0
    %823 = vmatmul.mubr.bf16.gmra.mxu0 %v653
    %v824 = vpop.f32.mrf.mxu0
    %v825 = vadd.f32 0.0, %v824
    %v826 = vpop.f32.mrf.mxu0
    %v827 = vadd.f32 0.0, %v826
    %v828 = vpop.f32.mrf.mxu0
    %v829 = vadd.f32 0.0, %v828
    %v830 = vpop.f32.mrf.mxu0
    %v831 = vadd.f32 0.0, %v830
    %832 = vmatprep.mubr.bf16.mxu0 0
    %833 = vmatmul.mubr.bf16.gmra.mxu0 %v656
    %v834 = vpop.f32.mrf.mxu0
    %v835 = vadd.f32 0.0, %v834
    %v836 = vpop.f32.mrf.mxu0
    %v837 = vadd.f32 0.0, %v836
    %v838 = vpop.f32.mrf.mxu0
    %v839 = vadd.f32 0.0, %v838
    %v840 = vpop.f32.mrf.mxu0
    %v841 = vadd.f32 0.0, %v840
    %842 = vmatprep.mubr.bf16.mxu0 0
    %843 = vmatmul.mubr.bf16.gmra.mxu0 %v659
    %v844 = vpop.f32.mrf.mxu0
    %v845 = vadd.f32 0.0, %v844
    %v846 = vpop.f32.mrf.mxu0
    %v847 = vadd.f32 0.0, %v846
    %v848 = vpop.f32.mrf.mxu0
    %v849 = vadd.f32 0.0, %v848
    %v850 = vpop.f32.mrf.mxu0
    %v851 = vadd.f32 0.0, %v850
    %852 = vmatprep.mubr.bf16.mxu0 0
    %853 = vmatmul.mubr.bf16.gmra.mxu0 %v662
    %v854 = vpop.f32.mrf.mxu0
    %v855 = vadd.f32 0.0, %v854
    %v856 = vpop.f32.mrf.mxu0
    %v857 = vadd.f32 0.0, %v856
    %v858 = vpop.f32.mrf.mxu0
    %v859 = vadd.f32 0.0, %v858
    %v860 = vpop.f32.mrf.mxu0
    %v861 = vadd.f32 0.0, %v860
    %862 = vmatprep.mubr.bf16.mxu0 0
    %863 = vmatmul.mubr.bf16.gmra.mxu0 %v665
    %v864 = vpop.f32.mrf.mxu0
    %v865 = vadd.f32 0.0, %v864
    %v866 = vpop.f32.mrf.mxu0
    %v867 = vadd.f32 0.0, %v866
    %v868 = vpop.f32.mrf.mxu0
    %v869 = vadd.f32 0.0, %v868
    %v870 = vpop.f32.mrf.mxu0
    %v871 = vadd.f32 0.0, %v870
    %872 = vmatprep.mubr.bf16.mxu0 0
    %873 = vmatmul.mubr.bf16.gmra.mxu0 %v668
    %v874 = vpop.f32.mrf.mxu0
    %v875 = vadd.f32 0.0, %v874
    %v876 = vpop.f32.mrf.mxu0
    %v877 = vadd.f32 0.0, %v876
    %v878 = vpop.f32.mrf.mxu0
    %v879 = vadd.f32 0.0, %v878
    %v880 = vpop.f32.mrf.mxu0
    %v881 = vadd.f32 0.0, %v880
    %882 = vmatprep.mubr.bf16.mxu0 0
    %883 = vmatmul.mubr.bf16.gmra.mxu0 %v671
    %v884 = vpop.f32.mrf.mxu0
    %v885 = vadd.f32 0.0, %v884
    %v886 = vpop.f32.mrf.mxu0
    %v887 = vadd.f32 0.0, %v886
    %v888 = vpop.f32.mrf.mxu0
    %v889 = vadd.f32 0.0, %v888
    %v890 = vpop.f32.mrf.mxu0
    %v891 = vadd.f32 0.0, %v890
    %892 = vmatprep.mubr.bf16.mxu0 0
    %893 = vmatmul.mubr.bf16.gmra.mxu0 %v674
    %v894 = vpop.f32.mrf.mxu0
    %v895 = vadd.f32 0.0, %v894
    %v896 = vpop.f32.mrf.mxu0
    %v897 = vadd.f32 0.0, %v896
    %v898 = vpop.f32.mrf.mxu0
    %v899 = vadd.f32 0.0, %v898
    %v900 = vpop.f32.mrf.mxu0
    %v901 = vadd.f32 0.0, %v900
    %902 = vmatprep.mubr.bf16.mxu0 0
    %903 = vmatmul.mubr.bf16.gmra.mxu0 %v677
    %v904 = vpop.f32.mrf.mxu0
    %v905 = vadd.f32 0.0, %v904
    %v906 = vpop.f32.mrf.mxu0
    %v907 = vadd.f32 0.0, %v906
    %v908 = vpop.f32.mrf.mxu0
    %v909 = vadd.f32 0.0, %v908
    %v910 = vpop.f32.mrf.mxu0
    %v911 = vadd.f32 0.0, %v910
    %912 = vmatprep.mubr.bf16.mxu0 0
    %913 = vmatmul.mubr.bf16.gmra.mxu0 %v680
    %v914 = vpop.f32.mrf.mxu0
    %v915 = vadd.f32 0.0, %v914
    %v916 = vpop.f32.mrf.mxu0
    %v917 = vadd.f32 0.0, %v916
    %v918 = vpop.f32.mrf.mxu0
    %v919 = vadd.f32 0.0, %v918
    %v920 = vpop.f32.mrf.mxu0
    %v921 = vadd.f32 0.0, %v920
    %922 = vdwg.mxu0
    %v923 = vld [vmem:[%s0] sm:$0xff]
    %v924 = vld [vmem:[%s0 + $0x8] sm:$0xff]
    %v925 = vld [vmem:[%s0 + $0x10] sm:$0xff]
    %v926 = vld [vmem:[%s0 + $0x18] sm:$0xff]
    %v927 = vld [vmem:[%s0 + $0x20] sm:$0xff]
    %v928 = vld [vmem:[%s0 + $0x28] sm:$0xff]
    %v929 = vld [vmem:[%s0 + $0x30] sm:$0xff]
    %v930 = vld [vmem:[%s0 + $0x38] sm:$0xff]
    %v931 = vld [vmem:[%s0 + $0x40] sm:$0xff]
    %v932 = vld [vmem:[%s0 + $0x48] sm:$0xff]
    %v933 = vld [vmem:[%s0 + $0x50] sm:$0xff]
    %v934 = vld [vmem:[%s0 + $0x58] sm:$0xff]
    %v935 = vld [vmem:[%s0 + $0x60] sm:$0xff]
    %v936 = vld [vmem:[%s0 + $0x68] sm:$0xff]
    %v937 = vld [vmem:[%s0 + $0x70] sm:$0xff]
    %v938 = vld [vmem:[%s0 + $0x78] sm:$0xff]
    %v939 = vld [vmem:[%s0 + $0x80] sm:$0xff]
    %v940 = vld [vmem:[%s0 + $0x88] sm:$0xff]
    %v941 = vld [vmem:[%s0 + $0x90] sm:$0xff]
    %v942 = vld [vmem:[%s0 + $0x98] sm:$0xff]
    %v943 = vld [vmem:[%s0 + $0xa0] sm:$0xff]
    %v944 = vld [vmem:[%s0 + $0xa8] sm:$0xff]
    %v945 = vld [vmem:[%s0 + $0xb0] sm:$0xff]
    %v946 = vld [vmem:[%s0 + $0xb8] sm:$0xff]
    %v947 = vld [vmem:[%s0 + $0xc0] sm:$0xff]
    %v948 = vld [vmem:[%s0 + $0xc8] sm:$0xff]
    %v949 = vld [vmem:[%s0 + $0xd0] sm:$0xff]
    %v950 = vld [vmem:[%s0 + $0xd8] sm:$0xff]
    %v951 = vld [vmem:[%s0 + $0xe0] sm:$0xff]
    %v952 = vld [vmem:[%s0 + $0xe8] sm:$0xff]
    %v953 = vld [vmem:[%s0 + $0xf0] sm:$0xff]
    %v954 = vld [vmem:[%s0 + $0xf8] sm:$0xff]
    %v955 = vld [vmem:[%s1] sm:$0x3]
    %956 = vset.pattern.permute.xlu0 0
    %957 = vperm.xlu0 %956, %v923
    %v958 = vpop.permute.xlu0 %957
    %959 = vset.pattern.permute.xlu0 0
    %960 = vperm.xlu0 %959, %v924
    %v961 = vpop.permute.xlu0 %960
    %962 = vset.pattern.permute.xlu0 0
    %963 = vperm.xlu0 %962, %v925
    %v964 = vpop.permute.xlu0 %963
    %965 = vset.pattern.permute.xlu0 0
    %966 = vperm.xlu0 %965, %v926
    %v967 = vpop.permute.xlu0 %966
    %968 = vset.pattern.permute.xlu0 0
    %969 = vperm.xlu0 %968, %v927
    %v970 = vpop.permute.xlu0 %969
    %971 = vset.pattern.permute.xlu0 0
    %972 = vperm.xlu0 %971, %v928
    %v973 = vpop.permute.xlu0 %972
    %974 = vset.pattern.permute.xlu0 0
    %975 = vperm.xlu0 %974, %v929
    %v976 = vpop.permute.xlu0 %975
    %977 = vset.pattern.permute.xlu0 0
    %978 = vperm.xlu0 %977, %v930
    %v979 = vpop.permute.xlu0 %978
    %980 = vset.pattern.permute.xlu0 0
    %981 = vperm.xlu0 %980, %v931
    %v982 = vpop.permute.xlu0 %981
    %983 = vset.pattern.permute.xlu0 0
    %984 = vperm.xlu0 %983, %v932
    %v985 = vpop.permute.xlu0 %984
    %986 = vset.pattern.permute.xlu0 0
    %987 = vperm.xlu0 %986, %v933
    %v988 = vpop.permute.xlu0 %987
    %989 = vset.pattern.permute.xlu0 0
    %990 = vperm.xlu0 %989, %v934
    %v991 = vpop.permute.xlu0 %990
    %992 = vset.pattern.permute.xlu0 0
    %993 = vperm.xlu0 %992, %v935
    %v994 = vpop.permute.xlu0 %993
    %995 = vset.pattern.permute.xlu0 0
    %996 = vperm.xlu0 %995, %v936
    %v997 = vpop.permute.xlu0 %996
    %998 = vset.pattern.permute.xlu0 0
    %999 = vperm.xlu0 %998, %v937
    %v1000 = vpop.permute.xlu0 %999
    %1001 = vset.pattern.permute.xlu0 0
    %1002 = vperm.xlu0 %1001, %v938
    %v1003 = vpop.permute.xlu0 %1002
    %1004 = vset.pattern.permute.xlu0 0
    %1005 = vperm.xlu0 %1004, %v939
    %v1006 = vpop.permute.xlu0 %1005
    %1007 = vset.pattern.permute.xlu0 0
    %1008 = vperm.xlu0 %1007, %v940
    %v1009 = vpop.permute.xlu0 %1008
    %1010 = vset.pattern.permute.xlu0 0
    %1011 = vperm.xlu0 %1010, %v941
    %v1012 = vpop.permute.xlu0 %1011
    %1013 = vset.pattern.permute.xlu0 0
    %1014 = vperm.xlu0 %1013, %v942
    %v1015 = vpop.permute.xlu0 %1014
    %1016 = vset.pattern.permute.xlu0 0
    %1017 = vperm.xlu0 %1016, %v943
    %v1018 = vpop.permute.xlu0 %1017
    %1019 = vset.pattern.permute.xlu0 0
    %1020 = vperm.xlu0 %1019, %v944
    %v1021 = vpop.permute.xlu0 %1020
    %1022 = vset.pattern.permute.xlu0 0
    %1023 = vperm.xlu0 %1022, %v945
    %v1024 = vpop.permute.xlu0 %1023
    %1025 = vset.pattern.permute.xlu0 0
    %1026 = vperm.xlu0 %1025, %v946
    %v1027 = vpop.permute.xlu0 %1026
    %1028 = vset.pattern.permute.xlu0 0
    %1029 = vperm.xlu0 %1028, %v947
    %v1030 = vpop.permute.xlu0 %1029
    %1031 = vset.pattern.permute.xlu0 0
    %1032 = vperm.xlu0 %1031, %v948
    %v1033 = vpop.permute.xlu0 %1032
    %1034 = vset.pattern.permute.xlu0 0
    %1035 = vperm.xlu0 %1034, %v949
    %v1036 = vpop.permute.xlu0 %1035
    %1037 = vset.pattern.permute.xlu0 0
    %1038 = vperm.xlu0 %1037, %v950
    %v1039 = vpop.permute.xlu0 %1038
    %1040 = vset.pattern.permute.xlu0 0
    %1041 = vperm.xlu0 %1040, %v951
    %v1042 = vpop.permute.xlu0 %1041
    %1043 = vset.pattern.permute.xlu0 0
    %1044 = vperm.xlu0 %1043, %v952
    %v1045 = vpop.permute.xlu0 %1044
    %1046 = vset.pattern.permute.xlu0 0
    %1047 = vperm.xlu0 %1046, %v953
    %v1048 = vpop.permute.xlu0 %1047
    %1049 = vset.pattern.permute.xlu0 0
    %1050 = vperm.xlu0 %1049, %v954
    %v1051 = vpop.permute.xlu0 %1050
    %v1052 = vlaneseq
    %v1053 = vshrl.u32 %v1052, 7
    %v1054 = vsub.s32 0, %v1053
    %v1055 = vrot.slane %v955, %v1054
    %v1056 = vlaneseq
    %v1057 = vshrl.u32 %v1056, 7
    %v1058 = vsub.s32 1, %v1057
    %v1059 = vrot.slane %v955, %v1058
    %vm1060 = vcmp.eq.s32.totalorder %v958, %v1055
    %vm1061 = vcmp.eq.s32.totalorder %v958, %v1059
    %vm1062 = vcmp.eq.s32.totalorder %v961, %v1055
    %vm1063 = vcmp.eq.s32.totalorder %v961, %v1059
    %vm1064 = vcmp.eq.s32.totalorder %v964, %v1055
    %vm1065 = vcmp.eq.s32.totalorder %v964, %v1059
    %vm1066 = vcmp.eq.s32.totalorder %v967, %v1055
    %vm1067 = vcmp.eq.s32.totalorder %v967, %v1059
    %vm1068 = vcmp.eq.s32.totalorder %v970, %v1055
    %vm1069 = vcmp.eq.s32.totalorder %v970, %v1059
    %vm1070 = vcmp.eq.s32.totalorder %v973, %v1055
    %vm1071 = vcmp.eq.s32.totalorder %v973, %v1059
    %vm1072 = vcmp.eq.s32.totalorder %v976, %v1055
    %vm1073 = vcmp.eq.s32.totalorder %v976, %v1059
    %vm1074 = vcmp.eq.s32.totalorder %v979, %v1055
    %vm1075 = vcmp.eq.s32.totalorder %v979, %v1059
    %vm1076 = vcmp.eq.s32.totalorder %v982, %v1055
    %vm1077 = vcmp.eq.s32.totalorder %v982, %v1059
    %vm1078 = vcmp.eq.s32.totalorder %v985, %v1055
    %vm1079 = vcmp.eq.s32.totalorder %v985, %v1059
    %vm1080 = vcmp.eq.s32.totalorder %v988, %v1055
    %vm1081 = vcmp.eq.s32.totalorder %v988, %v1059
    %vm1082 = vcmp.eq.s32.totalorder %v991, %v1055
    %vm1083 = vcmp.eq.s32.totalorder %v991, %v1059
    %vm1084 = vcmp.eq.s32.totalorder %v994, %v1055
    %vm1085 = vcmp.eq.s32.totalorder %v994, %v1059
    %vm1086 = vcmp.eq.s32.totalorder %v997, %v1055
    %vm1087 = vcmp.eq.s32.totalorder %v997, %v1059
    %vm1088 = vcmp.eq.s32.totalorder %v1000, %v1055
    %vm1089 = vcmp.eq.s32.totalorder %v1000, %v1059
    %vm1090 = vcmp.eq.s32.totalorder %v1003, %v1055
    %vm1091 = vcmp.eq.s32.totalorder %v1003, %v1059
    %vm1092 = vcmp.eq.s32.totalorder %v1006, %v1055
    %vm1093 = vcmp.eq.s32.totalorder %v1006, %v1059
    %vm1094 = vcmp.eq.s32.totalorder %v1009, %v1055
    %vm1095 = vcmp.eq.s32.totalorder %v1009, %v1059
    %vm1096 = vcmp.eq.s32.totalorder %v1012, %v1055
    %vm1097 = vcmp.eq.s32.totalorder %v1012, %v1059
    %vm1098 = vcmp.eq.s32.totalorder %v1015, %v1055
    %vm1099 = vcmp.eq.s32.totalorder %v1015, %v1059
    %vm1100 = vcmp.eq.s32.totalorder %v1018, %v1055
    %vm1101 = vcmp.eq.s32.totalorder %v1018, %v1059
    %vm1102 = vcmp.eq.s32.totalorder %v1021, %v1055
    %vm1103 = vcmp.eq.s32.totalorder %v1021, %v1059
    %vm1104 = vcmp.eq.s32.totalorder %v1024, %v1055
    %vm1105 = vcmp.eq.s32.totalorder %v1024, %v1059
    %vm1106 = vcmp.eq.s32.totalorder %v1027, %v1055
    %vm1107 = vcmp.eq.s32.totalorder %v1027, %v1059
    %vm1108 = vcmp.eq.s32.totalorder %v1030, %v1055
    %vm1109 = vcmp.eq.s32.totalorder %v1030, %v1059
    %vm1110 = vcmp.eq.s32.totalorder %v1033, %v1055
    %vm1111 = vcmp.eq.s32.totalorder %v1033, %v1059
    %vm1112 = vcmp.eq.s32.totalorder %v1036, %v1055
    %vm1113 = vcmp.eq.s32.totalorder %v1036, %v1059
    %vm1114 = vcmp.eq.s32.totalorder %v1039, %v1055
    %vm1115 = vcmp.eq.s32.totalorder %v1039, %v1059
    %vm1116 = vcmp.eq.s32.totalorder %v1042, %v1055
    %vm1117 = vcmp.eq.s32.totalorder %v1042, %v1059
    %vm1118 = vcmp.eq.s32.totalorder %v1045, %v1055
    %vm1119 = vcmp.eq.s32.totalorder %v1045, %v1059
    %vm1120 = vcmp.eq.s32.totalorder %v1048, %v1055
    %vm1121 = vcmp.eq.s32.totalorder %v1048, %v1059
    %vm1122 = vcmp.eq.s32.totalorder %v1051, %v1055
    %vm1123 = vcmp.eq.s32.totalorder %v1051, %v1059
    %v1124 = vsel %vm1060, 1, 0
    %v1125 = vsel %vm1061, 1, 0
    %v1126 = vsel %vm1062, 1, 0
    %v1127 = vsel %vm1063, 1, 0
    %v1128 = vsel %vm1064, 1, 0
    %v1129 = vsel %vm1065, 1, 0
    %v1130 = vsel %vm1066, 1, 0
    %v1131 = vsel %vm1067, 1, 0
    %v1132 = vsel %vm1068, 1, 0
    %v1133 = vsel %vm1069, 1, 0
    %v1134 = vsel %vm1070, 1, 0
    %v1135 = vsel %vm1071, 1, 0
    %v1136 = vsel %vm1072, 1, 0
    %v1137 = vsel %vm1073, 1, 0
    %v1138 = vsel %vm1074, 1, 0
    %v1139 = vsel %vm1075, 1, 0
    %v1140 = vsel %vm1076, 1, 0
    %v1141 = vsel %vm1077, 1, 0
    %v1142 = vsel %vm1078, 1, 0
    %v1143 = vsel %vm1079, 1, 0
    %v1144 = vsel %vm1080, 1, 0
    %v1145 = vsel %vm1081, 1, 0
    %v1146 = vsel %vm1082, 1, 0
    %v1147 = vsel %vm1083, 1, 0
    %v1148 = vsel %vm1084, 1, 0
    %v1149 = vsel %vm1085, 1, 0
    %v1150 = vsel %vm1086, 1, 0
    %v1151 = vsel %vm1087, 1, 0
    %v1152 = vsel %vm1088, 1, 0
    %v1153 = vsel %vm1089, 1, 0
    %v1154 = vsel %vm1090, 1, 0
    %v1155 = vsel %vm1091, 1, 0
    %v1156 = vsel %vm1092, 1, 0
    %v1157 = vsel %vm1093, 1, 0
    %v1158 = vsel %vm1094, 1, 0
    %v1159 = vsel %vm1095, 1, 0
    %v1160 = vsel %vm1096, 1, 0
    %v1161 = vsel %vm1097, 1, 0
    %v1162 = vsel %vm1098, 1, 0
    %v1163 = vsel %vm1099, 1, 0
    %v1164 = vsel %vm1100, 1, 0
    %v1165 = vsel %vm1101, 1, 0
    %v1166 = vsel %vm1102, 1, 0
    %v1167 = vsel %vm1103, 1, 0
    %v1168 = vsel %vm1104, 1, 0
    %v1169 = vsel %vm1105, 1, 0
    %v1170 = vsel %vm1106, 1, 0
    %v1171 = vsel %vm1107, 1, 0
    %v1172 = vsel %vm1108, 1, 0
    %v1173 = vsel %vm1109, 1, 0
    %v1174 = vsel %vm1110, 1, 0
    %v1175 = vsel %vm1111, 1, 0
    %v1176 = vsel %vm1112, 1, 0
    %v1177 = vsel %vm1113, 1, 0
    %v1178 = vsel %vm1114, 1, 0
    %v1179 = vsel %vm1115, 1, 0
    %v1180 = vsel %vm1116, 1, 0
    %v1181 = vsel %vm1117, 1, 0
    %v1182 = vsel %vm1118, 1, 0
    %v1183 = vsel %vm1119, 1, 0
    %v1184 = vsel %vm1120, 1, 0
    %v1185 = vsel %vm1121, 1, 0
    %v1186 = vsel %vm1122, 1, 0
    %v1187 = vsel %vm1123, 1, 0
    %v1188 = vcvt.s32.f32 %v1124
    %v1189 = vcvt.s32.f32 %v1125
    %v1190 = vcvt.s32.f32 %v1126
    %v1191 = vcvt.s32.f32 %v1127
    %v1192 = vcvt.s32.f32 %v1128
    %v1193 = vcvt.s32.f32 %v1129
    %v1194 = vcvt.s32.f32 %v1130
    %v1195 = vcvt.s32.f32 %v1131
    %v1196 = vcvt.s32.f32 %v1132
    %v1197 = vcvt.s32.f32 %v1133
    %v1198 = vcvt.s32.f32 %v1134
    %v1199 = vcvt.s32.f32 %v1135
    %v1200 = vcvt.s32.f32 %v1136
    %v1201 = vcvt.s32.f32 %v1137
    %v1202 = vcvt.s32.f32 %v1138
    %v1203 = vcvt.s32.f32 %v1139
    %v1204 = vcvt.s32.f32 %v1140
    %v1205 = vcvt.s32.f32 %v1141
    %v1206 = vcvt.s32.f32 %v1142
    %v1207 = vcvt.s32.f32 %v1143
    %v1208 = vcvt.s32.f32 %v1144
    %v1209 = vcvt.s32.f32 %v1145
    %v1210 = vcvt.s32.f32 %v1146
    %v1211 = vcvt.s32.f32 %v1147
    %v1212 = vcvt.s32.f32 %v1148
    %v1213 = vcvt.s32.f32 %v1149
    %v1214 = vcvt.s32.f32 %v1150
    %v1215 = vcvt.s32.f32 %v1151
    %v1216 = vcvt.s32.f32 %v1152
    %v1217 = vcvt.s32.f32 %v1153
    %v1218 = vcvt.s32.f32 %v1154
    %v1219 = vcvt.s32.f32 %v1155
    %v1220 = vcvt.s32.f32 %v1156
    %v1221 = vcvt.s32.f32 %v1157
    %v1222 = vcvt.s32.f32 %v1158
    %v1223 = vcvt.s32.f32 %v1159
    %v1224 = vcvt.s32.f32 %v1160
    %v1225 = vcvt.s32.f32 %v1161
    %v1226 = vcvt.s32.f32 %v1162
    %v1227 = vcvt.s32.f32 %v1163
    %v1228 = vcvt.s32.f32 %v1164
    %v1229 = vcvt.s32.f32 %v1165
    %v1230 = vcvt.s32.f32 %v1166
    %v1231 = vcvt.s32.f32 %v1167
    %v1232 = vcvt.s32.f32 %v1168
    %v1233 = vcvt.s32.f32 %v1169
    %v1234 = vcvt.s32.f32 %v1170
    %v1235 = vcvt.s32.f32 %v1171
    %v1236 = vcvt.s32.f32 %v1172
    %v1237 = vcvt.s32.f32 %v1173
    %v1238 = vcvt.s32.f32 %v1174
    %v1239 = vcvt.s32.f32 %v1175
    %v1240 = vcvt.s32.f32 %v1176
    %v1241 = vcvt.s32.f32 %v1177
    %v1242 = vcvt.s32.f32 %v1178
    %v1243 = vcvt.s32.f32 %v1179
    %v1244 = vcvt.s32.f32 %v1180
    %v1245 = vcvt.s32.f32 %v1181
    %v1246 = vcvt.s32.f32 %v1182
    %v1247 = vcvt.s32.f32 %v1183
    %v1248 = vcvt.s32.f32 %v1184
    %v1249 = vcvt.s32.f32 %v1185
    %v1250 = vcvt.s32.f32 %v1186
    %v1251 = vcvt.s32.f32 %v1187
    %s1252 = smul.u32 0, 256
    %s1253 = smul.u32 0, 256
    %s1254 = sadd.s32 %s1253, 256
    %p1255 = scmp.lt.s32.totalorder %s1252, %s1254
    %s1256 = sadd.s32 %s1252, 256
    %p1257 = scmp.lt.s32.totalorder %s1253, %s1256
    %p1258 = pnand %p1255, %p1257
    %p1259 = pneg %p1258
    %p1260 = por %p1259, %p19
    // Predicated region
    $region22: #{tpu_custom_call.1} parent=1 // pred_check
      %p1261 = pneg %p1260
    $region23: #{tpu_custom_call.1} parent=1 // pred_check_branch
      %1263 = sbr.rel (%p1261) target = $region25
    $region24: #{tpu_custom_call.1} parent=1 // pred_region
      %v1264 = vlaneseq
      %v1265 = vshrl.u32 %v1264, 7
      %v1266 = vadd.s32 %v1265, 8
      %v1267 = vadd.s32 %v1265, 16
      %v1268 = vadd.s32 %v1265, 24
      %v1269 = vadd.s32 %v1265, 32
      %v1270 = vadd.s32 %v1265, 40
      %v1271 = vadd.s32 %v1265, 48
      %v1272 = vadd.s32 %v1265, 56
      %v1273 = vadd.s32 %v1265, 64
      %v1274 = vadd.s32 %v1265, 72
      %v1275 = vadd.s32 %v1265, 80
      %v1276 = vadd.s32 %v1265, 88
      %v1277 = vadd.s32 %v1265, 96
      %v1278 = vadd.s32 %v1265, 104
      %v1279 = vadd.s32 %v1265, 112
      %v1280 = vadd.s32 %v1265, 120
      %v1281 = vadd.s32 %v1265, 128
      %v1282 = vadd.s32 %v1265, 136
      %v1283 = vadd.s32 %v1265, 144
      %v1284 = vadd.s32 %v1265, 152
      %v1285 = vadd.s32 %v1265, 160
      %v1286 = vadd.s32 %v1265, 168
      %v1287 = vadd.s32 %v1265, 176
      %v1288 = vadd.s32 %v1265, 184
      %v1289 = vadd.s32 %v1265, 192
      %v1290 = vadd.s32 %v1265, 200
      %v1291 = vadd.s32 %v1265, 208
      %v1292 = vadd.s32 %v1265, 216
      %v1293 = vadd.s32 %v1265, 224
      %v1294 = vadd.s32 %v1265, 232
      %v1295 = vadd.s32 %v1265, 240
      %v1296 = vadd.s32 %v1265, 248
      %v1297 = vstv %s1252
      %v1298 = vadd.s32 %v1297, %v1265
      %v1299 = vadd.s32 %v1297, %v1266
      %v1300 = vadd.s32 %v1297, %v1267
      %v1301 = vadd.s32 %v1297, %v1268
      %v1302 = vadd.s32 %v1297, %v1269
      %v1303 = vadd.s32 %v1297, %v1270
      %v1304 = vadd.s32 %v1297, %v1271
      %v1305 = vadd.s32 %v1297, %v1272
      %v1306 = vadd.s32 %v1297, %v1273
      %v1307 = vadd.s32 %v1297, %v1274
      %v1308 = vadd.s32 %v1297, %v1275
      %v1309 = vadd.s32 %v1297, %v1276
      %v1310 = vadd.s32 %v1297, %v1277
      %v1311 = vadd.s32 %v1297, %v1278
      %v1312 = vadd.s32 %v1297, %v1279
      %v1313 = vadd.s32 %v1297, %v1280
      %v1314 = vadd.s32 %v1297, %v1281
      %v1315 = vadd.s32 %v1297, %v1282
      %v1316 = vadd.s32 %v1297, %v1283
      %v1317 = vadd.s32 %v1297, %v1284
      %v1318 = vadd.s32 %v1297, %v1285
      %v1319 = vadd.s32 %v1297, %v1286
      %v1320 = vadd.s32 %v1297, %v1287
      %v1321 = vadd.s32 %v1297, %v1288
      %v1322 = vadd.s32 %v1297, %v1289
      %v1323 = vadd.s32 %v1297, %v1290
      %v1324 = vadd.s32 %v1297, %v1291
      %v1325 = vadd.s32 %v1297, %v1292
      %v1326 = vadd.s32 %v1297, %v1293
      %v1327 = vadd.s32 %v1297, %v1294
      %v1328 = vadd.s32 %v1297, %v1295
      %v1329 = vadd.s32 %v1297, %v1296
      %v1330 = vlaneseq
      %v1331 = vand.u32 %v1330, 127
      %v1332 = vadd.s32 %v1331, 128
      %v1333 = vstv %s1253
      %v1334 = vadd.s32 %v1333, %v1331
      %v1335 = vadd.s32 %v1333, %v1332
      %vm1336 = vcmp.ne.s32.totalorder %v1298, %v1334
      %vm1337 = vcmp.ne.s32.totalorder %v1298, %v1335
      %vm1338 = vcmp.ne.s32.totalorder %v1299, %v1334
      %vm1339 = vcmp.ne.s32.totalorder %v1299, %v1335
      %vm1340 = vcmp.ne.s32.totalorder %v1300, %v1334
      %vm1341 = vcmp.ne.s32.totalorder %v1300, %v1335
      %vm1342 = vcmp.ne.s32.totalorder %v1301, %v1334
      %vm1343 = vcmp.ne.s32.totalorder %v1301, %v1335
      %vm1344 = vcmp.ne.s32.totalorder %v1302, %v1334
      %vm1345 = vcmp.ne.s32.totalorder %v1302, %v1335
      %vm1346 = vcmp.ne.s32.totalorder %v1303, %v1334
      %vm1347 = vcmp.ne.s32.totalorder %v1303, %v1335
      %vm1348 = vcmp.ne.s32.totalorder %v1304, %v1334
      %vm1349 = vcmp.ne.s32.totalorder %v1304, %v1335
      %vm1350 = vcmp.ne.s32.totalorder %v1305, %v1334
      %vm1351 = vcmp.ne.s32.totalorder %v1305, %v1335
      %vm1352 = vcmp.ne.s32.totalorder %v1306, %v1334
      %vm1353 = vcmp.ne.s32.totalorder %v1306, %v1335
      %vm1354 = vcmp.ne.s32.totalorder %v1307, %v1334
      %vm1355 = vcmp.ne.s32.totalorder %v1307, %v1335
      %vm1356 = vcmp.ne.s32.totalorder %v1308, %v1334
      %vm1357 = vcmp.ne.s32.totalorder %v1308, %v1335
      %vm1358 = vcmp.ne.s32.totalorder %v1309, %v1334
      %vm1359 = vcmp.ne.s32.totalorder %v1309, %v1335
      %vm1360 = vcmp.ne.s32.totalorder %v1310, %v1334
      %vm1361 = vcmp.ne.s32.totalorder %v1310, %v1335
      %vm1362 = vcmp.ne.s32.totalorder %v1311, %v1334
      %vm1363 = vcmp.ne.s32.totalorder %v1311, %v1335
      %vm1364 = vcmp.ne.s32.totalorder %v1312, %v1334
      %vm1365 = vcmp.ne.s32.totalorder %v1312, %v1335
      %vm1366 = vcmp.ne.s32.totalorder %v1313, %v1334
      %vm1367 = vcmp.ne.s32.totalorder %v1313, %v1335
      %vm1368 = vcmp.ne.s32.totalorder %v1314, %v1334
      %vm1369 = vcmp.ne.s32.totalorder %v1314, %v1335
      %vm1370 = vcmp.ne.s32.totalorder %v1315, %v1334
      %vm1371 = vcmp.ne.s32.totalorder %v1315, %v1335
      %vm1372 = vcmp.ne.s32.totalorder %v1316, %v1334
      %vm1373 = vcmp.ne.s32.totalorder %v1316, %v1335
      %vm1374 = vcmp.ne.s32.totalorder %v1317, %v1334
      %vm1375 = vcmp.ne.s32.totalorder %v1317, %v1335
      %vm1376 = vcmp.ne.s32.totalorder %v1318, %v1334
      %vm1377 = vcmp.ne.s32.totalorder %v1318, %v1335
      %vm1378 = vcmp.ne.s32.totalorder %v1319, %v1334
      %vm1379 = vcmp.ne.s32.totalorder %v1319, %v1335
      %vm1380 = vcmp.ne.s32.totalorder %v1320, %v1334
      %vm1381 = vcmp.ne.s32.totalorder %v1320, %v1335
      %vm1382 = vcmp.ne.s32.totalorder %v1321, %v1334
      %vm1383 = vcmp.ne.s32.totalorder %v1321, %v1335
      %vm1384 = vcmp.ne.s32.totalorder %v1322, %v1334
      %vm1385 = vcmp.ne.s32.totalorder %v1322, %v1335
      %vm1386 = vcmp.ne.s32.totalorder %v1323, %v1334
      %vm1387 = vcmp.ne.s32.totalorder %v1323, %v1335
      %vm1388 = vcmp.ne.s32.totalorder %v1324, %v1334
      %vm1389 = vcmp.ne.s32.totalorder %v1324, %v1335
      %vm1390 = vcmp.ne.s32.totalorder %v1325, %v1334
      %vm1391 = vcmp.ne.s32.totalorder %v1325, %v1335
      %vm1392 = vcmp.ne.s32.totalorder %v1326, %v1334
      %vm1393 = vcmp.ne.s32.totalorder %v1326, %v1335
      %vm1394 = vcmp.ne.s32.totalorder %v1327, %v1334
      %vm1395 = vcmp.ne.s32.totalorder %v1327, %v1335
      %vm1396 = vcmp.ne.s32.totalorder %v1328, %v1334
      %vm1397 = vcmp.ne.s32.totalorder %v1328, %v1335
      %vm1398 = vcmp.ne.s32.totalorder %v1329, %v1334
      %vm1399 = vcmp.ne.s32.totalorder %v1329, %v1335
      %vm1400 = vcmp.lt.s32.totalorder %v1334, 16
      %vm1401 = vcmp.lt.s32.totalorder %v1335, 16
      %v1402 = vsel %vm1400, 1, 0
      %v1403 = vsel %vm1401, 1, 0
      %vm1404 = vcmp.eq.s32.totalorder %v1402, 1
      %vm1405 = vcmp.eq.s32.totalorder %v1403, 1
      %vm1406 = vmand %vm1336, %vm1404
      %vm1407 = vmand %vm1337, %vm1405
      %vm1408 = vmand %vm1338, %vm1404
      %vm1409 = vmand %vm1339, %vm1405
      %vm1410 = vmand %vm1340, %vm1404
      %vm1411 = vmand %vm1341, %vm1405
      %vm1412 = vmand %vm1342, %vm1404
      %vm1413 = vmand %vm1343, %vm1405
      %vm1414 = vmand %vm1344, %vm1404
      %vm1415 = vmand %vm1345, %vm1405
      %vm1416 = vmand %vm1346, %vm1404
      %vm1417 = vmand %vm1347, %vm1405
      %vm1418 = vmand %vm1348, %vm1404
      %vm1419 = vmand %vm1349, %vm1405
      %vm1420 = vmand %vm1350, %vm1404
      %vm1421 = vmand %vm1351, %vm1405
      %vm1422 = vmand %vm1352, %vm1404
      %vm1423 = vmand %vm1353, %vm1405
      %vm1424 = vmand %vm1354, %vm1404
      %vm1425 = vmand %vm1355, %vm1405
      %vm1426 = vmand %vm1356, %vm1404
      %vm1427 = vmand %vm1357, %vm1405
      %vm1428 = vmand %vm1358, %vm1404
      %vm1429 = vmand %vm1359, %vm1405
      %vm1430 = vmand %vm1360, %vm1404
      %vm1431 = vmand %vm1361, %vm1405
      %vm1432 = vmand %vm1362, %vm1404
      %vm1433 = vmand %vm1363, %vm1405
      %vm1434 = vmand %vm1364, %vm1404
      %vm1435 = vmand %vm1365, %vm1405
      %vm1436 = vmand %vm1366, %vm1404
      %vm1437 = vmand %vm1367, %vm1405
      %vm1438 = vmand %vm1368, %vm1404
      %vm1439 = vmand %vm1369, %vm1405
      %vm1440 = vmand %vm1370, %vm1404
      %vm1441 = vmand %vm1371, %vm1405
      %vm1442 = vmand %vm1372, %vm1404
      %vm1443 = vmand %vm1373, %vm1405
      %vm1444 = vmand %vm1374, %vm1404
      %vm1445 = vmand %vm1375, %vm1405
      %vm1446 = vmand %vm1376, %vm1404
      %vm1447 = vmand %vm1377, %vm1405
      %vm1448 = vmand %vm1378, %vm1404
      %vm1449 = vmand %vm1379, %vm1405
      %vm1450 = vmand %vm1380, %vm1404
      %vm1451 = vmand %vm1381, %vm1405
      %vm1452 = vmand %vm1382, %vm1404
      %vm1453 = vmand %vm1383, %vm1405
      %vm1454 = vmand %vm1384, %vm1404
      %vm1455 = vmand %vm1385, %vm1405
      %vm1456 = vmand %vm1386, %vm1404
      %vm1457 = vmand %vm1387, %vm1405
      %vm1458 = vmand %vm1388, %vm1404
      %vm1459 = vmand %vm1389, %vm1405
      %vm1460 = vmand %vm1390, %vm1404
      %vm1461 = vmand %vm1391, %vm1405
      %vm1462 = vmand %vm1392, %vm1404
      %vm1463 = vmand %vm1393, %vm1405
      %vm1464 = vmand %vm1394, %vm1404
      %vm1465 = vmand %vm1395, %vm1405
      %vm1466 = vmand %vm1396, %vm1404
      %vm1467 = vmand %vm1397, %vm1405
      %vm1468 = vmand %vm1398, %vm1404
      %vm1469 = vmand %vm1399, %vm1405
      %v1470 = vld [vmem:[#allocation3] sm:$0xff]
      %v1471 = vld [vmem:[#allocation3 + $0x8] sm:$0xff]
      %v1472 = vld [vmem:[#allocation3 + $0x10] sm:$0xff]
      %v1473 = vld [vmem:[#allocation3 + $0x18] sm:$0xff]
      %v1474 = vld [vmem:[#allocation3 + $0x20] sm:$0xff]
      %v1475 = vld [vmem:[#allocation3 + $0x28] sm:$0xff]
      %v1476 = vld [vmem:[#allocation3 + $0x30] sm:$0xff]
      %v1477 = vld [vmem:[#allocation3 + $0x38] sm:$0xff]
      %v1478 = vld [vmem:[#allocation3 + $0x40] sm:$0xff]
      %v1479 = vld [vmem:[#allocation3 + $0x48] sm:$0xff]
      %v1480 = vld [vmem:[#allocation3 + $0x50] sm:$0xff]
      %v1481 = vld [vmem:[#allocation3 + $0x58] sm:$0xff]
      %v1482 = vld [vmem:[#allocation3 + $0x60] sm:$0xff]
      %v1483 = vld [vmem:[#allocation3 + $0x68] sm:$0xff]
      %v1484 = vld [vmem:[#allocation3 + $0x70] sm:$0xff]
      %v1485 = vld [vmem:[#allocation3 + $0x78] sm:$0xff]
      %v1486 = vld [vmem:[#allocation3 + $0x80] sm:$0xff]
      %v1487 = vld [vmem:[#allocation3 + $0x88] sm:$0xff]
      %v1488 = vld [vmem:[#allocation3 + $0x90] sm:$0xff]
      %v1489 = vld [vmem:[#allocation3 + $0x98] sm:$0xff]
      %v1490 = vld [vmem:[#allocation3 + $0xa0] sm:$0xff]
      %v1491 = vld [vmem:[#allocation3 + $0xa8] sm:$0xff]
      %v1492 = vld [vmem:[#allocation3 + $0xb0] sm:$0xff]
      %v1493 = vld [vmem:[#allocation3 + $0xb8] sm:$0xff]
      %v1494 = vld [vmem:[#allocation3 + $0xc0] sm:$0xff]
      %v1495 = vld [vmem:[#allocation3 + $0xc8] sm:$0xff]
      %v1496 = vld [vmem:[#allocation3 + $0xd0] sm:$0xff]
      %v1497 = vld [vmem:[#allocation3 + $0xd8] sm:$0xff]
      %v1498 = vld [vmem:[#allocation3 + $0xe0] sm:$0xff]
      %v1499 = vld [vmem:[#allocation3 + $0xe8] sm:$0xff]
      %v1500 = vld [vmem:[#allocation3 + $0xf0] sm:$0xff]
      %v1501 = vld [vmem:[#allocation3 + $0xf8] sm:$0xff]
      %v1502 = vsel %vm1404, %v765, -1e+30
      %v1503 = vsel %vm1405, %v767, -1e+30
      %v1504 = vsel %vm1404, %v769, -1e+30
      %v1505 = vsel %vm1405, %v771, -1e+30
      %v1506 = vsel %vm1404, %v775, -1e+30
      %v1507 = vsel %vm1405, %v777, -1e+30
      %v1508 = vsel %vm1404, %v779, -1e+30
      %v1509 = vsel %vm1405, %v781, -1e+30
      %v1510 = vsel %vm1404, %v785, -1e+30
      %v1511 = vsel %vm1405, %v787, -1e+30
      %v1512 = vsel %vm1404, %v789, -1e+30
      %v1513 = vsel %vm1405, %v791, -1e+30
      %v1514 = vsel %vm1404, %v795, -1e+30
      %v1515 = vsel %vm1405, %v797, -1e+30
      %v1516 = vsel %vm1404, %v799, -1e+30
      %v1517 = vsel %vm1405, %v801, -1e+30
      %v1518 = vsel %vm1404, %v805, -1e+30
      %v1519 = vsel %vm1405, %v807, -1e+30
      %v1520 = vsel %vm1404, %v809, -1e+30
      %v1521 = vsel %vm1405, %v811, -1e+30
      %v1522 = vsel %vm1404, %v815, -1e+30
      %v1523 = vsel %vm1405, %v817, -1e+30
      %v1524 = vsel %vm1404, %v819, -1e+30
      %v1525 = vsel %vm1405, %v821, -1e+30
      %v1526 = vsel %vm1404, %v825, -1e+30
      %v1527 = vsel %vm1405, %v827, -1e+30
      %v1528 = vsel %vm1404, %v829, -1e+30
      %v1529 = vsel %vm1405, %v831, -1e+30
      %v1530 = vsel %vm1404, %v835, -1e+30
      %v1531 = vsel %vm1405, %v837, -1e+30
      %v1532 = vsel %vm1404, %v839, -1e+30
      %v1533 = vsel %vm1405, %v841, -1e+30
      %v1534 = vsel %vm1404, %v845, -1e+30
      %v1535 = vsel %vm1405, %v847, -1e+30
      %v1536 = vsel %vm1404, %v849, -1e+30
      %v1537 = vsel %vm1405, %v851, -1e+30
      %v1538 = vsel %vm1404, %v855, -1e+30
      %v1539 = vsel %vm1405, %v857, -1e+30
      %v1540 = vsel %vm1404, %v859, -1e+30
      %v1541 = vsel %vm1405, %v861, -1e+30
      %v1542 = vsel %vm1404, %v865, -1e+30
      %v1543 = vsel %vm1405, %v867, -1e+30
      %v1544 = vsel %vm1404, %v869, -1e+30
      %v1545 = vsel %vm1405, %v871, -1e+30
      %v1546 = vsel %vm1404, %v875, -1e+30
      %v1547 = vsel %vm1405, %v877, -1e+30
      %v1548 = vsel %vm1404, %v879, -1e+30
      %v1549 = vsel %vm1405, %v881, -1e+30
      %v1550 = vsel %vm1404, %v885, -1e+30
      %v1551 = vsel %vm1405, %v887, -1e+30
      %v1552 = vsel %vm1404, %v889, -1e+30
      %v1553 = vsel %vm1405, %v891, -1e+30
      %v1554 = vsel %vm1404, %v895, -1e+30
      %v1555 = vsel %vm1405, %v897, -1e+30
      %v1556 = vsel %vm1404, %v899, -1e+30
      %v1557 = vsel %vm1405, %v901, -1e+30
      %v1558 = vsel %vm1404, %v905, -1e+30
      %v1559 = vsel %vm1405, %v907, -1e+30
      %v1560 = vsel %vm1404, %v909, -1e+30
      %v1561 = vsel %vm1405, %v911, -1e+30
      %v1562 = vsel %vm1404, %v915, -1e+30
      %v1563 = vsel %vm1405, %v917, -1e+30
      %v1564 = vsel %vm1404, %v919, -1e+30
      %v1565 = vsel %vm1405, %v921, -1e+30
      %v1566 = vmax.f32 %v1502, %v1503
      %1567 = vmax.xlane.f32.xlu0 %v1566
      %v1568 = vpop.xlane.xlu0 %1567
      %v1569 = vmax.f32 %v1504, %v1505
      %1570 = vmax.xlane.f32.xlu0 %v1569
      %v1571 = vpop.xlane.xlu0 %1570
      %v1572 = vmax.f32 %v1506, %v1507
      %1573 = vmax.xlane.f32.xlu0 %v1572
      %v1574 = vpop.xlane.xlu0 %1573
      %v1575 = vmax.f32 %v1508, %v1509
      %1576 = vmax.xlane.f32.xlu0 %v1575
      %v1577 = vpop.xlane.xlu0 %1576
      %v1578 = vmax.f32 %v1510, %v1511
      %1579 = vmax.xlane.f32.xlu0 %v1578
      %v1580 = vpop.xlane.xlu0 %1579
      %v1581 = vmax.f32 %v1512, %v1513
      %1582 = vmax.xlane.f32.xlu0 %v1581
      %v1583 = vpop.xlane.xlu0 %1582
      %v1584 = vmax.f32 %v1514, %v1515
      %1585 = vmax.xlane.f32.xlu0 %v1584
      %v1586 = vpop.xlane.xlu0 %1585
      %v1587 = vmax.f32 %v1516, %v1517
      %1588 = vmax.xlane.f32.xlu0 %v1587
      %v1589 = vpop.xlane.xlu0 %1588
      %v1590 = vmax.f32 %v1518, %v1519
      %1591 = vmax.xlane.f32.xlu0 %v1590
      %v1592 = vpop.xlane.xlu0 %1591
      %v1593 = vmax.f32 %v1520, %v1521
      %1594 = vmax.xlane.f32.xlu0 %v1593
      %v1595 = vpop.xlane.xlu0 %1594
      %v1596 = vmax.f32 %v1522, %v1523
      %1597 = vmax.xlane.f32.xlu0 %v1596
      %v1598 = vpop.xlane.xlu0 %1597
      %v1599 = vmax.f32 %v1524, %v1525
      %1600 = vmax.xlane.f32.xlu0 %v1599
      %v1601 = vpop.xlane.xlu0 %1600
      %v1602 = vmax.f32 %v1526, %v1527
      %1603 = vmax.xlane.f32.xlu0 %v1602
      %v1604 = vpop.xlane.xlu0 %1603
      %v1605 = vmax.f32 %v1528, %v1529
      %1606 = vmax.xlane.f32.xlu0 %v1605
      %v1607 = vpop.xlane.xlu0 %1606
      %v1608 = vmax.f32 %v1530, %v1531
      %1609 = vmax.xlane.f32.xlu0 %v1608
      %v1610 = vpop.xlane.xlu0 %1609
      %v1611 = vmax.f32 %v1532, %v1533
      %1612 = vmax.xlane.f32.xlu0 %v1611
      %v1613 = vpop.xlane.xlu0 %1612
      %v1614 = vmax.f32 %v1534, %v1535
      %1615 = vmax.xlane.f32.xlu0 %v1614
      %v1616 = vpop.xlane.xlu0 %1615
      %v1617 = vmax.f32 %v1536, %v1537
      %1618 = vmax.xlane.f32.xlu0 %v1617
      %v1619 = vpop.xlane.xlu0 %1618
      %v1620 = vmax.f32 %v1538, %v1539
      %1621 = vmax.xlane.f32.xlu0 %v1620
      %v1622 = vpop.xlane.xlu0 %1621
      %v1623 = vmax.f32 %v1540, %v1541
      %1624 = vmax.xlane.f32.xlu0 %v1623
      %v1625 = vpop.xlane.xlu0 %1624
      %v1626 = vmax.f32 %v1542, %v1543
      %1627 = vmax.xlane.f32.xlu0 %v1626
      %v1628 = vpop.xlane.xlu0 %1627
      %v1629 = vmax.f32 %v1544, %v1545
      %1630 = vmax.xlane.f32.xlu0 %v1629
      %v1631 = vpop.xlane.xlu0 %1630
      %v1632 = vmax.f32 %v1546, %v1547
      %1633 = vmax.xlane.f32.xlu0 %v1632
      %v1634 = vpop.xlane.xlu0 %1633
      %v1635 = vmax.f32 %v1548, %v1549
      %1636 = vmax.xlane.f32.xlu0 %v1635
      %v1637 = vpop.xlane.xlu0 %1636
      %v1638 = vmax.f32 %v1550, %v1551
      %1639 = vmax.xlane.f32.xlu0 %v1638
      %v1640 = vpop.xlane.xlu0 %1639
      %v1641 = vmax.f32 %v1552, %v1553
      %1642 = vmax.xlane.f32.xlu0 %v1641
      %v1643 = vpop.xlane.xlu0 %1642
      %v1644 = vmax.f32 %v1554, %v1555
      %1645 = vmax.xlane.f32.xlu0 %v1644
      %v1646 = vpop.xlane.xlu0 %1645
      %v1647 = vmax.f32 %v1556, %v1557
      %1648 = vmax.xlane.f32.xlu0 %v1647
      %v1649 = vpop.xlane.xlu0 %1648
      %v1650 = vmax.f32 %v1558, %v1559
      %1651 = vmax.xlane.f32.xlu0 %v1650
      %v1652 = vpop.xlane.xlu0 %1651
      %v1653 = vmax.f32 %v1560, %v1561
      %1654 = vmax.xlane.f32.xlu0 %v1653
      %v1655 = vpop.xlane.xlu0 %1654
      %v1656 = vmax.f32 %v1562, %v1563
      %1657 = vmax.xlane.f32.xlu0 %v1656
      %v1658 = vpop.xlane.xlu0 %1657
      %v1659 = vmax.f32 %v1564, %v1565
      %1660 = vmax.xlane.f32.xlu0 %v1659
      %v1661 = vpop.xlane.xlu0 %1660
      %v1662 = vmax.f32 %v1470, %v1568
      %v1663 = vmax.f32 %v1471, %v1571
      %v1664 = vmax.f32 %v1472, %v1574
      %v1665 = vmax.f32 %v1473, %v1577
      %v1666 = vmax.f32 %v1474, %v1580
      %v1667 = vmax.f32 %v1475, %v1583
      %v1668 = vmax.f32 %v1476, %v1586
      %v1669 = vmax.f32 %v1477, %v1589
      %v1670 = vmax.f32 %v1478, %v1592
      %v1671 = vmax.f32 %v1479, %v1595
      %v1672 = vmax.f32 %v1480, %v1598
      %v1673 = vmax.f32 %v1481, %v1601
      %v1674 = vmax.f32 %v1482, %v1604
      %v1675 = vmax.f32 %v1483, %v1607
      %v1676 = vmax.f32 %v1484, %v1610
      %v1677 = vmax.f32 %v1485, %v1613
      %v1678 = vmax.f32 %v1486, %v1616
      %v1679 = vmax.f32 %v1487, %v1619
      %v1680 = vmax.f32 %v1488, %v1622
      %v1681 = vmax.f32 %v1489, %v1625
      %v1682 = vmax.f32 %v1490, %v1628
      %v1683 = vmax.f32 %v1491, %v1631
      %v1684 = vmax.f32 %v1492, %v1634
      %v1685 = vmax.f32 %v1493, %v1637
      %v1686 = vmax.f32 %v1494, %v1640
      %v1687 = vmax.f32 %v1495, %v1643
      %v1688 = vmax.f32 %v1496, %v1646
      %v1689 = vmax.f32 %v1497, %v1649
      %v1690 = vmax.f32 %v1498, %v1652
      %v1691 = vmax.f32 %v1499, %v1655
      %v1692 = vmax.f32 %v1500, %v1658
      %v1693 = vmax.f32 %v1501, %v1661
      %v1694 = vsub.f32 %v1470, %v1662
      %v1695 = vsub.f32 %v1471, %v1663
      %v1696 = vsub.f32 %v1472, %v1664
      %v1697 = vsub.f32 %v1473, %v1665
      %v1698 = vsub.f32 %v1474, %v1666
      %v1699 = vsub.f32 %v1475, %v1667
      %v1700 = vsub.f32 %v1476, %v1668
      %v1701 = vsub.f32 %v1477, %v1669
      %v1702 = vsub.f32 %v1478, %v1670
      %v1703 = vsub.f32 %v1479, %v1671
      %v1704 = vsub.f32 %v1480, %v1672
      %v1705 = vsub.f32 %v1481, %v1673
      %v1706 = vsub.f32 %v1482, %v1674
      %v1707 = vsub.f32 %v1483, %v1675
      %v1708 = vsub.f32 %v1484, %v1676
      %v1709 = vsub.f32 %v1485, %v1677
      %v1710 = vsub.f32 %v1486, %v1678
      %v1711 = vsub.f32 %v1487, %v1679
      %v1712 = vsub.f32 %v1488, %v1680
      %v1713 = vsub.f32 %v1489, %v1681
      %v1714 = vsub.f32 %v1490, %v1682
      %v1715 = vsub.f32 %v1491, %v1683
      %v1716 = vsub.f32 %v1492, %v1684
      %v1717 = vsub.f32 %v1493, %v1685
      %v1718 = vsub.f32 %v1494, %v1686
      %v1719 = vsub.f32 %v1495, %v1687
      %v1720 = vsub.f32 %v1496, %v1688
      %v1721 = vsub.f32 %v1497, %v1689
      %v1722 = vsub.f32 %v1498, %v1690
      %v1723 = vsub.f32 %v1499, %v1691
      %v1724 = vsub.f32 %v1500, %v1692
      %v1725 = vsub.f32 %v1501, %v1693
      %v1726 = vmul.f32 %v1694, 1.442695
      %v1727 = vpow.pop %v1726
      %v1728 = vmul.f32 %v1695, 1.442695
      %v1729 = vpow.pop %v1728
      %v1730 = vmul.f32 %v1696, 1.442695
      %v1731 = vpow.pop %v1730
      %v1732 = vmul.f32 %v1697, 1.442695
      %v1733 = vpow.pop %v1732
      %v1734 = vmul.f32 %v1698, 1.442695
      %v1735 = vpow.pop %v1734
      %v1736 = vmul.f32 %v1699, 1.442695
      %v1737 = vpow.pop %v1736
      %v1738 = vmul.f32 %v1700, 1.442695
      %v1739 = vpow.pop %v1738
      %v1740 = vmul.f32 %v1701, 1.442695
      %v1741 = vpow.pop %v1740
      %v1742 = vmul.f32 %v1702, 1.442695
      %v1743 = vpow.pop %v1742
      %v1744 = vmul.f32 %v1703, 1.442695
      %v1745 = vpow.pop %v1744
      %v1746 = vmul.f32 %v1704, 1.442695
      %v1747 = vpow.pop %v1746
      %v1748 = vmul.f32 %v1705, 1.442695
      %v1749 = vpow.pop %v1748
      %v1750 = vmul.f32 %v1706, 1.442695
      %v1751 = vpow.pop %v1750
      %v1752 = vmul.f32 %v1707, 1.442695
      %v1753 = vpow.pop %v1752
      %v1754 = vmul.f32 %v1708, 1.442695
      %v1755 = vpow.pop %v1754
      %v1756 = vmul.f32 %v1709, 1.442695
      %v1757 = vpow.pop %v1756
      %v1758 = vmul.f32 %v1710, 1.442695
      %v1759 = vpow.pop %v1758
      %v1760 = vmul.f32 %v1711, 1.442695
      %v1761 = vpow.pop %v1760
      %v1762 = vmul.f32 %v1712, 1.442695
      %v1763 = vpow.pop %v1762
      %v1764 = vmul.f32 %v1713, 1.442695
      %v1765 = vpow.pop %v1764
      %v1766 = vmul.f32 %v1714, 1.442695
      %v1767 = vpow.pop %v1766
      %v1768 = vmul.f32 %v1715, 1.442695
      %v1769 = vpow.pop %v1768
      %v1770 = vmul.f32 %v1716, 1.442695
      %v1771 = vpow.pop %v1770
      %v1772 = vmul.f32 %v1717, 1.442695
      %v1773 = vpow.pop %v1772
      %v1774 = vmul.f32 %v1718, 1.442695
      %v1775 = vpow.pop %v1774
      %v1776 = vmul.f32 %v1719, 1.442695
      %v1777 = vpow.pop %v1776
      %v1778 = vmul.f32 %v1720, 1.442695
      %v1779 = vpow.pop %v1778
      %v1780 = vmul.f32 %v1721, 1.442695
      %v1781 = vpow.pop %v1780
      %v1782 = vmul.f32 %v1722, 1.442695
      %v1783 = vpow.pop %v1782
      %v1784 = vmul.f32 %v1723, 1.442695
      %v1785 = vpow.pop %v1784
      %v1786 = vmul.f32 %v1724, 1.442695
      %v1787 = vpow.pop %v1786
      %v1788 = vmul.f32 %v1725, 1.442695
      %v1789 = vpow.pop %v1788
      %1791 = vset.pattern.permute.xlu0 0
      %1792 = vperm.xlu0 %1791, %v1662
      %v1793 = vpop.permute.xlu0 %1792
      %1796 = vset.pattern.permute.xlu0 0
      %1797 = vperm.xlu0 %1796, %v1663
      %v1798 = vpop.permute.xlu0 %1797
      %1801 = vset.pattern.permute.xlu0 0
      %1802 = vperm.xlu0 %1801, %v1664
      %v1803 = vpop.permute.xlu0 %1802
      %1806 = vset.pattern.permute.xlu0 0
      %1807 = vperm.xlu0 %1806, %v1665
      %v1808 = vpop.permute.xlu0 %1807
      %1811 = vset.pattern.permute.xlu0 0
      %1812 = vperm.xlu0 %1811, %v1666
      %v1813 = vpop.permute.xlu0 %1812
      %1816 = vset.pattern.permute.xlu0 0
      %1817 = vperm.xlu0 %1816, %v1667
      %v1818 = vpop.permute.xlu0 %1817
      %1821 = vset.pattern.permute.xlu0 0
      %1822 = vperm.xlu0 %1821, %v1668
      %v1823 = vpop.permute.xlu0 %1822
      %1826 = vset.pattern.permute.xlu0 0
      %1827 = vperm.xlu0 %1826, %v1669
      %v1828 = vpop.permute.xlu0 %1827
      %1831 = vset.pattern.permute.xlu0 0
      %1832 = vperm.xlu0 %1831, %v1670
      %v1833 = vpop.permute.xlu0 %1832
      %1836 = vset.pattern.permute.xlu0 0
      %1837 = vperm.xlu0 %1836, %v1671
      %v1838 = vpop.permute.xlu0 %1837
      %1841 = vset.pattern.permute.xlu0 0
      %1842 = vperm.xlu0 %1841, %v1672
      %v1843 = vpop.permute.xlu0 %1842
      %1846 = vset.pattern.permute.xlu0 0
      %1847 = vperm.xlu0 %1846, %v1673
      %v1848 = vpop.permute.xlu0 %1847
      %1851 = vset.pattern.permute.xlu0 0
      %1852 = vperm.xlu0 %1851, %v1674
      %v1853 = vpop.permute.xlu0 %1852
      %1856 = vset.pattern.permute.xlu0 0
      %1857 = vperm.xlu0 %1856, %v1675
      %v1858 = vpop.permute.xlu0 %1857
      %1861 = vset.pattern.permute.xlu0 0
      %1862 = vperm.xlu0 %1861, %v1676
      %v1863 = vpop.permute.xlu0 %1862
      %1866 = vset.pattern.permute.xlu0 0
      %1867 = vperm.xlu0 %1866, %v1677
      %v1868 = vpop.permute.xlu0 %1867
      %1871 = vset.pattern.permute.xlu0 0
      %1872 = vperm.xlu0 %1871, %v1678
      %v1873 = vpop.permute.xlu0 %1872
      %1876 = vset.pattern.permute.xlu0 0
      %1877 = vperm.xlu0 %1876, %v1679
      %v1878 = vpop.permute.xlu0 %1877
      %1881 = vset.pattern.permute.xlu0 0
      %1882 = vperm.xlu0 %1881, %v1680
      %v1883 = vpop.permute.xlu0 %1882
      %1886 = vset.pattern.permute.xlu0 0
      %1887 = vperm.xlu0 %1886, %v1681
      %v1888 = vpop.permute.xlu0 %1887
      %1891 = vset.pattern.permute.xlu0 0
      %1892 = vperm.xlu0 %1891, %v1682
      %v1893 = vpop.permute.xlu0 %1892
      %1896 = vset.pattern.permute.xlu0 0
      %1897 = vperm.xlu0 %1896, %v1683
      %v1898 = vpop.permute.xlu0 %1897
      %1901 = vset.pattern.permute.xlu0 0
      %1902 = vperm.xlu0 %1901, %v1684
      %v1903 = vpop.permute.xlu0 %1902
      %1906 = vset.pattern.permute.xlu0 0
      %1907 = vperm.xlu0 %1906, %v1685
      %v1908 = vpop.permute.xlu0 %1907
      %1911 = vset.pattern.permute.xlu0 0
      %1912 = vperm.xlu0 %1911, %v1686
      %v1913 = vpop.permute.xlu0 %1912
      %1916 = vset.pattern.permute.xlu0 0
      %1917 = vperm.xlu0 %1916, %v1687
      %v1918 = vpop.permute.xlu0 %1917
      %1921 = vset.pattern.permute.xlu0 0
      %1922 = vperm.xlu0 %1921, %v1688
      %v1923 = vpop.permute.xlu0 %1922
      %1926 = vset.pattern.permute.xlu0 0
      %1927 = vperm.xlu0 %1926, %v1689
      %v1928 = vpop.permute.xlu0 %1927
      %1931 = vset.pattern.permute.xlu0 0
      %1932 = vperm.xlu0 %1931, %v1690
      %v1933 = vpop.permute.xlu0 %1932
      %1936 = vset.pattern.permute.xlu0 0
      %1937 = vperm.xlu0 %1936, %v1691
      %v1938 = vpop.permute.xlu0 %1937
      %1941 = vset.pattern.permute.xlu0 0
      %1942 = vperm.xlu0 %1941, %v1692
      %v1943 = vpop.permute.xlu0 %1942
      %1946 = vset.pattern.permute.xlu0 0
      %1947 = vperm.xlu0 %1946, %v1693
      %v1948 = vpop.permute.xlu0 %1947
      %v1950 = vsub.f32 %v765, %v1793
      %v1951 = vsub.f32 %v767, %v1793
      %v1952 = vsub.f32 %v769, %v1798
      %v1953 = vsub.f32 %v771, %v1798
      %v1954 = vsub.f32 %v775, %v1803
      %v1955 = vsub.f32 %v777, %v1803
      %v1956 = vsub.f32 %v779, %v1808
      %v1957 = vsub.f32 %v781, %v1808
      %v1958 = vsub.f32 %v785, %v1813
      %v1959 = vsub.f32 %v787, %v1813
      %v1960 = vsub.f32 %v789, %v1818
      %v1961 = vsub.f32 %v791, %v1818
      %v1962 = vsub.f32 %v795, %v1823
      %v1963 = vsub.f32 %v797, %v1823
      %v1964 = vsub.f32 %v799, %v1828
      %v1965 = vsub.f32 %v801, %v1828
      %v1966 = vsub.f32 %v805, %v1833
      %v1967 = vsub.f32 %v807, %v1833
      %v1968 = vsub.f32 %v809, %v1838
      %v1969 = vsub.f32 %v811, %v1838
      %v1970 = vsub.f32 %v815, %v1843
      %v1971 = vsub.f32 %v817, %v1843
      %v1972 = vsub.f32 %v819, %v1848
      %v1973 = vsub.f32 %v821, %v1848
      %v1974 = vsub.f32 %v825, %v1853
      %v1975 = vsub.f32 %v827, %v1853
      %v1976 = vsub.f32 %v829, %v1858
      %v1977 = vsub.f32 %v831, %v1858
      %v1978 = vsub.f32 %v835, %v1863
      %v1979 = vsub.f32 %v837, %v1863
      %v1980 = vsub.f32 %v839, %v1868
      %v1981 = vsub.f32 %v841, %v1868
      %v1982 = vsub.f32 %v845, %v1873
      %v1983 = vsub.f32 %v847, %v1873
      %v1984 = vsub.f32 %v849, %v1878
      %v1985 = vsub.f32 %v851, %v1878
      %v1986 = vsub.f32 %v855, %v1883
      %v1987 = vsub.f32 %v857, %v1883
      %v1988 = vsub.f32 %v859, %v1888
      %v1989 = vsub.f32 %v861, %v1888
      %v1990 = vsub.f32 %v865, %v1893
      %v1991 = vsub.f32 %v867, %v1893
      %v1992 = vsub.f32 %v869, %v1898
      %v1993 = vsub.f32 %v871, %v1898
      %v1994 = vsub.f32 %v875, %v1903
      %v1995 = vsub.f32 %v877, %v1903
      %v1996 = vsub.f32 %v879, %v1908
      %v1997 = vsub.f32 %v881, %v1908
      %v1998 = vsub.f32 %v885, %v1913
      %v1999 = vsub.f32 %v887, %v1913
      %v2000 = vsub.f32 %v889, %v1918
      %v2001 = vsub.f32 %v891, %v1918
      %v2002 = vsub.f32 %v895, %v1923
      %v2003 = vsub.f32 %v897, %v1923
      %v2004 = vsub.f32 %v899, %v1928
      %v2005 = vsub.f32 %v901, %v1928
      %v2006 = vsub.f32 %v905, %v1933
      %v2007 = vsub.f32 %v907, %v1933
      %v2008 = vsub.f32 %v909, %v1938
      %v2009 = vsub.f32 %v911, %v1938
      %v2010 = vsub.f32 %v915, %v1943
      %v2011 = vsub.f32 %v917, %v1943
      %v2012 = vsub.f32 %v919, %v1948
      %v2013 = vsub.f32 %v921, %v1948
      %v2014 = vmul.f32 %v1950, 1.442695
      %v2015 = vpow.pop %v2014
      %v2016 = vmul.f32 %v1951, 1.442695
      %v2017 = vpow.pop %v2016
      %v2018 = vmul.f32 %v1952, 1.442695
      %v2019 = vpow.pop %v2018
      %v2020 = vmul.f32 %v1953, 1.442695
      %v2021 = vpow.pop %v2020
      %v2022 = vmul.f32 %v1954, 1.442695
      %v2023 = vpow.pop %v2022
      %v2024 = vmul.f32 %v1955, 1.442695
      %v2025 = vpow.pop %v2024
      %v2026 = vmul.f32 %v1956, 1.442695
      %v2027 = vpow.pop %v2026
      %v2028 = vmul.f32 %v1957, 1.442695
      %v2029 = vpow.pop %v2028
      %v2030 = vmul.f32 %v1958, 1.442695
      %v2031 = vpow.pop %v2030
      %v2032 = vmul.f32 %v1959, 1.442695
      %v2033 = vpow.pop %v2032
      %v2034 = vmul.f32 %v1960, 1.442695
      %v2035 = vpow.pop %v2034
      %v2036 = vmul.f32 %v1961, 1.442695
      %v2037 = vpow.pop %v2036
      %v2038 = vmul.f32 %v1962, 1.442695
      %v2039 = vpow.pop %v2038
      %v2040 = vmul.f32 %v1963, 1.442695
      %v2041 = vpow.pop %v2040
      %v2042 = vmul.f32 %v1964, 1.442695
      %v2043 = vpow.pop %v2042
      %v2044 = vmul.f32 %v1965, 1.442695
      %v2045 = vpow.pop %v2044
      %v2046 = vmul.f32 %v1966, 1.442695
      %v2047 = vpow.pop %v2046
      %v2048 = vmul.f32 %v1967, 1.442695
      %v2049 = vpow.pop %v2048
      %v2050 = vmul.f32 %v1968, 1.442695
      %v2051 = vpow.pop %v2050
      %v2052 = vmul.f32 %v1969, 1.442695
      %v2053 = vpow.pop %v2052
      %v2054 = vmul.f32 %v1970, 1.442695
      %v2055 = vpow.pop %v2054
      %v2056 = vmul.f32 %v1971, 1.442695
      %v2057 = vpow.pop %v2056
      %v2058 = vmul.f32 %v1972, 1.442695
      %v2059 = vpow.pop %v2058
      %v2060 = vmul.f32 %v1973, 1.442695
      %v2061 = vpow.pop %v2060
      %v2062 = vmul.f32 %v1974, 1.442695
      %v2063 = vpow.pop %v2062
      %v2064 = vmul.f32 %v1975, 1.442695
      %v2065 = vpow.pop %v2064
      %v2066 = vmul.f32 %v1976, 1.442695
      %v2067 = vpow.pop %v2066
      %v2068 = vmul.f32 %v1977, 1.442695
      %v2069 = vpow.pop %v2068
      %v2070 = vmul.f32 %v1978, 1.442695
      %v2071 = vpow.pop %v2070
      %v2072 = vmul.f32 %v1979, 1.442695
      %v2073 = vpow.pop %v2072
      %v2074 = vmul.f32 %v1980, 1.442695
      %v2075 = vpow.pop %v2074
      %v2076 = vmul.f32 %v1981, 1.442695
      %v2077 = vpow.pop %v2076
      %v2078 = vmul.f32 %v1982, 1.442695
      %v2079 = vpow.pop %v2078
      %v2080 = vmul.f32 %v1983, 1.442695
      %v2081 = vpow.pop %v2080
      %v2082 = vmul.f32 %v1984, 1.442695
      %v2083 = vpow.pop %v2082
      %v2084 = vmul.f32 %v1985, 1.442695
      %v2085 = vpow.pop %v2084
      %v2086 = vmul.f32 %v1986, 1.442695
      %v2087 = vpow.pop %v2086
      %v2088 = vmul.f32 %v1987, 1.442695
      %v2089 = vpow.pop %v2088
      %v2090 = vmul.f32 %v1988, 1.442695
      %v2091 = vpow.pop %v2090
      %v2092 = vmul.f32 %v1989, 1.442695
      %v2093 = vpow.pop %v2092
      %v2094 = vmul.f32 %v1990, 1.442695
      %v2095 = vpow.pop %v2094
      %v2096 = vmul.f32 %v1991, 1.442695
      %v2097 = vpow.pop %v2096
      %v2098 = vmul.f32 %v1992, 1.442695
      %v2099 = vpow.pop %v2098
      %v2100 = vmul.f32 %v1993, 1.442695
      %v2101 = vpow.pop %v2100
      %v2102 = vmul.f32 %v1994, 1.442695
      %v2103 = vpow.pop %v2102
      %v2104 = vmul.f32 %v1995, 1.442695
      %v2105 = vpow.pop %v2104
      %v2106 = vmul.f32 %v1996, 1.442695
      %v2107 = vpow.pop %v2106
      %v2108 = vmul.f32 %v1997, 1.442695
      %v2109 = vpow.pop %v2108
      %v2110 = vmul.f32 %v1998, 1.442695
      %v2111 = vpow.pop %v2110
      %v2112 = vmul.f32 %v1999, 1.442695
      %v2113 = vpow.pop %v2112
      %v2114 = vmul.f32 %v2000, 1.442695
      %v2115 = vpow.pop %v2114
      %v2116 = vmul.f32 %v2001, 1.442695
      %v2117 = vpow.pop %v2116
      %v2118 = vmul.f32 %v2002, 1.442695
      %v2119 = vpow.pop %v2118
      %v2120 = vmul.f32 %v2003, 1.442695
      %v2121 = vpow.pop %v2120
      %v2122 = vmul.f32 %v2004, 1.442695
      %v2123 = vpow.pop %v2122
      %v2124 = vmul.f32 %v2005, 1.442695
      %v2125 = vpow.pop %v2124
      %v2126 = vmul.f32 %v2006, 1.442695
      %v2127 = vpow.pop %v2126
      %v2128 = vmul.f32 %v2007, 1.442695
      %v2129 = vpow.pop %v2128
      %v2130 = vmul.f32 %v2008, 1.442695
      %v2131 = vpow.pop %v2130
      %v2132 = vmul.f32 %v2009, 1.442695
      %v2133 = vpow.pop %v2132
      %v2134 = vmul.f32 %v2010, 1.442695
      %v2135 = vpow.pop %v2134
      %v2136 = vmul.f32 %v2011, 1.442695
      %v2137 = vpow.pop %v2136
      %v2138 = vmul.f32 %v2012, 1.442695
      %v2139 = vpow.pop %v2138
      %v2140 = vmul.f32 %v2013, 1.442695
      %v2141 = vpow.pop %v2140
      %v2142 = vsel %vm1406, %v2015, 0.0
      %v2143 = vsel %vm1407, %v2017, 0.0
      %v2144 = vsel %vm1408, %v2019, 0.0
      %v2145 = vsel %vm1409, %v2021, 0.0
      %v2146 = vsel %vm1410, %v2023, 0.0
      %v2147 = vsel %vm1411, %v2025, 0.0
      %v2148 = vsel %vm1412, %v2027, 0.0
      %v2149 = vsel %vm1413, %v2029, 0.0
      %v2150 = vsel %vm1414, %v2031, 0.0
      %v2151 = vsel %vm1415, %v2033, 0.0
      %v2152 = vsel %vm1416, %v2035, 0.0
      %v2153 = vsel %vm1417, %v2037, 0.0
      %v2154 = vsel %vm1418, %v2039, 0.0
      %v2155 = vsel %vm1419, %v2041, 0.0
      %v2156 = vsel %vm1420, %v2043, 0.0
      %v2157 = vsel %vm1421, %v2045, 0.0
      %v2158 = vsel %vm1422, %v2047, 0.0
      %v2159 = vsel %vm1423, %v2049, 0.0
      %v2160 = vsel %vm1424, %v2051, 0.0
      %v2161 = vsel %vm1425, %v2053, 0.0
      %v2162 = vsel %vm1426, %v2055, 0.0
      %v2163 = vsel %vm1427, %v2057, 0.0
      %v2164 = vsel %vm1428, %v2059, 0.0
      %v2165 = vsel %vm1429, %v2061, 0.0
      %v2166 = vsel %vm1430, %v2063, 0.0
      %v2167 = vsel %vm1431, %v2065, 0.0
      %v2168 = vsel %vm1432, %v2067, 0.0
      %v2169 = vsel %vm1433, %v2069, 0.0
      %v2170 = vsel %vm1434, %v2071, 0.0
      %v2171 = vsel %vm1435, %v2073, 0.0
      %v2172 = vsel %vm1436, %v2075, 0.0
      %v2173 = vsel %vm1437, %v2077, 0.0
      %v2174 = vsel %vm1438, %v2079, 0.0
      %v2175 = vsel %vm1439, %v2081, 0.0
      %v2176 = vsel %vm1440, %v2083, 0.0
      %v2177 = vsel %vm1441, %v2085, 0.0
      %v2178 = vsel %vm1442, %v2087, 0.0
      %v2179 = vsel %vm1443, %v2089, 0.0
      %v2180 = vsel %vm1444, %v2091, 0.0
      %v2181 = vsel %vm1445, %v2093, 0.0
      %v2182 = vsel %vm1446, %v2095, 0.0
      %v2183 = vsel %vm1447, %v2097, 0.0
      %v2184 = vsel %vm1448, %v2099, 0.0
      %v2185 = vsel %vm1449, %v2101, 0.0
      %v2186 = vsel %vm1450, %v2103, 0.0
      %v2187 = vsel %vm1451, %v2105, 0.0
      %v2188 = vsel %vm1452, %v2107, 0.0
      %v2189 = vsel %vm1453, %v2109, 0.0
      %v2190 = vsel %vm1454, %v2111, 0.0
      %v2191 = vsel %vm1455, %v2113, 0.0
      %v2192 = vsel %vm1456, %v2115, 0.0
      %v2193 = vsel %vm1457, %v2117, 0.0
      %v2194 = vsel %vm1458, %v2119, 0.0
      %v2195 = vsel %vm1459, %v2121, 0.0
      %v2196 = vsel %vm1460, %v2123, 0.0
      %v2197 = vsel %vm1461, %v2125, 0.0
      %v2198 = vsel %vm1462, %v2127, 0.0
      %v2199 = vsel %vm1463, %v2129, 0.0
      %v2200 = vsel %vm1464, %v2131, 0.0
      %v2201 = vsel %vm1465, %v2133, 0.0
      %v2202 = vsel %vm1466, %v2135, 0.0
      %v2203 = vsel %vm1467, %v2137, 0.0
      %v2204 = vsel %vm1468, %v2139, 0.0
      %v2205 = vsel %vm1469, %v2141, 0.0
      %v2206 = vsel %vm1406, %v1188, 0.0
      %v2207 = vsel %vm1407, %v1189, 0.0
      %v2208 = vsel %vm1408, %v1190, 0.0
      %v2209 = vsel %vm1409, %v1191, 0.0
      %v2210 = vsel %vm1410, %v1192, 0.0
      %v2211 = vsel %vm1411, %v1193, 0.0
      %v2212 = vsel %vm1412, %v1194, 0.0
      %v2213 = vsel %vm1413, %v1195, 0.0
      %v2214 = vsel %vm1414, %v1196, 0.0
      %v2215 = vsel %vm1415, %v1197, 0.0
      %v2216 = vsel %vm1416, %v1198, 0.0
      %v2217 = vsel %vm1417, %v1199, 0.0
      %v2218 = vsel %vm1418, %v1200, 0.0
      %v2219 = vsel %vm1419, %v1201, 0.0
      %v2220 = vsel %vm1420, %v1202, 0.0
      %v2221 = vsel %vm1421, %v1203, 0.0
      %v2222 = vsel %vm1422, %v1204, 0.0
      %v2223 = vsel %vm1423, %v1205, 0.0
      %v2224 = vsel %vm1424, %v1206, 0.0
      %v2225 = vsel %vm1425, %v1207, 0.0
      %v2226 = vsel %vm1426, %v1208, 0.0
      %v2227 = vsel %vm1427, %v1209, 0.0
      %v2228 = vsel %vm1428, %v1210, 0.0
      %v2229 = vsel %vm1429, %v1211, 0.0
      %v2230 = vsel %vm1430, %v1212, 0.0
      %v2231 = vsel %vm1431, %v1213, 0.0
      %v2232 = vsel %vm1432, %v1214, 0.0
      %v2233 = vsel %vm1433, %v1215, 0.0
      %v2234 = vsel %vm1434, %v1216, 0.0
      %v2235 = vsel %vm1435, %v1217, 0.0
      %v2236 = vsel %vm1436, %v1218, 0.0
      %v2237 = vsel %vm1437, %v1219, 0.0
      %v2238 = vsel %vm1438, %v1220, 0.0
      %v2239 = vsel %vm1439, %v1221, 0.0
      %v2240 = vsel %vm1440, %v1222, 0.0
      %v2241 = vsel %vm1441, %v1223, 0.0
      %v2242 = vsel %vm1442, %v1224, 0.0
      %v2243 = vsel %vm1443, %v1225, 0.0
      %v2244 = vsel %vm1444, %v1226, 0.0
      %v2245 = vsel %vm1445, %v1227, 0.0
      %v2246 = vsel %vm1446, %v1228, 0.0
      %v2247 = vsel %vm1447, %v1229, 0.0
      %v2248 = vsel %vm1448, %v1230, 0.0
      %v2249 = vsel %vm1449, %v1231, 0.0
      %v2250 = vsel %vm1450, %v1232, 0.0
      %v2251 = vsel %vm1451, %v1233, 0.0
      %v2252 = vsel %vm1452, %v1234, 0.0
      %v2253 = vsel %vm1453, %v1235, 0.0
      %v2254 = vsel %vm1454, %v1236, 0.0
      %v2255 = vsel %vm1455, %v1237, 0.0
      %v2256 = vsel %vm1456, %v1238, 0.0
      %v2257 = vsel %vm1457, %v1239, 0.0
      %v2258 = vsel %vm1458, %v1240, 0.0
      %v2259 = vsel %vm1459, %v1241, 0.0
      %v2260 = vsel %vm1460, %v1242, 0.0
      %v2261 = vsel %vm1461, %v1243, 0.0
      %v2262 = vsel %vm1462, %v1244, 0.0
      %v2263 = vsel %vm1463, %v1245, 0.0
      %v2264 = vsel %vm1464, %v1246, 0.0
      %v2265 = vsel %vm1465, %v1247, 0.0
      %v2266 = vsel %vm1466, %v1248, 0.0
      %v2267 = vsel %vm1467, %v1249, 0.0
      %v2268 = vsel %vm1468, %v1250, 0.0
      %v2269 = vsel %vm1469, %v1251, 0.0
      %v2270 = vld [vmem:[#allocation4] sm:$0xff]
      %v2271 = vld [vmem:[#allocation4 + $0x8] sm:$0xff]
      %v2272 = vld [vmem:[#allocation4 + $0x10] sm:$0xff]
      %v2273 = vld [vmem:[#allocation4 + $0x18] sm:$0xff]
      %v2274 = vld [vmem:[#allocation4 + $0x20] sm:$0xff]
      %v2275 = vld [vmem:[#allocation4 + $0x28] sm:$0xff]
      %v2276 = vld [vmem:[#allocation4 + $0x30] sm:$0xff]
      %v2277 = vld [vmem:[#allocation4 + $0x38] sm:$0xff]
      %v2278 = vld [vmem:[#allocation4 + $0x40] sm:$0xff]
      %v2279 = vld [vmem:[#allocation4 + $0x48] sm:$0xff]
      %v2280 = vld [vmem:[#allocation4 + $0x50] sm:$0xff]
      %v2281 = vld [vmem:[#allocation4 + $0x58] sm:$0xff]
      %v2282 = vld [vmem:[#allocation4 + $0x60] sm:$0xff]
      %v2283 = vld [vmem:[#allocation4 + $0x68] sm:$0xff]
      %v2284 = vld [vmem:[#allocation4 + $0x70] sm:$0xff]
      %v2285 = vld [vmem:[#allocation4 + $0x78] sm:$0xff]
      %v2286 = vld [vmem:[#allocation4 + $0x80] sm:$0xff]
      %v2287 = vld [vmem:[#allocation4 + $0x88] sm:$0xff]
      %v2288 = vld [vmem:[#allocation4 + $0x90] sm:$0xff]
      %v2289 = vld [vmem:[#allocation4 + $0x98] sm:$0xff]
      %v2290 = vld [vmem:[#allocation4 + $0xa0] sm:$0xff]
      %v2291 = vld [vmem:[#allocation4 + $0xa8] sm:$0xff]
      %v2292 = vld [vmem:[#allocation4 + $0xb0] sm:$0xff]
      %v2293 = vld [vmem:[#allocation4 + $0xb8] sm:$0xff]
      %v2294 = vld [vmem:[#allocation4 + $0xc0] sm:$0xff]
      %v2295 = vld [vmem:[#allocation4 + $0xc8] sm:$0xff]
      %v2296 = vld [vmem:[#allocation4 + $0xd0] sm:$0xff]
      %v2297 = vld [vmem:[#allocation4 + $0xd8] sm:$0xff]
      %v2298 = vld [vmem:[#allocation4 + $0xe0] sm:$0xff]
      %v2299 = vld [vmem:[#allocation4 + $0xe8] sm:$0xff]
      %v2300 = vld [vmem:[#allocation4 + $0xf0] sm:$0xff]
      %v2301 = vld [vmem:[#allocation4 + $0xf8] sm:$0xff]
      %v2302 = vmul.f32 %v1727, %v2270
      %v2303 = vmul.f32 %v1729, %v2271
      %v2304 = vmul.f32 %v1731, %v2272
      %v2305 = vmul.f32 %v1733, %v2273
      %v2306 = vmul.f32 %v1735, %v2274
      %v2307 = vmul.f32 %v1737, %v2275
      %v2308 = vmul.f32 %v1739, %v2276
      %v2309 = vmul.f32 %v1741, %v2277
      %v2310 = vmul.f32 %v1743, %v2278
      %v2311 = vmul.f32 %v1745, %v2279
      %v2312 = vmul.f32 %v1747, %v2280
      %v2313 = vmul.f32 %v1749, %v2281
      %v2314 = vmul.f32 %v1751, %v2282
      %v2315 = vmul.f32 %v1753, %v2283
      %v2316 = vmul.f32 %v1755, %v2284
      %v2317 = vmul.f32 %v1757, %v2285
      %v2318 = vmul.f32 %v1759, %v2286
      %v2319 = vmul.f32 %v1761, %v2287
      %v2320 = vmul.f32 %v1763, %v2288
      %v2321 = vmul.f32 %v1765, %v2289
      %v2322 = vmul.f32 %v1767, %v2290
      %v2323 = vmul.f32 %v1769, %v2291
      %v2324 = vmul.f32 %v1771, %v2292
      %v2325 = vmul.f32 %v1773, %v2293
      %v2326 = vmul.f32 %v1775, %v2294
      %v2327 = vmul.f32 %v1777, %v2295
      %v2328 = vmul.f32 %v1779, %v2296
      %v2329 = vmul.f32 %v1781, %v2297
      %v2330 = vmul.f32 %v1783, %v2298
      %v2331 = vmul.f32 %v1785, %v2299
      %v2332 = vmul.f32 %v1787, %v2300
      %v2333 = vmul.f32 %v1789, %v2301
      %v2334 = vadd.f32 %v2142, %v2143
      %2335 = vadd.xlane.f32.xlu0 %v2334
      %v2336 = vpop.xlane.xlu0 %2335
      %v2337 = vadd.f32 %v2144, %v2145
      %2338 = vadd.xlane.f32.xlu0 %v2337
      %v2339 = vpop.xlane.xlu0 %2338
      %v2340 = vadd.f32 %v2146, %v2147
      %2341 = vadd.xlane.f32.xlu0 %v2340
      %v2342 = vpop.xlane.xlu0 %2341
      %v2343 = vadd.f32 %v2148, %v2149
      %2344 = vadd.xlane.f32.xlu0 %v2343
      %v2345 = vpop.xlane.xlu0 %2344
      %v2346 = vadd.f32 %v2150, %v2151
      %2347 = vadd.xlane.f32.xlu0 %v2346
      %v2348 = vpop.xlane.xlu0 %2347
      %v2349 = vadd.f32 %v2152, %v2153
      %2350 = vadd.xlane.f32.xlu0 %v2349
      %v2351 = vpop.xlane.xlu0 %2350
      %v2352 = vadd.f32 %v2154, %v2155
      %2353 = vadd.xlane.f32.xlu0 %v2352
      %v2354 = vpop.xlane.xlu0 %2353
      %v2355 = vadd.f32 %v2156, %v2157
      %2356 = vadd.xlane.f32.xlu0 %v2355
      %v2357 = vpop.xlane.xlu0 %2356
      %v2358 = vadd.f32 %v2158, %v2159
      %2359 = vadd.xlane.f32.xlu0 %v2358
      %v2360 = vpop.xlane.xlu0 %2359
      %v2361 = vadd.f32 %v2160, %v2161
      %2362 = vadd.xlane.f32.xlu0 %v2361
      %v2363 = vpop.xlane.xlu0 %2362
      %v2364 = vadd.f32 %v2162, %v2163
      %2365 = vadd.xlane.f32.xlu0 %v2364
      %v2366 = vpop.xlane.xlu0 %2365
      %v2367 = vadd.f32 %v2164, %v2165
      %2368 = vadd.xlane.f32.xlu0 %v2367
      %v2369 = vpop.xlane.xlu0 %2368
      %v2370 = vadd.f32 %v2166, %v2167
      %2371 = vadd.xlane.f32.xlu0 %v2370
      %v2372 = vpop.xlane.xlu0 %2371
      %v2373 = vadd.f32 %v2168, %v2169
      %2374 = vadd.xlane.f32.xlu0 %v2373
      %v2375 = vpop.xlane.xlu0 %2374
      %v2376 = vadd.f32 %v2170, %v2171
      %2377 = vadd.xlane.f32.xlu0 %v2376
      %v2378 = vpop.xlane.xlu0 %2377
      %v2379 = vadd.f32 %v2172, %v2173
      %2380 = vadd.xlane.f32.xlu0 %v2379
      %v2381 = vpop.xlane.xlu0 %2380
      %v2382 = vadd.f32 %v2174, %v2175
      %2383 = vadd.xlane.f32.xlu0 %v2382
      %v2384 = vpop.xlane.xlu0 %2383
      %v2385 = vadd.f32 %v2176, %v2177
      %2386 = vadd.xlane.f32.xlu0 %v2385
      %v2387 = vpop.xlane.xlu0 %2386
      %v2388 = vadd.f32 %v2178, %v2179
      %2389 = vadd.xlane.f32.xlu0 %v2388
      %v2390 = vpop.xlane.xlu0 %2389
      %v2391 = vadd.f32 %v2180, %v2181
      %2392 = vadd.xlane.f32.xlu0 %v2391
      %v2393 = vpop.xlane.xlu0 %2392
      %v2394 = vadd.f32 %v2182, %v2183
      %2395 = vadd.xlane.f32.xlu0 %v2394
      %v2396 = vpop.xlane.xlu0 %2395
      %v2397 = vadd.f32 %v2184, %v2185
      %2398 = vadd.xlane.f32.xlu0 %v2397
      %v2399 = vpop.xlane.xlu0 %2398
      %v2400 = vadd.f32 %v2186, %v2187
      %2401 = vadd.xlane.f32.xlu0 %v2400
      %v2402 = vpop.xlane.xlu0 %2401
      %v2403 = vadd.f32 %v2188, %v2189
      %2404 = vadd.xlane.f32.xlu0 %v2403
      %v2405 = vpop.xlane.xlu0 %2404
      %v2406 = vadd.f32 %v2190, %v2191
      %2407 = vadd.xlane.f32.xlu0 %v2406
      %v2408 = vpop.xlane.xlu0 %2407
      %v2409 = vadd.f32 %v2192, %v2193
      %2410 = vadd.xlane.f32.xlu0 %v2409
      %v2411 = vpop.xlane.xlu0 %2410
      %v2412 = vadd.f32 %v2194, %v2195
      %2413 = vadd.xlane.f32.xlu0 %v2412
      %v2414 = vpop.xlane.xlu0 %2413
      %v2415 = vadd.f32 %v2196, %v2197
      %2416 = vadd.xlane.f32.xlu0 %v2415
      %v2417 = vpop.xlane.xlu0 %2416
      %v2418 = vadd.f32 %v2198, %v2199
      %2419 = vadd.xlane.f32.xlu0 %v2418
      %v2420 = vpop.xlane.xlu0 %2419
      %v2421 = vadd.f32 %v2200, %v2201
      %2422 = vadd.xlane.f32.xlu0 %v2421
      %v2423 = vpop.xlane.xlu0 %2422
      %v2424 = vadd.f32 %v2202, %v2203
      %2425 = vadd.xlane.f32.xlu0 %v2424
      %v2426 = vpop.xlane.xlu0 %2425
      %v2427 = vadd.f32 %v2204, %v2205
      %2428 = vadd.xlane.f32.xlu0 %v2427
      %v2429 = vpop.xlane.xlu0 %2428
      %v2430 = vadd.f32 %v2302, %v2336
      %v2431 = vadd.f32 %v2303, %v2339
      %v2432 = vadd.f32 %v2304, %v2342
      %v2433 = vadd.f32 %v2305, %v2345
      %v2434 = vadd.f32 %v2306, %v2348
      %v2435 = vadd.f32 %v2307, %v2351
      %v2436 = vadd.f32 %v2308, %v2354
      %v2437 = vadd.f32 %v2309, %v2357
      %v2438 = vadd.f32 %v2310, %v2360
      %v2439 = vadd.f32 %v2311, %v2363
      %v2440 = vadd.f32 %v2312, %v2366
      %v2441 = vadd.f32 %v2313, %v2369
      %v2442 = vadd.f32 %v2314, %v2372
      %v2443 = vadd.f32 %v2315, %v2375
      %v2444 = vadd.f32 %v2316, %v2378
      %v2445 = vadd.f32 %v2317, %v2381
      %v2446 = vadd.f32 %v2318, %v2384
      %v2447 = vadd.f32 %v2319, %v2387
      %v2448 = vadd.f32 %v2320, %v2390
      %v2449 = vadd.f32 %v2321, %v2393
      %v2450 = vadd.f32 %v2322, %v2396
      %v2451 = vadd.f32 %v2323, %v2399
      %v2452 = vadd.f32 %v2324, %v2402
      %v2453 = vadd.f32 %v2325, %v2405
      %v2454 = vadd.f32 %v2326, %v2408
      %v2455 = vadd.f32 %v2327, %v2411
      %v2456 = vadd.f32 %v2328, %v2414
      %v2457 = vadd.f32 %v2329, %v2417
      %v2458 = vadd.f32 %v2330, %v2420
      %v2459 = vadd.f32 %v2331, %v2423
      %v2460 = vadd.f32 %v2332, %v2426
      %v2461 = vadd.f32 %v2333, %v2429
      %vm2462 = vcmask 7168
      %2463 = vst.msk [vmem:[#allocation4] sm:$0xff] %vm2462, %v2430
      %2464 = vst.msk [vmem:[#allocation4 + $0x8] sm:$0xff] %vm2462, %v2431
      %2465 = vst.msk [vmem:[#allocation4 + $0x10] sm:$0xff] %vm2462, %v2432
      %2466 = vst.msk [vmem:[#allocation4 + $0x18] sm:$0xff] %vm2462, %v2433
      %2467 = vst.msk [vmem:[#allocation4 + $0x20] sm:$0xff] %vm2462, %v2434
      %2468 = vst.msk [vmem:[#allocation4 + $0x28] sm:$0xff] %vm2462, %v2435
      %2469 = vst.msk [vmem:[#allocation4 + $0x30] sm:$0xff] %vm2462, %v2436
      %2470 = vst.msk [vmem:[#allocation4 + $0x38] sm:$0xff] %vm2462, %v2437
      %2471 = vst.msk [vmem:[#allocation4 + $0x40] sm:$0xff] %vm2462, %v2438
      %2472 = vst.msk [vmem:[#allocation4 + $0x48] sm:$0xff] %vm2462, %v2439
      %2473 = vst.msk [vmem:[#allocation4 + $0x50] sm:$0xff] %vm2462, %v2440
      %2474 = vst.msk [vmem:[#allocation4 + $0x58] sm:$0xff] %vm2462, %v2441
      %2475 = vst.msk [vmem:[#allocation4 + $0x60] sm:$0xff] %vm2462, %v2442
      %2476 = vst.msk [vmem:[#allocation4 + $0x68] sm:$0xff] %vm2462, %v2443
      %2477 = vst.msk [vmem:[#allocation4 + $0x70] sm:$0xff] %vm2462, %v2444
      %2478 = vst.msk [vmem:[#allocation4 + $0x78] sm:$0xff] %vm2462, %v2445
      %2479 = vst.msk [vmem:[#allocation4 + $0x80] sm:$0xff] %vm2462, %v2446
      %2480 = vst.msk [vmem:[#allocation4 + $0x88] sm:$0xff] %vm2462, %v2447
      %2481 = vst.msk [vmem:[#allocation4 + $0x90] sm:$0xff] %vm2462, %v2448
      %2482 = vst.msk [vmem:[#allocation4 + $0x98] sm:$0xff] %vm2462, %v2449
      %2483 = vst.msk [vmem:[#allocation4 + $0xa0] sm:$0xff] %vm2462, %v2450
      %2484 = vst.msk [vmem:[#allocation4 + $0xa8] sm:$0xff] %vm2462, %v2451
      %2485 = vst.msk [vmem:[#allocation4 + $0xb0] sm:$0xff] %vm2462, %v2452
      %2486 = vst.msk [vmem:[#allocation4 + $0xb8] sm:$0xff] %vm2462, %v2453
      %2487 = vst.msk [vmem:[#allocation4 + $0xc0] sm:$0xff] %vm2462, %v2454
      %2488 = vst.msk [vmem:[#allocation4 + $0xc8] sm:$0xff] %vm2462, %v2455
      %2489 = vst.msk [vmem:[#allocation4 + $0xd0] sm:$0xff] %vm2462, %v2456
      %2490 = vst.msk [vmem:[#allocation4 + $0xd8] sm:$0xff] %vm2462, %v2457
      %2491 = vst.msk [vmem:[#allocation4 + $0xe0] sm:$0xff] %vm2462, %v2458
      %2492 = vst.msk [vmem:[#allocation4 + $0xe8] sm:$0xff] %vm2462, %v2459
      %2493 = vst.msk [vmem:[#allocation4 + $0xf0] sm:$0xff] %vm2462, %v2460
      %2494 = vst.msk [vmem:[#allocation4 + $0xf8] sm:$0xff] %vm2462, %v2461
      %v2495 = vmul.f32 %v2206, %v1950
      %v2496 = vmul.f32 %v2207, %v1951
      %v2497 = vmul.f32 %v2208, %v1952
      %v2498 = vmul.f32 %v2209, %v1953
      %v2499 = vmul.f32 %v2210, %v1954
      %v2500 = vmul.f32 %v2211, %v1955
      %v2501 = vmul.f32 %v2212, %v1956
      %v2502 = vmul.f32 %v2213, %v1957
      %v2503 = vmul.f32 %v2214, %v1958
      %v2504 = vmul.f32 %v2215, %v1959
      %v2505 = vmul.f32 %v2216, %v1960
      %v2506 = vmul.f32 %v2217, %v1961
      %v2507 = vmul.f32 %v2218, %v1962
      %v2508 = vmul.f32 %v2219, %v1963
      %v2509 = vmul.f32 %v2220, %v1964
      %v2510 = vmul.f32 %v2221, %v1965
      %v2511 = vmul.f32 %v2222, %v1966
      %v2512 = vmul.f32 %v2223, %v1967
      %v2513 = vmul.f32 %v2224, %v1968
      %v2514 = vmul.f32 %v2225, %v1969
      %v2515 = vmul.f32 %v2226, %v1970
      %v2516 = vmul.f32 %v2227, %v1971
      %v2517 = vmul.f32 %v2228, %v1972
      %v2518 = vmul.f32 %v2229, %v1973
      %v2519 = vmul.f32 %v2230, %v1974
      %v2520 = vmul.f32 %v2231, %v1975
      %v2521 = vmul.f32 %v2232, %v1976
      %v2522 = vmul.f32 %v2233, %v1977
      %v2523 = vmul.f32 %v2234, %v1978
      %v2524 = vmul.f32 %v2235, %v1979
      %v2525 = vmul.f32 %v2236, %v1980
      %v2526 = vmul.f32 %v2237, %v1981
      %v2527 = vmul.f32 %v2238, %v1982
      %v2528 = vmul.f32 %v2239, %v1983
      %v2529 = vmul.f32 %v2240, %v1984
      %v2530 = vmul.f32 %v2241, %v1985
      %v2531 = vmul.f32 %v2242, %v1986
      %v2532 = vmul.f32 %v2243, %v1987
      %v2533 = vmul.f32 %v2244, %v1988
      %v2534 = vmul.f32 %v2245, %v1989
      %v2535 = vmul.f32 %v2246, %v1990
      %v2536 = vmul.f32 %v2247, %v1991
      %v2537 = vmul.f32 %v2248, %v1992
      %v2538 = vmul.f32 %v2249, %v1993
      %v2539 = vmul.f32 %v2250, %v1994
      %v2540 = vmul.f32 %v2251, %v1995
      %v2541 = vmul.f32 %v2252, %v1996
      %v2542 = vmul.f32 %v2253, %v1997
      %v2543 = vmul.f32 %v2254, %v1998
      %v2544 = vmul.f32 %v2255, %v1999
      %v2545 = vmul.f32 %v2256, %v2000
      %v2546 = vmul.f32 %v2257, %v2001
      %v2547 = vmul.f32 %v2258, %v2002
      %v2548 = vmul.f32 %v2259, %v2003
      %v2549 = vmul.f32 %v2260, %v2004
      %v2550 = vmul.f32 %v2261, %v2005
      %v2551 = vmul.f32 %v2262, %v2006
      %v2552 = vmul.f32 %v2263, %v2007
      %v2553 = vmul.f32 %v2264, %v2008
      %v2554 = vmul.f32 %v2265, %v2009
      %v2555 = vmul.f32 %v2266, %v2010
      %v2556 = vmul.f32 %v2267, %v2011
      %v2557 = vmul.f32 %v2268, %v2012
      %v2558 = vmul.f32 %v2269, %v2013
      %v2559 = vadd.f32 %v2495, %v2496
      %2560 = vadd.xlane.f32.xlu0 %v2559
      %v2561 = vpop.xlane.xlu0 %2560
      %v2562 = vadd.f32 %v2497, %v2498
      %2563 = vadd.xlane.f32.xlu0 %v2562
      %v2564 = vpop.xlane.xlu0 %2563
      %v2565 = vadd.f32 %v2499, %v2500
      %2566 = vadd.xlane.f32.xlu0 %v2565
      %v2567 = vpop.xlane.xlu0 %2566
      %v2568 = vadd.f32 %v2501, %v2502
      %2569 = vadd.xlane.f32.xlu0 %v2568
      %v2570 = vpop.xlane.xlu0 %2569
      %v2571 = vadd.f32 %v2503, %v2504
      %2572 = vadd.xlane.f32.xlu0 %v2571
      %v2573 = vpop.xlane.xlu0 %2572
      %v2574 = vadd.f32 %v2505, %v2506
      %2575 = vadd.xlane.f32.xlu0 %v2574
      %v2576 = vpop.xlane.xlu0 %2575
      %v2577 = vadd.f32 %v2507, %v2508
      %2578 = vadd.xlane.f32.xlu0 %v2577
      %v2579 = vpop.xlane.xlu0 %2578
      %v2580 = vadd.f32 %v2509, %v2510
      %2581 = vadd.xlane.f32.xlu0 %v2580
      %v2582 = vpop.xlane.xlu0 %2581
      %v2583 = vadd.f32 %v2511, %v2512
      %2584 = vadd.xlane.f32.xlu0 %v2583
      %v2585 = vpop.xlane.xlu0 %2584
      %v2586 = vadd.f32 %v2513, %v2514
      %2587 = vadd.xlane.f32.xlu0 %v2586
      %v2588 = vpop.xlane.xlu0 %2587
      %v2589 = vadd.f32 %v2515, %v2516
      %2590 = vadd.xlane.f32.xlu0 %v2589
      %v2591 = vpop.xlane.xlu0 %2590
      %v2592 = vadd.f32 %v2517, %v2518
      %2593 = vadd.xlane.f32.xlu0 %v2592
      %v2594 = vpop.xlane.xlu0 %2593
      %v2595 = vadd.f32 %v2519, %v2520
      %2596 = vadd.xlane.f32.xlu0 %v2595
      %v2597 = vpop.xlane.xlu0 %2596
      %v2598 = vadd.f32 %v2521, %v2522
      %2599 = vadd.xlane.f32.xlu0 %v2598
      %v2600 = vpop.xlane.xlu0 %2599
      %v2601 = vadd.f32 %v2523, %v2524
      %2602 = vadd.xlane.f32.xlu0 %v2601
      %v2603 = vpop.xlane.xlu0 %2602
      %v2604 = vadd.f32 %v2525, %v2526
      %2605 = vadd.xlane.f32.xlu0 %v2604
      %v2606 = vpop.xlane.xlu0 %2605
      %v2607 = vadd.f32 %v2527, %v2528
      %2608 = vadd.xlane.f32.xlu0 %v2607
      %v2609 = vpop.xlane.xlu0 %2608
      %v2610 = vadd.f32 %v2529, %v2530
      %2611 = vadd.xlane.f32.xlu0 %v2610
      %v2612 = vpop.xlane.xlu0 %2611
      %v2613 = vadd.f32 %v2531, %v2532
      %2614 = vadd.xlane.f32.xlu0 %v2613
      %v2615 = vpop.xlane.xlu0 %2614
      %v2616 = vadd.f32 %v2533, %v2534
      %2617 = vadd.xlane.f32.xlu0 %v2616
      %v2618 = vpop.xlane.xlu0 %2617
      %v2619 = vadd.f32 %v2535, %v2536
      %2620 = vadd.xlane.f32.xlu0 %v2619
      %v2621 = vpop.xlane.xlu0 %2620
      %v2622 = vadd.f32 %v2537, %v2538
      %2623 = vadd.xlane.f32.xlu0 %v2622
      %v2624 = vpop.xlane.xlu0 %2623
      %v2625 = vadd.f32 %v2539, %v2540
      %2626 = vadd.xlane.f32.xlu0 %v2625
      %v2627 = vpop.xlane.xlu0 %2626
      %v2628 = vadd.f32 %v2541, %v2542
      %2629 = vadd.xlane.f32.xlu0 %v2628
      %v2630 = vpop.xlane.xlu0 %2629
      %v2631 = vadd.f32 %v2543, %v2544
      %2632 = vadd.xlane.f32.xlu0 %v2631
      %v2633 = vpop.xlane.xlu0 %2632
      %v2634 = vadd.f32 %v2545, %v2546
      %2635 = vadd.xlane.f32.xlu0 %v2634
      %v2636 = vpop.xlane.xlu0 %2635
      %v2637 = vadd.f32 %v2547, %v2548
      %2638 = vadd.xlane.f32.xlu0 %v2637
      %v2639 = vpop.xlane.xlu0 %2638
      %v2640 = vadd.f32 %v2549, %v2550
      %2641 = vadd.xlane.f32.xlu0 %v2640
      %v2642 = vpop.xlane.xlu0 %2641
      %v2643 = vadd.f32 %v2551, %v2552
      %2644 = vadd.xlane.f32.xlu0 %v2643
      %v2645 = vpop.xlane.xlu0 %2644
      %v2646 = vadd.f32 %v2553, %v2554
      %2647 = vadd.xlane.f32.xlu0 %v2646
      %v2648 = vpop.xlane.xlu0 %2647
      %v2649 = vadd.f32 %v2555, %v2556
      %2650 = vadd.xlane.f32.xlu0 %v2649
      %v2651 = vpop.xlane.xlu0 %2650
      %v2652 = vadd.f32 %v2557, %v2558
      %2653 = vadd.xlane.f32.xlu0 %v2652
      %v2654 = vpop.xlane.xlu0 %2653
      %v2655 = vld [vmem:[#allocation5] sm:$0xff]
      %v2656 = vld [vmem:[#allocation5 + $0x8] sm:$0xff]
      %v2657 = vld [vmem:[#allocation5 + $0x10] sm:$0xff]
      %v2658 = vld [vmem:[#allocation5 + $0x18] sm:$0xff]
      %v2659 = vld [vmem:[#allocation5 + $0x20] sm:$0xff]
      %v2660 = vld [vmem:[#allocation5 + $0x28] sm:$0xff]
      %v2661 = vld [vmem:[#allocation5 + $0x30] sm:$0xff]
      %v2662 = vld [vmem:[#allocation5 + $0x38] sm:$0xff]
      %v2663 = vld [vmem:[#allocation5 + $0x40] sm:$0xff]
      %v2664 = vld [vmem:[#allocation5 + $0x48] sm:$0xff]
      %v2665 = vld [vmem:[#allocation5 + $0x50] sm:$0xff]
      %v2666 = vld [vmem:[#allocation5 + $0x58] sm:$0xff]
      %v2667 = vld [vmem:[#allocation5 + $0x60] sm:$0xff]
      %v2668 = vld [vmem:[#allocation5 + $0x68] sm:$0xff]
      %v2669 = vld [vmem:[#allocation5 + $0x70] sm:$0xff]
      %v2670 = vld [vmem:[#allocation5 + $0x78] sm:$0xff]
      %v2671 = vld [vmem:[#allocation5 + $0x80] sm:$0xff]
      %v2672 = vld [vmem:[#allocation5 + $0x88] sm:$0xff]
      %v2673 = vld [vmem:[#allocation5 + $0x90] sm:$0xff]
      %v2674 = vld [vmem:[#allocation5 + $0x98] sm:$0xff]
      %v2675 = vld [vmem:[#allocation5 + $0xa0] sm:$0xff]
      %v2676 = vld [vmem:[#allocation5 + $0xa8] sm:$0xff]
      %v2677 = vld [vmem:[#allocation5 + $0xb0] sm:$0xff]
      %v2678 = vld [vmem:[#allocation5 + $0xb8] sm:$0xff]
      %v2679 = vld [vmem:[#allocation5 + $0xc0] sm:$0xff]
      %v2680 = vld [vmem:[#allocation5 + $0xc8] sm:$0xff]
      %v2681 = vld [vmem:[#allocation5 + $0xd0] sm:$0xff]
      %v2682 = vld [vmem:[#allocation5 + $0xd8] sm:$0xff]
      %v2683 = vld [vmem:[#allocation5 + $0xe0] sm:$0xff]
      %v2684 = vld [vmem:[#allocation5 + $0xe8] sm:$0xff]
      %v2685 = vld [vmem:[#allocation5 + $0xf0] sm:$0xff]
      %v2686 = vld [vmem:[#allocation5 + $0xf8] sm:$0xff]
      %v2687 = vld [vmem:[#allocation6] sm:$0xff]
      %v2688 = vld [vmem:[#allocation6 + $0x8] sm:$0xff]
      %v2689 = vld [vmem:[#allocation6 + $0x10] sm:$0xff]
      %v2690 = vld [vmem:[#allocation6 + $0x18] sm:$0xff]
      %v2691 = vld [vmem:[#allocation6 + $0x20] sm:$0xff]
      %v2692 = vld [vmem:[#allocation6 + $0x28] sm:$0xff]
      %v2693 = vld [vmem:[#allocation6 + $0x30] sm:$0xff]
      %v2694 = vld [vmem:[#allocation6 + $0x38] sm:$0xff]
      %v2695 = vld [vmem:[#allocation6 + $0x40] sm:$0xff]
      %v2696 = vld [vmem:[#allocation6 + $0x48] sm:$0xff]
      %v2697 = vld [vmem:[#allocation6 + $0x50] sm:$0xff]
      %v2698 = vld [vmem:[#allocation6 + $0x58] sm:$0xff]
      %v2699 = vld [vmem:[#allocation6 + $0x60] sm:$0xff]
      %v2700 = vld [vmem:[#allocation6 + $0x68] sm:$0xff]
      %v2701 = vld [vmem:[#allocation6 + $0x70] sm:$0xff]
      %v2702 = vld [vmem:[#allocation6 + $0x78] sm:$0xff]
      %v2703 = vld [vmem:[#allocation6 + $0x80] sm:$0xff]
      %v2704 = vld [vmem:[#allocation6 + $0x88] sm:$0xff]
      %v2705 = vld [vmem:[#allocation6 + $0x90] sm:$0xff]
      %v2706 = vld [vmem:[#allocation6 + $0x98] sm:$0xff]
      %v2707 = vld [vmem:[#allocation6 + $0xa0] sm:$0xff]
      %v2708 = vld [vmem:[#allocation6 + $0xa8] sm:$0xff]
      %v2709 = vld [vmem:[#allocation6 + $0xb0] sm:$0xff]
      %v2710 = vld [vmem:[#allocation6 + $0xb8] sm:$0xff]
      %v2711 = vld [vmem:[#allocation6 + $0xc0] sm:$0xff]
      %v2712 = vld [vmem:[#allocation6 + $0xc8] sm:$0xff]
      %v2713 = vld [vmem:[#allocation6 + $0xd0] sm:$0xff]
      %v2714 = vld [vmem:[#allocation6 + $0xd8] sm:$0xff]
      %v2715 = vld [vmem:[#allocation6 + $0xe0] sm:$0xff]
      %v2716 = vld [vmem:[#allocation6 + $0xe8] sm:$0xff]
      %v2717 = vld [vmem:[#allocation6 + $0xf0] sm:$0xff]
      %v2718 = vld [vmem:[#allocation6 + $0xf8] sm:$0xff]
      %v2719 = vmul.f32 %v2687, %v1694
      %v2720 = vmul.f32 %v2688, %v1695
      %v2721 = vmul.f32 %v2689, %v1696
      %v2722 = vmul.f32 %v2690, %v1697
      %v2723 = vmul.f32 %v2691, %v1698
      %v2724 = vmul.f32 %v2692, %v1699
      %v2725 = vmul.f32 %v2693, %v1700
      %v2726 = vmul.f32 %v2694, %v1701
      %v2727 = vmul.f32 %v2695, %v1702
      %v2728 = vmul.f32 %v2696, %v1703
      %v2729 = vmul.f32 %v2697, %v1704
      %v2730 = vmul.f32 %v2698, %v1705
      %v2731 = vmul.f32 %v2699, %v1706
      %v2732 = vmul.f32 %v2700, %v1707
      %v2733 = vmul.f32 %v2701, %v1708
      %v2734 = vmul.f32 %v2702, %v1709
      %v2735 = vmul.f32 %v2703, %v1710
      %v2736 = vmul.f32 %v2704, %v1711
      %v2737 = vmul.f32 %v2705, %v1712
      %v2738 = vmul.f32 %v2706, %v1713
      %v2739 = vmul.f32 %v2707, %v1714
      %v2740 = vmul.f32 %v2708, %v1715
      %v2741 = vmul.f32 %v2709, %v1716
      %v2742 = vmul.f32 %v2710, %v1717
      %v2743 = vmul.f32 %v2711, %v1718
      %v2744 = vmul.f32 %v2712, %v1719
      %v2745 = vmul.f32 %v2713, %v1720
      %v2746 = vmul.f32 %v2714, %v1721
      %v2747 = vmul.f32 %v2715, %v1722
      %v2748 = vmul.f32 %v2716, %v1723
      %v2749 = vmul.f32 %v2717, %v1724
      %v2750 = vmul.f32 %v2718, %v1725
      %v2751 = vadd.f32 %v2655, %v2719
      %v2752 = vadd.f32 %v2656, %v2720
      %v2753 = vadd.f32 %v2657, %v2721
      %v2754 = vadd.f32 %v2658, %v2722
      %v2755 = vadd.f32 %v2659, %v2723
      %v2756 = vadd.f32 %v2660, %v2724
      %v2757 = vadd.f32 %v2661, %v2725
      %v2758 = vadd.f32 %v2662, %v2726
      %v2759 = vadd.f32 %v2663, %v2727
      %v2760 = vadd.f32 %v2664, %v2728
      %v2761 = vadd.f32 %v2665, %v2729
      %v2762 = vadd.f32 %v2666, %v2730
      %v2763 = vadd.f32 %v2667, %v2731
      %v2764 = vadd.f32 %v2668, %v2732
      %v2765 = vadd.f32 %v2669, %v2733
      %v2766 = vadd.f32 %v2670, %v2734
      %v2767 = vadd.f32 %v2671, %v2735
      %v2768 = vadd.f32 %v2672, %v2736
      %v2769 = vadd.f32 %v2673, %v2737
      %v2770 = vadd.f32 %v2674, %v2738
      %v2771 = vadd.f32 %v2675, %v2739
      %v2772 = vadd.f32 %v2676, %v2740
      %v2773 = vadd.f32 %v2677, %v2741
      %v2774 = vadd.f32 %v2678, %v2742
      %v2775 = vadd.f32 %v2679, %v2743
      %v2776 = vadd.f32 %v2680, %v2744
      %v2777 = vadd.f32 %v2681, %v2745
      %v2778 = vadd.f32 %v2682, %v2746
      %v2779 = vadd.f32 %v2683, %v2747
      %v2780 = vadd.f32 %v2684, %v2748
      %v2781 = vadd.f32 %v2685, %v2749
      %v2782 = vadd.f32 %v2686, %v2750
      %v2783 = vadd.f32 %v2751, %v2561
      %v2784 = vadd.f32 %v2752, %v2564
      %v2785 = vadd.f32 %v2753, %v2567
      %v2786 = vadd.f32 %v2754, %v2570
      %v2787 = vadd.f32 %v2755, %v2573
      %v2788 = vadd.f32 %v2756, %v2576
      %v2789 = vadd.f32 %v2757, %v2579
      %v2790 = vadd.f32 %v2758, %v2582
      %v2791 = vadd.f32 %v2759, %v2585
      %v2792 = vadd.f32 %v2760, %v2588
      %v2793 = vadd.f32 %v2761, %v2591
      %v2794 = vadd.f32 %v2762, %v2594
      %v2795 = vadd.f32 %v2763, %v2597
      %v2796 = vadd.f32 %v2764, %v2600
      %v2797 = vadd.f32 %v2765, %v2603
      %v2798 = vadd.f32 %v2766, %v2606
      %v2799 = vadd.f32 %v2767, %v2609
      %v2800 = vadd.f32 %v2768, %v2612
      %v2801 = vadd.f32 %v2769, %v2615
      %v2802 = vadd.f32 %v2770, %v2618
      %v2803 = vadd.f32 %v2771, %v2621
      %v2804 = vadd.f32 %v2772, %v2624
      %v2805 = vadd.f32 %v2773, %v2627
      %v2806 = vadd.f32 %v2774, %v2630
      %v2807 = vadd.f32 %v2775, %v2633
      %v2808 = vadd.f32 %v2776, %v2636
      %v2809 = vadd.f32 %v2777, %v2639
      %v2810 = vadd.f32 %v2778, %v2642
      %v2811 = vadd.f32 %v2779, %v2645
      %v2812 = vadd.f32 %v2780, %v2648
      %v2813 = vadd.f32 %v2781, %v2651
      %v2814 = vadd.f32 %v2782, %v2654
      %2815 = vst.msk [vmem:[#allocation5] sm:$0xff] %vm2462, %v2783
      %2816 = vst.msk [vmem:[#allocation5 + $0x8] sm:$0xff] %vm2462, %v2784
      %2817 = vst.msk [vmem:[#allocation5 + $0x10] sm:$0xff] %vm2462, %v2785
      %2818 = vst.msk [vmem:[#allocation5 + $0x18] sm:$0xff] %vm2462, %v2786
      %2819 = vst.msk [vmem:[#allocation5 + $0x20] sm:$0xff] %vm2462, %v2787
      %2820 = vst.msk [vmem:[#allocation5 + $0x28] sm:$0xff] %vm2462, %v2788
      %2821 = vst.msk [vmem:[#allocation5 + $0x30] sm:$0xff] %vm2462, %v2789
      %2822 = vst.msk [vmem:[#allocation5 + $0x38] sm:$0xff] %vm2462, %v2790
      %2823 = vst.msk [vmem:[#allocation5 + $0x40] sm:$0xff] %vm2462, %v2791
      %2824 = vst.msk [vmem:[#allocation5 + $0x48] sm:$0xff] %vm2462, %v2792
      %2825 = vst.msk [vmem:[#allocation5 + $0x50] sm:$0xff] %vm2462, %v2793
      %2826 = vst.msk [vmem:[#allocation5 + $0x58] sm:$0xff] %vm2462, %v2794
      %2827 = vst.msk [vmem:[#allocation5 + $0x60] sm:$0xff] %vm2462, %v2795
      %2828 = vst.msk [vmem:[#allocation5 + $0x68] sm:$0xff] %vm2462, %v2796
      %2829 = vst.msk [vmem:[#allocation5 + $0x70] sm:$0xff] %vm2462, %v2797
      %2830 = vst.msk [vmem:[#allocation5 + $0x78] sm:$0xff] %vm2462, %v2798
      %2831 = vst.msk [vmem:[#allocation5 + $0x80] sm:$0xff] %vm2462, %v2799
      %2832 = vst.msk [vmem:[#allocation5 + $0x88] sm:$0xff] %vm2462, %v2800
      %2833 = vst.msk [vmem:[#allocation5 + $0x90] sm:$0xff] %vm2462, %v2801
      %2834 = vst.msk [vmem:[#allocation5 + $0x98] sm:$0xff] %vm2462, %v2802
      %2835 = vst.msk [vmem:[#allocation5 + $0xa0] sm:$0xff] %vm2462, %v2803
      %2836 = vst.msk [vmem:[#allocation5 + $0xa8] sm:$0xff] %vm2462, %v2804
      %2837 = vst.msk [vmem:[#allocation5 + $0xb0] sm:$0xff] %vm2462, %v2805
      %2838 = vst.msk [vmem:[#allocation5 + $0xb8] sm:$0xff] %vm2462, %v2806
      %2839 = vst.msk [vmem:[#allocation5 + $0xc0] sm:$0xff] %vm2462, %v2807
      %2840 = vst.msk [vmem:[#allocation5 + $0xc8] sm:$0xff] %vm2462, %v2808
      %2841 = vst.msk [vmem:[#allocation5 + $0xd0] sm:$0xff] %vm2462, %v2809
      %2842 = vst.msk [vmem:[#allocation5 + $0xd8] sm:$0xff] %vm2462, %v2810
      %2843 = vst.msk [vmem:[#allocation5 + $0xe0] sm:$0xff] %vm2462, %v2811
      %2844 = vst.msk [vmem:[#allocation5 + $0xe8] sm:$0xff] %vm2462, %v2812
      %2845 = vst.msk [vmem:[#allocation5 + $0xf0] sm:$0xff] %vm2462, %v2813
      %2846 = vst.msk [vmem:[#allocation5 + $0xf8] sm:$0xff] %vm2462, %v2814
      %v2847 = vld [vmem:[#allocation6] sm:$0xff]
      %v2848 = vld [vmem:[#allocation6 + $0x8] sm:$0xff]
      %v2849 = vld [vmem:[#allocation6 + $0x10] sm:$0xff]
      %v2850 = vld [vmem:[#allocation6 + $0x18] sm:$0xff]
      %v2851 = vld [vmem:[#allocation6 + $0x20] sm:$0xff]
      %v2852 = vld [vmem:[#allocation6 + $0x28] sm:$0xff]
      %v2853 = vld [vmem:[#allocation6 + $0x30] sm:$0xff]
      %v2854 = vld [vmem:[#allocation6 + $0x38] sm:$0xff]
      %v2855 = vld [vmem:[#allocation6 + $0x40] sm:$0xff]
      %v2856 = vld [vmem:[#allocation6 + $0x48] sm:$0xff]
      %v2857 = vld [vmem:[#allocation6 + $0x50] sm:$0xff]
      %v2858 = vld [vmem:[#allocation6 + $0x58] sm:$0xff]
      %v2859 = vld [vmem:[#allocation6 + $0x60] sm:$0xff]
      %v2860 = vld [vmem:[#allocation6 + $0x68] sm:$0xff]
      %v2861 = vld [vmem:[#allocation6 + $0x70] sm:$0xff]
      %v2862 = vld [vmem:[#allocation6 + $0x78] sm:$0xff]
      %v2863 = vld [vmem:[#allocation6 + $0x80] sm:$0xff]
      %v2864 = vld [vmem:[#allocation6 + $0x88] sm:$0xff]
      %v2865 = vld [vmem:[#allocation6 + $0x90] sm:$0xff]
      %v2866 = vld [vmem:[#allocation6 + $0x98] sm:$0xff]
      %v2867 = vld [vmem:[#allocation6 + $0xa0] sm:$0xff]
      %v2868 = vld [vmem:[#allocation6 + $0xa8] sm:$0xff]
      %v2869 = vld [vmem:[#allocation6 + $0xb0] sm:$0xff]
      %v2870 = vld [vmem:[#allocation6 + $0xb8] sm:$0xff]
      %v2871 = vld [vmem:[#allocation6 + $0xc0] sm:$0xff]
      %v2872 = vld [vmem:[#allocation6 + $0xc8] sm:$0xff]
      %v2873 = vld [vmem:[#allocation6 + $0xd0] sm:$0xff]
      %v2874 = vld [vmem:[#allocation6 + $0xd8] sm:$0xff]
      %v2875 = vld [vmem:[#allocation6 + $0xe0] sm:$0xff]
      %v2876 = vld [vmem:[#allocation6 + $0xe8] sm:$0xff]
      %v2877 = vld [vmem:[#allocation6 + $0xf0] sm:$0xff]
      %v2878 = vld [vmem:[#allocation6 + $0xf8] sm:$0xff]
      %v2879 = vadd.f32 %v2206, %v2207
      %2880 = vadd.xlane.f32.xlu0 %v2879
      %v2881 = vpop.xlane.xlu0 %2880
      %v2882 = vadd.f32 %v2208, %v2209
      %2883 = vadd.xlane.f32.xlu0 %v2882
      %v2884 = vpop.xlane.xlu0 %2883
      %v2885 = vadd.f32 %v2210, %v2211
      %2886 = vadd.xlane.f32.xlu0 %v2885
      %v2887 = vpop.xlane.xlu0 %2886
      %v2888 = vadd.f32 %v2212, %v2213
      %2889 = vadd.xlane.f32.xlu0 %v2888
      %v2890 = vpop.xlane.xlu0 %2889
      %v2891 = vadd.f32 %v2214, %v2215
      %2892 = vadd.xlane.f32.xlu0 %v2891
      %v2893 = vpop.xlane.xlu0 %2892
      %v2894 = vadd.f32 %v2216, %v2217
      %2895 = vadd.xlane.f32.xlu0 %v2894
      %v2896 = vpop.xlane.xlu0 %2895
      %v2897 = vadd.f32 %v2218, %v2219
      %2898 = vadd.xlane.f32.xlu0 %v2897
      %v2899 = vpop.xlane.xlu0 %2898
      %v2900 = vadd.f32 %v2220, %v2221
      %2901 = vadd.xlane.f32.xlu0 %v2900
      %v2902 = vpop.xlane.xlu0 %2901
      %v2903 = vadd.f32 %v2222, %v2223
      %2904 = vadd.xlane.f32.xlu0 %v2903
      %v2905 = vpop.xlane.xlu0 %2904
      %v2906 = vadd.f32 %v2224, %v2225
      %2907 = vadd.xlane.f32.xlu0 %v2906
      %v2908 = vpop.xlane.xlu0 %2907
      %v2909 = vadd.f32 %v2226, %v2227
      %2910 = vadd.xlane.f32.xlu0 %v2909
      %v2911 = vpop.xlane.xlu0 %2910
      %v2912 = vadd.f32 %v2228, %v2229
      %2913 = vadd.xlane.f32.xlu0 %v2912
      %v2914 = vpop.xlane.xlu0 %2913
      %v2915 = vadd.f32 %v2230, %v2231
      %2916 = vadd.xlane.f32.xlu0 %v2915
      %v2917 = vpop.xlane.xlu0 %2916
      %v2918 = vadd.f32 %v2232, %v2233
      %2919 = vadd.xlane.f32.xlu0 %v2918
      %v2920 = vpop.xlane.xlu0 %2919
      %v2921 = vadd.f32 %v2234, %v2235
      %2922 = vadd.xlane.f32.xlu0 %v2921
      %v2923 = vpop.xlane.xlu0 %2922
      %v2924 = vadd.f32 %v2236, %v2237
      %2925 = vadd.xlane.f32.xlu0 %v2924
      %v2926 = vpop.xlane.xlu0 %2925
      %v2927 = vadd.f32 %v2238, %v2239
      %2928 = vadd.xlane.f32.xlu0 %v2927
      %v2929 = vpop.xlane.xlu0 %2928
      %v2930 = vadd.f32 %v2240, %v2241
      %2931 = vadd.xlane.f32.xlu0 %v2930
      %v2932 = vpop.xlane.xlu0 %2931
      %v2933 = vadd.f32 %v2242, %v2243
      %2934 = vadd.xlane.f32.xlu0 %v2933
      %v2935 = vpop.xlane.xlu0 %2934
      %v2936 = vadd.f32 %v2244, %v2245
      %2937 = vadd.xlane.f32.xlu0 %v2936
      %v2938 = vpop.xlane.xlu0 %2937
      %v2939 = vadd.f32 %v2246, %v2247
      %2940 = vadd.xlane.f32.xlu0 %v2939
      %v2941 = vpop.xlane.xlu0 %2940
      %v2942 = vadd.f32 %v2248, %v2249
      %2943 = vadd.xlane.f32.xlu0 %v2942
      %v2944 = vpop.xlane.xlu0 %2943
      %v2945 = vadd.f32 %v2250, %v2251
      %2946 = vadd.xlane.f32.xlu0 %v2945
      %v2947 = vpop.xlane.xlu0 %2946
      %v2948 = vadd.f32 %v2252, %v2253
      %2949 = vadd.xlane.f32.xlu0 %v2948
      %v2950 = vpop.xlane.xlu0 %2949
      %v2951 = vadd.f32 %v2254, %v2255
      %2952 = vadd.xlane.f32.xlu0 %v2951
      %v2953 = vpop.xlane.xlu0 %2952
      %v2954 = vadd.f32 %v2256, %v2257
      %2955 = vadd.xlane.f32.xlu0 %v2954
      %v2956 = vpop.xlane.xlu0 %2955
      %v2957 = vadd.f32 %v2258, %v2259
      %2958 = vadd.xlane.f32.xlu0 %v2957
      %v2959 = vpop.xlane.xlu0 %2958
      %v2960 = vadd.f32 %v2260, %v2261
      %2961 = vadd.xlane.f32.xlu0 %v2960
      %v2962 = vpop.xlane.xlu0 %2961
      %v2963 = vadd.f32 %v2262, %v2263
      %2964 = vadd.xlane.f32.xlu0 %v2963
      %v2965 = vpop.xlane.xlu0 %2964
      %v2966 = vadd.f32 %v2264, %v2265
      %2967 = vadd.xlane.f32.xlu0 %v2966
      %v2968 = vpop.xlane.xlu0 %2967
      %v2969 = vadd.f32 %v2266, %v2267
      %2970 = vadd.xlane.f32.xlu0 %v2969
      %v2971 = vpop.xlane.xlu0 %2970
      %v2972 = vadd.f32 %v2268, %v2269
      %2973 = vadd.xlane.f32.xlu0 %v2972
      %v2974 = vpop.xlane.xlu0 %2973
      %v2975 = vadd.f32 %v2847, %v2881
      %v2976 = vadd.f32 %v2848, %v2884
      %v2977 = vadd.f32 %v2849, %v2887
      %v2978 = vadd.f32 %v2850, %v2890
      %v2979 = vadd.f32 %v2851, %v2893
      %v2980 = vadd.f32 %v2852, %v2896
      %v2981 = vadd.f32 %v2853, %v2899
      %v2982 = vadd.f32 %v2854, %v2902
      %v2983 = vadd.f32 %v2855, %v2905
      %v2984 = vadd.f32 %v2856, %v2908
      %v2985 = vadd.f32 %v2857, %v2911
      %v2986 = vadd.f32 %v2858, %v2914
      %v2987 = vadd.f32 %v2859, %v2917
      %v2988 = vadd.f32 %v2860, %v2920
      %v2989 = vadd.f32 %v2861, %v2923
      %v2990 = vadd.f32 %v2862, %v2926
      %v2991 = vadd.f32 %v2863, %v2929
      %v2992 = vadd.f32 %v2864, %v2932
      %v2993 = vadd.f32 %v2865, %v2935
      %v2994 = vadd.f32 %v2866, %v2938
      %v2995 = vadd.f32 %v2867, %v2941
      %v2996 = vadd.f32 %v2868, %v2944
      %v2997 = vadd.f32 %v2869, %v2947
      %v2998 = vadd.f32 %v2870, %v2950
      %v2999 = vadd.f32 %v2871, %v2953
      %v3000 = vadd.f32 %v2872, %v2956
      %v3001 = vadd.f32 %v2873, %v2959
      %v3002 = vadd.f32 %v2874, %v2962
      %v3003 = vadd.f32 %v2875, %v2965
      %v3004 = vadd.f32 %v2876, %v2968
      %v3005 = vadd.f32 %v2877, %v2971
      %v3006 = vadd.f32 %v2878, %v2974
      %3007 = vst.msk [vmem:[#allocation6] sm:$0xff] %vm2462, %v2975
      %3008 = vst.msk [vmem:[#allocation6 + $0x8] sm:$0xff] %vm2462, %v2976
      %3009 = vst.msk [vmem:[#allocation6 + $0x10] sm:$0xff] %vm2462, %v2977
      %3010 = vst.msk [vmem:[#allocation6 + $0x18] sm:$0xff] %vm2462, %v2978
      %3011 = vst.msk [vmem:[#allocation6 + $0x20] sm:$0xff] %vm2462, %v2979
      %3012 = vst.msk [vmem:[#allocation6 + $0x28] sm:$0xff] %vm2462, %v2980
      %3013 = vst.msk [vmem:[#allocation6 + $0x30] sm:$0xff] %vm2462, %v2981
      %3014 = vst.msk [vmem:[#allocation6 + $0x38] sm:$0xff] %vm2462, %v2982
      %3015 = vst.msk [vmem:[#allocation6 + $0x40] sm:$0xff] %vm2462, %v2983
      %3016 = vst.msk [vmem:[#allocation6 + $0x48] sm:$0xff] %vm2462, %v2984
      %3017 = vst.msk [vmem:[#allocation6 + $0x50] sm:$0xff] %vm2462, %v2985
      %3018 = vst.msk [vmem:[#allocation6 + $0x58] sm:$0xff] %vm2462, %v2986
      %3019 = vst.msk [vmem:[#allocation6 + $0x60] sm:$0xff] %vm2462, %v2987
      %3020 = vst.msk [vmem:[#allocation6 + $0x68] sm:$0xff] %vm2462, %v2988
      %3021 = vst.msk [vmem:[#allocation6 + $0x70] sm:$0xff] %vm2462, %v2989
      %3022 = vst.msk [vmem:[#allocation6 + $0x78] sm:$0xff] %vm2462, %v2990
      %3023 = vst.msk [vmem:[#allocation6 + $0x80] sm:$0xff] %vm2462, %v2991
      %3024 = vst.msk [vmem:[#allocation6 + $0x88] sm:$0xff] %vm2462, %v2992
      %3025 = vst.msk [vmem:[#allocation6 + $0x90] sm:$0xff] %vm2462, %v2993
      %3026 = vst.msk [vmem:[#allocation6 + $0x98] sm:$0xff] %vm2462, %v2994
      %3027 = vst.msk [vmem:[#allocation6 + $0xa0] sm:$0xff] %vm2462, %v2995
      %3028 = vst.msk [vmem:[#allocation6 + $0xa8] sm:$0xff] %vm2462, %v2996
      %3029 = vst.msk [vmem:[#allocation6 + $0xb0] sm:$0xff] %vm2462, %v2997
      %3030 = vst.msk [vmem:[#allocation6 + $0xb8] sm:$0xff] %vm2462, %v2998
      %3031 = vst.msk [vmem:[#allocation6 + $0xc0] sm:$0xff] %vm2462, %v2999
      %3032 = vst.msk [vmem:[#allocation6 + $0xc8] sm:$0xff] %vm2462, %v3000
      %3033 = vst.msk [vmem:[#allocation6 + $0xd0] sm:$0xff] %vm2462, %v3001
      %3034 = vst.msk [vmem:[#allocation6 + $0xd8] sm:$0xff] %vm2462, %v3002
      %3035 = vst.msk [vmem:[#allocation6 + $0xe0] sm:$0xff] %vm2462, %v3003
      %3036 = vst.msk [vmem:[#allocation6 + $0xe8] sm:$0xff] %vm2462, %v3004
      %3037 = vst.msk [vmem:[#allocation6 + $0xf0] sm:$0xff] %vm2462, %v3005
      %3038 = vst.msk [vmem:[#allocation6 + $0xf8] sm:$0xff] %vm2462, %v3006
      %3039 = vst.msk [vmem:[#allocation3] sm:$0xff] %vm2462, %v1662
      %3040 = vst.msk [vmem:[#allocation3 + $0x8] sm:$0xff] %vm2462, %v1663
      %3041 = vst.msk [vmem:[#allocation3 + $0x10] sm:$0xff] %vm2462, %v1664
      %3042 = vst.msk [vmem:[#allocation3 + $0x18] sm:$0xff] %vm2462, %v1665
      %3043 = vst.msk [vmem:[#allocation3 + $0x20] sm:$0xff] %vm2462, %v1666
      %3044 = vst.msk [vmem:[#allocation3 + $0x28] sm:$0xff] %vm2462, %v1667
      %3045 = vst.msk [vmem:[#allocation3 + $0x30] sm:$0xff] %vm2462, %v1668
      %3046 = vst.msk [vmem:[#allocation3 + $0x38] sm:$0xff] %vm2462, %v1669
      %3047 = vst.msk [vmem:[#allocation3 + $0x40] sm:$0xff] %vm2462, %v1670
      %3048 = vst.msk [vmem:[#allocation3 + $0x48] sm:$0xff] %vm2462, %v1671
      %3049 = vst.msk [vmem:[#allocation3 + $0x50] sm:$0xff] %vm2462, %v1672
      %3050 = vst.msk [vmem:[#allocation3 + $0x58] sm:$0xff] %vm2462, %v1673
      %3051 = vst.msk [vmem:[#allocation3 + $0x60] sm:$0xff] %vm2462, %v1674
      %3052 = vst.msk [vmem:[#allocation3 + $0x68] sm:$0xff] %vm2462, %v1675
      %3053 = vst.msk [vmem:[#allocation3 + $0x70] sm:$0xff] %vm2462, %v1676
      %3054 = vst.msk [vmem:[#allocation3 + $0x78] sm:$0xff] %vm2462, %v1677
      %3055 = vst.msk [vmem:[#allocation3 + $0x80] sm:$0xff] %vm2462, %v1678
      %3056 = vst.msk [vmem:[#allocation3 + $0x88] sm:$0xff] %vm2462, %v1679
      %3057 = vst.msk [vmem:[#allocation3 + $0x90] sm:$0xff] %vm2462, %v1680
      %3058 = vst.msk [vmem:[#allocation3 + $0x98] sm:$0xff] %vm2462, %v1681
      %3059 = vst.msk [vmem:[#allocation3 + $0xa0] sm:$0xff] %vm2462, %v1682
      %3060 = vst.msk [vmem:[#allocation3 + $0xa8] sm:$0xff] %vm2462, %v1683
      %3061 = vst.msk [vmem:[#allocation3 + $0xb0] sm:$0xff] %vm2462, %v1684
      %3062 = vst.msk [vmem:[#allocation3 + $0xb8] sm:$0xff] %vm2462, %v1685
      %3063 = vst.msk [vmem:[#allocation3 + $0xc0] sm:$0xff] %vm2462, %v1686
      %3064 = vst.msk [vmem:[#allocation3 + $0xc8] sm:$0xff] %vm2462, %v1687
      %3065 = vst.msk [vmem:[#allocation3 + $0xd0] sm:$0xff] %vm2462, %v1688
      %3066 = vst.msk [vmem:[#allocation3 + $0xd8] sm:$0xff] %vm2462, %v1689
      %3067 = vst.msk [vmem:[#allocation3 + $0xe0] sm:$0xff] %vm2462, %v1690
      %3068 = vst.msk [vmem:[#allocation3 + $0xe8] sm:$0xff] %vm2462, %v1691
      %3069 = vst.msk [vmem:[#allocation3 + $0xf0] sm:$0xff] %vm2462, %v1692
      %3070 = vst.msk [vmem:[#allocation3 + $0xf8] sm:$0xff] %vm2462, %v1693
    $region25: #{tpu_custom_call.1} parent=1 // pred_fallthru
      _
    %p3071 = pneg %p1260
    // Predicated region
    $region26: #{tpu_custom_call.1} parent=1 // pred_check
      _
    $region27: #{tpu_custom_call.1} parent=1 // pred_check_branch
      %3073 = sbr.rel (%p1260) target = $region29
    $region28: #{tpu_custom_call.1} parent=1 // pred_region
      %v3074 = vld [vmem:[#allocation3] sm:$0xff]
      %v3075 = vld [vmem:[#allocation3 + $0x8] sm:$0xff]
      %v3076 = vld [vmem:[#allocation3 + $0x10] sm:$0xff]
      %v3077 = vld [vmem:[#allocation3 + $0x18] sm:$0xff]
      %v3078 = vld [vmem:[#allocation3 + $0x20] sm:$0xff]
      %v3079 = vld [vmem:[#allocation3 + $0x28] sm:$0xff]
      %v3080 = vld [vmem:[#allocation3 + $0x30] sm:$0xff]
      %v3081 = vld [vmem:[#allocation3 + $0x38] sm:$0xff]
      %v3082 = vld [vmem:[#allocation3 + $0x40] sm:$0xff]
      %v3083 = vld [vmem:[#allocation3 + $0x48] sm:$0xff]
      %v3084 = vld [vmem:[#allocation3 + $0x50] sm:$0xff]
      %v3085 = vld [vmem:[#allocation3 + $0x58] sm:$0xff]
      %v3086 = vld [vmem:[#allocation3 + $0x60] sm:$0xff]
      %v3087 = vld [vmem:[#allocation3 + $0x68] sm:$0xff]
      %v3088 = vld [vmem:[#allocation3 + $0x70] sm:$0xff]
      %v3089 = vld [vmem:[#allocation3 + $0x78] sm:$0xff]
      %v3090 = vld [vmem:[#allocation3 + $0x80] sm:$0xff]
      %v3091 = vld [vmem:[#allocation3 + $0x88] sm:$0xff]
      %v3092 = vld [vmem:[#allocation3 + $0x90] sm:$0xff]
      %v3093 = vld [vmem:[#allocation3 + $0x98] sm:$0xff]
      %v3094 = vld [vmem:[#allocation3 + $0xa0] sm:$0xff]
      %v3095 = vld [vmem:[#allocation3 + $0xa8] sm:$0xff]
      %v3096 = vld [vmem:[#allocation3 + $0xb0] sm:$0xff]
      %v3097 = vld [vmem:[#allocation3 + $0xb8] sm:$0xff]
      %v3098 = vld [vmem:[#allocation3 + $0xc0] sm:$0xff]
      %v3099 = vld [vmem:[#allocation3 + $0xc8] sm:$0xff]
      %v3100 = vld [vmem:[#allocation3 + $0xd0] sm:$0xff]
      %v3101 = vld [vmem:[#allocation3 + $0xd8] sm:$0xff]
      %v3102 = vld [vmem:[#allocation3 + $0xe0] sm:$0xff]
      %v3103 = vld [vmem:[#allocation3 + $0xe8] sm:$0xff]
      %v3104 = vld [vmem:[#allocation3 + $0xf0] sm:$0xff]
      %v3105 = vld [vmem:[#allocation3 + $0xf8] sm:$0xff]
      %v3106 = vmax.f32 %v765, %v767
      %3107 = vmax.xlane.f32.xlu0 %v3106
      %v3108 = vpop.xlane.xlu0 %3107
      %v3109 = vmax.f32 %v769, %v771
      %3110 = vmax.xlane.f32.xlu0 %v3109
      %v3111 = vpop.xlane.xlu0 %3110
      %v3112 = vmax.f32 %v775, %v777
      %3113 = vmax.xlane.f32.xlu0 %v3112
      %v3114 = vpop.xlane.xlu0 %3113
      %v3115 = vmax.f32 %v779, %v781
      %3116 = vmax.xlane.f32.xlu0 %v3115
      %v3117 = vpop.xlane.xlu0 %3116
      %v3118 = vmax.f32 %v785, %v787
      %3119 = vmax.xlane.f32.xlu0 %v3118
      %v3120 = vpop.xlane.xlu0 %3119
      %v3121 = vmax.f32 %v789, %v791
      %3122 = vmax.xlane.f32.xlu0 %v3121
      %v3123 = vpop.xlane.xlu0 %3122
      %v3124 = vmax.f32 %v795, %v797
      %3125 = vmax.xlane.f32.xlu0 %v3124
      %v3126 = vpop.xlane.xlu0 %3125
      %v3127 = vmax.f32 %v799, %v801
      %3128 = vmax.xlane.f32.xlu0 %v3127
      %v3129 = vpop.xlane.xlu0 %3128
      %v3130 = vmax.f32 %v805, %v807
      %3131 = vmax.xlane.f32.xlu0 %v3130
      %v3132 = vpop.xlane.xlu0 %3131
      %v3133 = vmax.f32 %v809, %v811
      %3134 = vmax.xlane.f32.xlu0 %v3133
      %v3135 = vpop.xlane.xlu0 %3134
      %v3136 = vmax.f32 %v815, %v817
      %3137 = vmax.xlane.f32.xlu0 %v3136
      %v3138 = vpop.xlane.xlu0 %3137
      %v3139 = vmax.f32 %v819, %v821
      %3140 = vmax.xlane.f32.xlu0 %v3139
      %v3141 = vpop.xlane.xlu0 %3140
      %v3142 = vmax.f32 %v825, %v827
      %3143 = vmax.xlane.f32.xlu0 %v3142
      %v3144 = vpop.xlane.xlu0 %3143
      %v3145 = vmax.f32 %v829, %v831
      %3146 = vmax.xlane.f32.xlu0 %v3145
      %v3147 = vpop.xlane.xlu0 %3146
      %v3148 = vmax.f32 %v835, %v837
      %3149 = vmax.xlane.f32.xlu0 %v3148
      %v3150 = vpop.xlane.xlu0 %3149
      %v3151 = vmax.f32 %v839, %v841
      %3152 = vmax.xlane.f32.xlu0 %v3151
      %v3153 = vpop.xlane.xlu0 %3152
      %v3154 = vmax.f32 %v845, %v847
      %3155 = vmax.xlane.f32.xlu0 %v3154
      %v3156 = vpop.xlane.xlu0 %3155
      %v3157 = vmax.f32 %v849, %v851
      %3158 = vmax.xlane.f32.xlu0 %v3157
      %v3159 = vpop.xlane.xlu0 %3158
      %v3160 = vmax.f32 %v855, %v857
      %3161 = vmax.xlane.f32.xlu0 %v3160
      %v3162 = vpop.xlane.xlu0 %3161
      %v3163 = vmax.f32 %v859, %v861
      %3164 = vmax.xlane.f32.xlu0 %v3163
      %v3165 = vpop.xlane.xlu0 %3164
      %v3166 = vmax.f32 %v865, %v867
      %3167 = vmax.xlane.f32.xlu0 %v3166
      %v3168 = vpop.xlane.xlu0 %3167
      %v3169 = vmax.f32 %v869, %v871
      %3170 = vmax.xlane.f32.xlu0 %v3169
      %v3171 = vpop.xlane.xlu0 %3170
      %v3172 = vmax.f32 %v875, %v877
      %3173 = vmax.xlane.f32.xlu0 %v3172
      %v3174 = vpop.xlane.xlu0 %3173
      %v3175 = vmax.f32 %v879, %v881
      %3176 = vmax.xlane.f32.xlu0 %v3175
      %v3177 = vpop.xlane.xlu0 %3176
      %v3178 = vmax.f32 %v885, %v887
      %3179 = vmax.xlane.f32.xlu0 %v3178
      %v3180 = vpop.xlane.xlu0 %3179
      %v3181 = vmax.f32 %v889, %v891
      %3182 = vmax.xlane.f32.xlu0 %v3181
      %v3183 = vpop.xlane.xlu0 %3182
      %v3184 = vmax.f32 %v895, %v897
      %3185 = vmax.xlane.f32.xlu0 %v3184
      %v3186 = vpop.xlane.xlu0 %3185
      %v3187 = vmax.f32 %v899, %v901
      %3188 = vmax.xlane.f32.xlu0 %v3187
      %v3189 = vpop.xlane.xlu0 %3188
      %v3190 = vmax.f32 %v905, %v907
      %3191 = vmax.xlane.f32.xlu0 %v3190
      %v3192 = vpop.xlane.xlu0 %3191
      %v3193 = vmax.f32 %v909, %v911
      %3194 = vmax.xlane.f32.xlu0 %v3193
      %v3195 = vpop.xlane.xlu0 %3194
      %v3196 = vmax.f32 %v915, %v917
      %3197 = vmax.xlane.f32.xlu0 %v3196
      %v3198 = vpop.xlane.xlu0 %3197
      %v3199 = vmax.f32 %v919, %v921
      %3200 = vmax.xlane.f32.xlu0 %v3199
      %v3201 = vpop.xlane.xlu0 %3200
      %v3202 = vmax.f32 %v3074, %v3108
      %v3203 = vmax.f32 %v3075, %v3111
      %v3204 = vmax.f32 %v3076, %v3114
      %v3205 = vmax.f32 %v3077, %v3117
      %v3206 = vmax.f32 %v3078, %v3120
      %v3207 = vmax.f32 %v3079, %v3123
      %v3208 = vmax.f32 %v3080, %v3126
      %v3209 = vmax.f32 %v3081, %v3129
      %v3210 = vmax.f32 %v3082, %v3132
      %v3211 = vmax.f32 %v3083, %v3135
      %v3212 = vmax.f32 %v3084, %v3138
      %v3213 = vmax.f32 %v3085, %v3141
      %v3214 = vmax.f32 %v3086, %v3144
      %v3215 = vmax.f32 %v3087, %v3147
      %v3216 = vmax.f32 %v3088, %v3150
      %v3217 = vmax.f32 %v3089, %v3153
      %v3218 = vmax.f32 %v3090, %v3156
      %v3219 = vmax.f32 %v3091, %v3159
      %v3220 = vmax.f32 %v3092, %v3162
      %v3221 = vmax.f32 %v3093, %v3165
      %v3222 = vmax.f32 %v3094, %v3168
      %v3223 = vmax.f32 %v3095, %v3171
      %v3224 = vmax.f32 %v3096, %v3174
      %v3225 = vmax.f32 %v3097, %v3177
      %v3226 = vmax.f32 %v3098, %v3180
      %v3227 = vmax.f32 %v3099, %v3183
      %v3228 = vmax.f32 %v3100, %v3186
      %v3229 = vmax.f32 %v3101, %v3189
      %v3230 = vmax.f32 %v3102, %v3192
      %v3231 = vmax.f32 %v3103, %v3195
      %v3232 = vmax.f32 %v3104, %v3198
      %v3233 = vmax.f32 %v3105, %v3201
      %v3234 = vsub.f32 %v3074, %v3202
      %v3235 = vsub.f32 %v3075, %v3203
      %v3236 = vsub.f32 %v3076, %v3204
      %v3237 = vsub.f32 %v3077, %v3205
      %v3238 = vsub.f32 %v3078, %v3206
      %v3239 = vsub.f32 %v3079, %v3207
      %v3240 = vsub.f32 %v3080, %v3208
      %v3241 = vsub.f32 %v3081, %v3209
      %v3242 = vsub.f32 %v3082, %v3210
      %v3243 = vsub.f32 %v3083, %v3211
      %v3244 = vsub.f32 %v3084, %v3212
      %v3245 = vsub.f32 %v3085, %v3213
      %v3246 = vsub.f32 %v3086, %v3214
      %v3247 = vsub.f32 %v3087, %v3215
      %v3248 = vsub.f32 %v3088, %v3216
      %v3249 = vsub.f32 %v3089, %v3217
      %v3250 = vsub.f32 %v3090, %v3218
      %v3251 = vsub.f32 %v3091, %v3219
      %v3252 = vsub.f32 %v3092, %v3220
      %v3253 = vsub.f32 %v3093, %v3221
      %v3254 = vsub.f32 %v3094, %v3222
      %v3255 = vsub.f32 %v3095, %v3223
      %v3256 = vsub.f32 %v3096, %v3224
      %v3257 = vsub.f32 %v3097, %v3225
      %v3258 = vsub.f32 %v3098, %v3226
      %v3259 = vsub.f32 %v3099, %v3227
      %v3260 = vsub.f32 %v3100, %v3228
      %v3261 = vsub.f32 %v3101, %v3229
      %v3262 = vsub.f32 %v3102, %v3230
      %v3263 = vsub.f32 %v3103, %v3231
      %v3264 = vsub.f32 %v3104, %v3232
      %v3265 = vsub.f32 %v3105, %v3233
      %v3266 = vmul.f32 %v3234, 1.442695
      %v3267 = vpow.pop %v3266
      %v3268 = vmul.f32 %v3235, 1.442695
      %v3269 = vpow.pop %v3268
      %v3270 = vmul.f32 %v3236, 1.442695
      %v3271 = vpow.pop %v3270
      %v3272 = vmul.f32 %v3237, 1.442695
      %v3273 = vpow.pop %v3272
      %v3274 = vmul.f32 %v3238, 1.442695
      %v3275 = vpow.pop %v3274
      %v3276 = vmul.f32 %v3239, 1.442695
      %v3277 = vpow.pop %v3276
      %v3278 = vmul.f32 %v3240, 1.442695
      %v3279 = vpow.pop %v3278
      %v3280 = vmul.f32 %v3241, 1.442695
      %v3281 = vpow.pop %v3280
      %v3282 = vmul.f32 %v3242, 1.442695
      %v3283 = vpow.pop %v3282
      %v3284 = vmul.f32 %v3243, 1.442695
      %v3285 = vpow.pop %v3284
      %v3286 = vmul.f32 %v3244, 1.442695
      %v3287 = vpow.pop %v3286
      %v3288 = vmul.f32 %v3245, 1.442695
      %v3289 = vpow.pop %v3288
      %v3290 = vmul.f32 %v3246, 1.442695
      %v3291 = vpow.pop %v3290
      %v3292 = vmul.f32 %v3247, 1.442695
      %v3293 = vpow.pop %v3292
      %v3294 = vmul.f32 %v3248, 1.442695
      %v3295 = vpow.pop %v3294
      %v3296 = vmul.f32 %v3249, 1.442695
      %v3297 = vpow.pop %v3296
      %v3298 = vmul.f32 %v3250, 1.442695
      %v3299 = vpow.pop %v3298
      %v3300 = vmul.f32 %v3251, 1.442695
      %v3301 = vpow.pop %v3300
      %v3302 = vmul.f32 %v3252, 1.442695
      %v3303 = vpow.pop %v3302
      %v3304 = vmul.f32 %v3253, 1.442695
      %v3305 = vpow.pop %v3304
      %v3306 = vmul.f32 %v3254, 1.442695
      %v3307 = vpow.pop %v3306
      %v3308 = vmul.f32 %v3255, 1.442695
      %v3309 = vpow.pop %v3308
      %v3310 = vmul.f32 %v3256, 1.442695
      %v3311 = vpow.pop %v3310
      %v3312 = vmul.f32 %v3257, 1.442695
      %v3313 = vpow.pop %v3312
      %v3314 = vmul.f32 %v3258, 1.442695
      %v3315 = vpow.pop %v3314
      %v3316 = vmul.f32 %v3259, 1.442695
      %v3317 = vpow.pop %v3316
      %v3318 = vmul.f32 %v3260, 1.442695
      %v3319 = vpow.pop %v3318
      %v3320 = vmul.f32 %v3261, 1.442695
      %v3321 = vpow.pop %v3320
      %v3322 = vmul.f32 %v3262, 1.442695
      %v3323 = vpow.pop %v3322
      %v3324 = vmul.f32 %v3263, 1.442695
      %v3325 = vpow.pop %v3324
      %v3326 = vmul.f32 %v3264, 1.442695
      %v3327 = vpow.pop %v3326
      %v3328 = vmul.f32 %v3265, 1.442695
      %v3329 = vpow.pop %v3328
      %3331 = vset.pattern.permute.xlu0 0
      %3332 = vperm.xlu0 %3331, %v3202
      %v3333 = vpop.permute.xlu0 %3332
      %3336 = vset.pattern.permute.xlu0 0
      %3337 = vperm.xlu0 %3336, %v3203
      %v3338 = vpop.permute.xlu0 %3337
      %3341 = vset.pattern.permute.xlu0 0
      %3342 = vperm.xlu0 %3341, %v3204
      %v3343 = vpop.permute.xlu0 %3342
      %3346 = vset.pattern.permute.xlu0 0
      %3347 = vperm.xlu0 %3346, %v3205
      %v3348 = vpop.permute.xlu0 %3347
      %3351 = vset.pattern.permute.xlu0 0
      %3352 = vperm.xlu0 %3351, %v3206
      %v3353 = vpop.permute.xlu0 %3352
      %3356 = vset.pattern.permute.xlu0 0
      %3357 = vperm.xlu0 %3356, %v3207
      %v3358 = vpop.permute.xlu0 %3357
      %3361 = vset.pattern.permute.xlu0 0
      %3362 = vperm.xlu0 %3361, %v3208
      %v3363 = vpop.permute.xlu0 %3362
      %3366 = vset.pattern.permute.xlu0 0
      %3367 = vperm.xlu0 %3366, %v3209
      %v3368 = vpop.permute.xlu0 %3367
      %3371 = vset.pattern.permute.xlu0 0
      %3372 = vperm.xlu0 %3371, %v3210
      %v3373 = vpop.permute.xlu0 %3372
      %3376 = vset.pattern.permute.xlu0 0
      %3377 = vperm.xlu0 %3376, %v3211
      %v3378 = vpop.permute.xlu0 %3377
      %3381 = vset.pattern.permute.xlu0 0
      %3382 = vperm.xlu0 %3381, %v3212
      %v3383 = vpop.permute.xlu0 %3382
      %3386 = vset.pattern.permute.xlu0 0
      %3387 = vperm.xlu0 %3386, %v3213
      %v3388 = vpop.permute.xlu0 %3387
      %3391 = vset.pattern.permute.xlu0 0
      %3392 = vperm.xlu0 %3391, %v3214
      %v3393 = vpop.permute.xlu0 %3392
      %3396 = vset.pattern.permute.xlu0 0
      %3397 = vperm.xlu0 %3396, %v3215
      %v3398 = vpop.permute.xlu0 %3397
      %3401 = vset.pattern.permute.xlu0 0
      %3402 = vperm.xlu0 %3401, %v3216
      %v3403 = vpop.permute.xlu0 %3402
      %3406 = vset.pattern.permute.xlu0 0
      %3407 = vperm.xlu0 %3406, %v3217
      %v3408 = vpop.permute.xlu0 %3407
      %3411 = vset.pattern.permute.xlu0 0
      %3412 = vperm.xlu0 %3411, %v3218
      %v3413 = vpop.permute.xlu0 %3412
      %3416 = vset.pattern.permute.xlu0 0
      %3417 = vperm.xlu0 %3416, %v3219
      %v3418 = vpop.permute.xlu0 %3417
      %3421 = vset.pattern.permute.xlu0 0
      %3422 = vperm.xlu0 %3421, %v3220
      %v3423 = vpop.permute.xlu0 %3422
      %3426 = vset.pattern.permute.xlu0 0
      %3427 = vperm.xlu0 %3426, %v3221
      %v3428 = vpop.permute.xlu0 %3427
      %3431 = vset.pattern.permute.xlu0 0
      %3432 = vperm.xlu0 %3431, %v3222
      %v3433 = vpop.permute.xlu0 %3432
      %3436 = vset.pattern.permute.xlu0 0
      %3437 = vperm.xlu0 %3436, %v3223
      %v3438 = vpop.permute.xlu0 %3437
      %3441 = vset.pattern.permute.xlu0 0
      %3442 = vperm.xlu0 %3441, %v3224
      %v3443 = vpop.permute.xlu0 %3442
      %3446 = vset.pattern.permute.xlu0 0
      %3447 = vperm.xlu0 %3446, %v3225
      %v3448 = vpop.permute.xlu0 %3447
      %3451 = vset.pattern.permute.xlu0 0
      %3452 = vperm.xlu0 %3451, %v3226
      %v3453 = vpop.permute.xlu0 %3452
      %3456 = vset.pattern.permute.xlu0 0
      %3457 = vperm.xlu0 %3456, %v3227
      %v3458 = vpop.permute.xlu0 %3457
      %3461 = vset.pattern.permute.xlu0 0
      %3462 = vperm.xlu0 %3461, %v3228
      %v3463 = vpop.permute.xlu0 %3462
      %3466 = vset.pattern.permute.xlu0 0
      %3467 = vperm.xlu0 %3466, %v3229
      %v3468 = vpop.permute.xlu0 %3467
      %3471 = vset.pattern.permute.xlu0 0
      %3472 = vperm.xlu0 %3471, %v3230
      %v3473 = vpop.permute.xlu0 %3472
      %3476 = vset.pattern.permute.xlu0 0
      %3477 = vperm.xlu0 %3476, %v3231
      %v3478 = vpop.permute.xlu0 %3477
      %3481 = vset.pattern.permute.xlu0 0
      %3482 = vperm.xlu0 %3481, %v3232
      %v3483 = vpop.permute.xlu0 %3482
      %3486 = vset.pattern.permute.xlu0 0
      %3487 = vperm.xlu0 %3486, %v3233
      %v3488 = vpop.permute.xlu0 %3487
      %v3490 = vsub.f32 %v765, %v3333
      %v3491 = vsub.f32 %v767, %v3333
      %v3492 = vsub.f32 %v769, %v3338
      %v3493 = vsub.f32 %v771, %v3338
      %v3494 = vsub.f32 %v775, %v3343
      %v3495 = vsub.f32 %v777, %v3343
      %v3496 = vsub.f32 %v779, %v3348
      %v3497 = vsub.f32 %v781, %v3348
      %v3498 = vsub.f32 %v785, %v3353
      %v3499 = vsub.f32 %v787, %v3353
      %v3500 = vsub.f32 %v789, %v3358
      %v3501 = vsub.f32 %v791, %v3358
      %v3502 = vsub.f32 %v795, %v3363
      %v3503 = vsub.f32 %v797, %v3363
      %v3504 = vsub.f32 %v799, %v3368
      %v3505 = vsub.f32 %v801, %v3368
      %v3506 = vsub.f32 %v805, %v3373
      %v3507 = vsub.f32 %v807, %v3373
      %v3508 = vsub.f32 %v809, %v3378
      %v3509 = vsub.f32 %v811, %v3378
      %v3510 = vsub.f32 %v815, %v3383
      %v3511 = vsub.f32 %v817, %v3383
      %v3512 = vsub.f32 %v819, %v3388
      %v3513 = vsub.f32 %v821, %v3388
      %v3514 = vsub.f32 %v825, %v3393
      %v3515 = vsub.f32 %v827, %v3393
      %v3516 = vsub.f32 %v829, %v3398
      %v3517 = vsub.f32 %v831, %v3398
      %v3518 = vsub.f32 %v835, %v3403
      %v3519 = vsub.f32 %v837, %v3403
      %v3520 = vsub.f32 %v839, %v3408
      %v3521 = vsub.f32 %v841, %v3408
      %v3522 = vsub.f32 %v845, %v3413
      %v3523 = vsub.f32 %v847, %v3413
      %v3524 = vsub.f32 %v849, %v3418
      %v3525 = vsub.f32 %v851, %v3418
      %v3526 = vsub.f32 %v855, %v3423
      %v3527 = vsub.f32 %v857, %v3423
      %v3528 = vsub.f32 %v859, %v3428
      %v3529 = vsub.f32 %v861, %v3428
      %v3530 = vsub.f32 %v865, %v3433
      %v3531 = vsub.f32 %v867, %v3433
      %v3532 = vsub.f32 %v869, %v3438
      %v3533 = vsub.f32 %v871, %v3438
      %v3534 = vsub.f32 %v875, %v3443
      %v3535 = vsub.f32 %v877, %v3443
      %v3536 = vsub.f32 %v879, %v3448
      %v3537 = vsub.f32 %v881, %v3448
      %v3538 = vsub.f32 %v885, %v3453
      %v3539 = vsub.f32 %v887, %v3453
      %v3540 = vsub.f32 %v889, %v3458
      %v3541 = vsub.f32 %v891, %v3458
      %v3542 = vsub.f32 %v895, %v3463
      %v3543 = vsub.f32 %v897, %v3463
      %v3544 = vsub.f32 %v899, %v3468
      %v3545 = vsub.f32 %v901, %v3468
      %v3546 = vsub.f32 %v905, %v3473
      %v3547 = vsub.f32 %v907, %v3473
      %v3548 = vsub.f32 %v909, %v3478
      %v3549 = vsub.f32 %v911, %v3478
      %v3550 = vsub.f32 %v915, %v3483
      %v3551 = vsub.f32 %v917, %v3483
      %v3552 = vsub.f32 %v919, %v3488
      %v3553 = vsub.f32 %v921, %v3488
      %v3554 = vmul.f32 %v3490, 1.442695
      %v3555 = vpow.pop %v3554
      %v3556 = vmul.f32 %v3491, 1.442695
      %v3557 = vpow.pop %v3556
      %v3558 = vmul.f32 %v3492, 1.442695
      %v3559 = vpow.pop %v3558
      %v3560 = vmul.f32 %v3493, 1.442695
      %v3561 = vpow.pop %v3560
      %v3562 = vmul.f32 %v3494, 1.442695
      %v3563 = vpow.pop %v3562
      %v3564 = vmul.f32 %v3495, 1.442695
      %v3565 = vpow.pop %v3564
      %v3566 = vmul.f32 %v3496, 1.442695
      %v3567 = vpow.pop %v3566
      %v3568 = vmul.f32 %v3497, 1.442695
      %v3569 = vpow.pop %v3568
      %v3570 = vmul.f32 %v3498, 1.442695
      %v3571 = vpow.pop %v3570
      %v3572 = vmul.f32 %v3499, 1.442695
      %v3573 = vpow.pop %v3572
      %v3574 = vmul.f32 %v3500, 1.442695
      %v3575 = vpow.pop %v3574
      %v3576 = vmul.f32 %v3501, 1.442695
      %v3577 = vpow.pop %v3576
      %v3578 = vmul.f32 %v3502, 1.442695
      %v3579 = vpow.pop %v3578
      %v3580 = vmul.f32 %v3503, 1.442695
      %v3581 = vpow.pop %v3580
      %v3582 = vmul.f32 %v3504, 1.442695
      %v3583 = vpow.pop %v3582
      %v3584 = vmul.f32 %v3505, 1.442695
      %v3585 = vpow.pop %v3584
      %v3586 = vmul.f32 %v3506, 1.442695
      %v3587 = vpow.pop %v3586
      %v3588 = vmul.f32 %v3507, 1.442695
      %v3589 = vpow.pop %v3588
      %v3590 = vmul.f32 %v3508, 1.442695
      %v3591 = vpow.pop %v3590
      %v3592 = vmul.f32 %v3509, 1.442695
      %v3593 = vpow.pop %v3592
      %v3594 = vmul.f32 %v3510, 1.442695
      %v3595 = vpow.pop %v3594
      %v3596 = vmul.f32 %v3511, 1.442695
      %v3597 = vpow.pop %v3596
      %v3598 = vmul.f32 %v3512, 1.442695
      %v3599 = vpow.pop %v3598
      %v3600 = vmul.f32 %v3513, 1.442695
      %v3601 = vpow.pop %v3600
      %v3602 = vmul.f32 %v3514, 1.442695
      %v3603 = vpow.pop %v3602
      %v3604 = vmul.f32 %v3515, 1.442695
      %v3605 = vpow.pop %v3604
      %v3606 = vmul.f32 %v3516, 1.442695
      %v3607 = vpow.pop %v3606
      %v3608 = vmul.f32 %v3517, 1.442695
      %v3609 = vpow.pop %v3608
      %v3610 = vmul.f32 %v3518, 1.442695
      %v3611 = vpow.pop %v3610
      %v3612 = vmul.f32 %v3519, 1.442695
      %v3613 = vpow.pop %v3612
      %v3614 = vmul.f32 %v3520, 1.442695
      %v3615 = vpow.pop %v3614
      %v3616 = vmul.f32 %v3521, 1.442695
      %v3617 = vpow.pop %v3616
      %v3618 = vmul.f32 %v3522, 1.442695
      %v3619 = vpow.pop %v3618
      %v3620 = vmul.f32 %v3523, 1.442695
      %v3621 = vpow.pop %v3620
      %v3622 = vmul.f32 %v3524, 1.442695
      %v3623 = vpow.pop %v3622
      %v3624 = vmul.f32 %v3525, 1.442695
      %v3625 = vpow.pop %v3624
      %v3626 = vmul.f32 %v3526, 1.442695
      %v3627 = vpow.pop %v3626
      %v3628 = vmul.f32 %v3527, 1.442695
      %v3629 = vpow.pop %v3628
      %v3630 = vmul.f32 %v3528, 1.442695
      %v3631 = vpow.pop %v3630
      %v3632 = vmul.f32 %v3529, 1.442695
      %v3633 = vpow.pop %v3632
      %v3634 = vmul.f32 %v3530, 1.442695
      %v3635 = vpow.pop %v3634
      %v3636 = vmul.f32 %v3531, 1.442695
      %v3637 = vpow.pop %v3636
      %v3638 = vmul.f32 %v3532, 1.442695
      %v3639 = vpow.pop %v3638
      %v3640 = vmul.f32 %v3533, 1.442695
      %v3641 = vpow.pop %v3640
      %v3642 = vmul.f32 %v3534, 1.442695
      %v3643 = vpow.pop %v3642
      %v3644 = vmul.f32 %v3535, 1.442695
      %v3645 = vpow.pop %v3644
      %v3646 = vmul.f32 %v3536, 1.442695
      %v3647 = vpow.pop %v3646
      %v3648 = vmul.f32 %v3537, 1.442695
      %v3649 = vpow.pop %v3648
      %v3650 = vmul.f32 %v3538, 1.442695
      %v3651 = vpow.pop %v3650
      %v3652 = vmul.f32 %v3539, 1.442695
      %v3653 = vpow.pop %v3652
      %v3654 = vmul.f32 %v3540, 1.442695
      %v3655 = vpow.pop %v3654
      %v3656 = vmul.f32 %v3541, 1.442695
      %v3657 = vpow.pop %v3656
      %v3658 = vmul.f32 %v3542, 1.442695
      %v3659 = vpow.pop %v3658
      %v3660 = vmul.f32 %v3543, 1.442695
      %v3661 = vpow.pop %v3660
      %v3662 = vmul.f32 %v3544, 1.442695
      %v3663 = vpow.pop %v3662
      %v3664 = vmul.f32 %v3545, 1.442695
      %v3665 = vpow.pop %v3664
      %v3666 = vmul.f32 %v3546, 1.442695
      %v3667 = vpow.pop %v3666
      %v3668 = vmul.f32 %v3547, 1.442695
      %v3669 = vpow.pop %v3668
      %v3670 = vmul.f32 %v3548, 1.442695
      %v3671 = vpow.pop %v3670
      %v3672 = vmul.f32 %v3549, 1.442695
      %v3673 = vpow.pop %v3672
      %v3674 = vmul.f32 %v3550, 1.442695
      %v3675 = vpow.pop %v3674
      %v3676 = vmul.f32 %v3551, 1.442695
      %v3677 = vpow.pop %v3676
      %v3678 = vmul.f32 %v3552, 1.442695
      %v3679 = vpow.pop %v3678
      %v3680 = vmul.f32 %v3553, 1.442695
      %v3681 = vpow.pop %v3680
      %v3682 = vld [vmem:[#allocation4] sm:$0xff]
      %v3683 = vld [vmem:[#allocation4 + $0x8] sm:$0xff]
      %v3684 = vld [vmem:[#allocation4 + $0x10] sm:$0xff]
      %v3685 = vld [vmem:[#allocation4 + $0x18] sm:$0xff]
      %v3686 = vld [vmem:[#allocation4 + $0x20] sm:$0xff]
      %v3687 = vld [vmem:[#allocation4 + $0x28] sm:$0xff]
      %v3688 = vld [vmem:[#allocation4 + $0x30] sm:$0xff]
      %v3689 = vld [vmem:[#allocation4 + $0x38] sm:$0xff]
      %v3690 = vld [vmem:[#allocation4 + $0x40] sm:$0xff]
      %v3691 = vld [vmem:[#allocation4 + $0x48] sm:$0xff]
      %v3692 = vld [vmem:[#allocation4 + $0x50] sm:$0xff]
      %v3693 = vld [vmem:[#allocation4 + $0x58] sm:$0xff]
      %v3694 = vld [vmem:[#allocation4 + $0x60] sm:$0xff]
      %v3695 = vld [vmem:[#allocation4 + $0x68] sm:$0xff]
      %v3696 = vld [vmem:[#allocation4 + $0x70] sm:$0xff]
      %v3697 = vld [vmem:[#allocation4 + $0x78] sm:$0xff]
      %v3698 = vld [vmem:[#allocation4 + $0x80] sm:$0xff]
      %v3699 = vld [vmem:[#allocation4 + $0x88] sm:$0xff]
      %v3700 = vld [vmem:[#allocation4 + $0x90] sm:$0xff]
      %v3701 = vld [vmem:[#allocation4 + $0x98] sm:$0xff]
      %v3702 = vld [vmem:[#allocation4 + $0xa0] sm:$0xff]
      %v3703 = vld [vmem:[#allocation4 + $0xa8] sm:$0xff]
      %v3704 = vld [vmem:[#allocation4 + $0xb0] sm:$0xff]
      %v3705 = vld [vmem:[#allocation4 + $0xb8] sm:$0xff]
      %v3706 = vld [vmem:[#allocation4 + $0xc0] sm:$0xff]
      %v3707 = vld [vmem:[#allocation4 + $0xc8] sm:$0xff]
      %v3708 = vld [vmem:[#allocation4 + $0xd0] sm:$0xff]
      %v3709 = vld [vmem:[#allocation4 + $0xd8] sm:$0xff]
      %v3710 = vld [vmem:[#allocation4 + $0xe0] sm:$0xff]
      %v3711 = vld [vmem:[#allocation4 + $0xe8] sm:$0xff]
      %v3712 = vld [vmem:[#allocation4 + $0xf0] sm:$0xff]
      %v3713 = vld [vmem:[#allocation4 + $0xf8] sm:$0xff]
      %v3714 = vmul.f32 %v3267, %v3682
      %v3715 = vmul.f32 %v3269, %v3683
      %v3716 = vmul.f32 %v3271, %v3684
      %v3717 = vmul.f32 %v3273, %v3685
      %v3718 = vmul.f32 %v3275, %v3686
      %v3719 = vmul.f32 %v3277, %v3687
      %v3720 = vmul.f32 %v3279, %v3688
      %v3721 = vmul.f32 %v3281, %v3689
      %v3722 = vmul.f32 %v3283, %v3690
      %v3723 = vmul.f32 %v3285, %v3691
      %v3724 = vmul.f32 %v3287, %v3692
      %v3725 = vmul.f32 %v3289, %v3693
      %v3726 = vmul.f32 %v3291, %v3694
      %v3727 = vmul.f32 %v3293, %v3695
      %v3728 = vmul.f32 %v3295, %v3696
      %v3729 = vmul.f32 %v3297, %v3697
      %v3730 = vmul.f32 %v3299, %v3698
      %v3731 = vmul.f32 %v3301, %v3699
      %v3732 = vmul.f32 %v3303, %v3700
      %v3733 = vmul.f32 %v3305, %v3701
      %v3734 = vmul.f32 %v3307, %v3702
      %v3735 = vmul.f32 %v3309, %v3703
      %v3736 = vmul.f32 %v3311, %v3704
      %v3737 = vmul.f32 %v3313, %v3705
      %v3738 = vmul.f32 %v3315, %v3706
      %v3739 = vmul.f32 %v3317, %v3707
      %v3740 = vmul.f32 %v3319, %v3708
      %v3741 = vmul.f32 %v3321, %v3709
      %v3742 = vmul.f32 %v3323, %v3710
      %v3743 = vmul.f32 %v3325, %v3711
      %v3744 = vmul.f32 %v3327, %v3712
      %v3745 = vmul.f32 %v3329, %v3713
      %v3746 = vadd.f32 %v3555, %v3557
      %3747 = vadd.xlane.f32.xlu0 %v3746
      %v3748 = vpop.xlane.xlu0 %3747
      %v3749 = vadd.f32 %v3559, %v3561
      %3750 = vadd.xlane.f32.xlu0 %v3749
      %v3751 = vpop.xlane.xlu0 %3750
      %v3752 = vadd.f32 %v3563, %v3565
      %3753 = vadd.xlane.f32.xlu0 %v3752
      %v3754 = vpop.xlane.xlu0 %3753
      %v3755 = vadd.f32 %v3567, %v3569
      %3756 = vadd.xlane.f32.xlu0 %v3755
      %v3757 = vpop.xlane.xlu0 %3756
      %v3758 = vadd.f32 %v3571, %v3573
      %3759 = vadd.xlane.f32.xlu0 %v3758
      %v3760 = vpop.xlane.xlu0 %3759
      %v3761 = vadd.f32 %v3575, %v3577
      %3762 = vadd.xlane.f32.xlu0 %v3761
      %v3763 = vpop.xlane.xlu0 %3762
      %v3764 = vadd.f32 %v3579, %v3581
      %3765 = vadd.xlane.f32.xlu0 %v3764
      %v3766 = vpop.xlane.xlu0 %3765
      %v3767 = vadd.f32 %v3583, %v3585
      %3768 = vadd.xlane.f32.xlu0 %v3767
      %v3769 = vpop.xlane.xlu0 %3768
      %v3770 = vadd.f32 %v3587, %v3589
      %3771 = vadd.xlane.f32.xlu0 %v3770
      %v3772 = vpop.xlane.xlu0 %3771
      %v3773 = vadd.f32 %v3591, %v3593
      %3774 = vadd.xlane.f32.xlu0 %v3773
      %v3775 = vpop.xlane.xlu0 %3774
      %v3776 = vadd.f32 %v3595, %v3597
      %3777 = vadd.xlane.f32.xlu0 %v3776
      %v3778 = vpop.xlane.xlu0 %3777
      %v3779 = vadd.f32 %v3599, %v3601
      %3780 = vadd.xlane.f32.xlu0 %v3779
      %v3781 = vpop.xlane.xlu0 %3780
      %v3782 = vadd.f32 %v3603, %v3605
      %3783 = vadd.xlane.f32.xlu0 %v3782
      %v3784 = vpop.xlane.xlu0 %3783
      %v3785 = vadd.f32 %v3607, %v3609
      %3786 = vadd.xlane.f32.xlu0 %v3785
      %v3787 = vpop.xlane.xlu0 %3786
      %v3788 = vadd.f32 %v3611, %v3613
      %3789 = vadd.xlane.f32.xlu0 %v3788
      %v3790 = vpop.xlane.xlu0 %3789
      %v3791 = vadd.f32 %v3615, %v3617
      %3792 = vadd.xlane.f32.xlu0 %v3791
      %v3793 = vpop.xlane.xlu0 %3792
      %v3794 = vadd.f32 %v3619, %v3621
      %3795 = vadd.xlane.f32.xlu0 %v3794
      %v3796 = vpop.xlane.xlu0 %3795
      %v3797 = vadd.f32 %v3623, %v3625
      %3798 = vadd.xlane.f32.xlu0 %v3797
      %v3799 = vpop.xlane.xlu0 %3798
      %v3800 = vadd.f32 %v3627, %v3629
      %3801 = vadd.xlane.f32.xlu0 %v3800
      %v3802 = vpop.xlane.xlu0 %3801
      %v3803 = vadd.f32 %v3631, %v3633
      %3804 = vadd.xlane.f32.xlu0 %v3803
      %v3805 = vpop.xlane.xlu0 %3804
      %v3806 = vadd.f32 %v3635, %v3637
      %3807 = vadd.xlane.f32.xlu0 %v3806
      %v3808 = vpop.xlane.xlu0 %3807
      %v3809 = vadd.f32 %v3639, %v3641
      %3810 = vadd.xlane.f32.xlu0 %v3809
      %v3811 = vpop.xlane.xlu0 %3810
      %v3812 = vadd.f32 %v3643, %v3645
      %3813 = vadd.xlane.f32.xlu0 %v3812
      %v3814 = vpop.xlane.xlu0 %3813
      %v3815 = vadd.f32 %v3647, %v3649
      %3816 = vadd.xlane.f32.xlu0 %v3815
      %v3817 = vpop.xlane.xlu0 %3816
      %v3818 = vadd.f32 %v3651, %v3653
      %3819 = vadd.xlane.f32.xlu0 %v3818
      %v3820 = vpop.xlane.xlu0 %3819
      %v3821 = vadd.f32 %v3655, %v3657
      %3822 = vadd.xlane.f32.xlu0 %v3821
      %v3823 = vpop.xlane.xlu0 %3822
      %v3824 = vadd.f32 %v3659, %v3661
      %3825 = vadd.xlane.f32.xlu0 %v3824
      %v3826 = vpop.xlane.xlu0 %3825
      %v3827 = vadd.f32 %v3663, %v3665
      %3828 = vadd.xlane.f32.xlu0 %v3827
      %v3829 = vpop.xlane.xlu0 %3828
      %v3830 = vadd.f32 %v3667, %v3669
      %3831 = vadd.xlane.f32.xlu0 %v3830
      %v3832 = vpop.xlane.xlu0 %3831
      %v3833 = vadd.f32 %v3671, %v3673
      %3834 = vadd.xlane.f32.xlu0 %v3833
      %v3835 = vpop.xlane.xlu0 %3834
      %v3836 = vadd.f32 %v3675, %v3677
      %3837 = vadd.xlane.f32.xlu0 %v3836
      %v3838 = vpop.xlane.xlu0 %3837
      %v3839 = vadd.f32 %v3679, %v3681
      %3840 = vadd.xlane.f32.xlu0 %v3839
      %v3841 = vpop.xlane.xlu0 %3840
      %v3842 = vadd.f32 %v3714, %v3748
      %v3843 = vadd.f32 %v3715, %v3751
      %v3844 = vadd.f32 %v3716, %v3754
      %v3845 = vadd.f32 %v3717, %v3757
      %v3846 = vadd.f32 %v3718, %v3760
      %v3847 = vadd.f32 %v3719, %v3763
      %v3848 = vadd.f32 %v3720, %v3766
      %v3849 = vadd.f32 %v3721, %v3769
      %v3850 = vadd.f32 %v3722, %v3772
      %v3851 = vadd.f32 %v3723, %v3775
      %v3852 = vadd.f32 %v3724, %v3778
      %v3853 = vadd.f32 %v3725, %v3781
      %v3854 = vadd.f32 %v3726, %v3784
      %v3855 = vadd.f32 %v3727, %v3787
      %v3856 = vadd.f32 %v3728, %v3790
      %v3857 = vadd.f32 %v3729, %v3793
      %v3858 = vadd.f32 %v3730, %v3796
      %v3859 = vadd.f32 %v3731, %v3799
      %v3860 = vadd.f32 %v3732, %v3802
      %v3861 = vadd.f32 %v3733, %v3805
      %v3862 = vadd.f32 %v3734, %v3808
      %v3863 = vadd.f32 %v3735, %v3811
      %v3864 = vadd.f32 %v3736, %v3814
      %v3865 = vadd.f32 %v3737, %v3817
      %v3866 = vadd.f32 %v3738, %v3820
      %v3867 = vadd.f32 %v3739, %v3823
      %v3868 = vadd.f32 %v3740, %v3826
      %v3869 = vadd.f32 %v3741, %v3829
      %v3870 = vadd.f32 %v3742, %v3832
      %v3871 = vadd.f32 %v3743, %v3835
      %v3872 = vadd.f32 %v3744, %v3838
      %v3873 = vadd.f32 %v3745, %v3841
      %vm3874 = vcmask 7168
      %3875 = vst.msk [vmem:[#allocation4] sm:$0xff] %vm3874, %v3842
      %3876 = vst.msk [vmem:[#allocation4 + $0x8] sm:$0xff] %vm3874, %v3843
      %3877 = vst.msk [vmem:[#allocation4 + $0x10] sm:$0xff] %vm3874, %v3844
      %3878 = vst.msk [vmem:[#allocation4 + $0x18] sm:$0xff] %vm3874, %v3845
      %3879 = vst.msk [vmem:[#allocation4 + $0x20] sm:$0xff] %vm3874, %v3846
      %3880 = vst.msk [vmem:[#allocation4 + $0x28] sm:$0xff] %vm3874, %v3847
      %3881 = vst.msk [vmem:[#allocation4 + $0x30] sm:$0xff] %vm3874, %v3848
      %3882 = vst.msk [vmem:[#allocation4 + $0x38] sm:$0xff] %vm3874, %v3849
      %3883 = vst.msk [vmem:[#allocation4 + $0x40] sm:$0xff] %vm3874, %v3850
      %3884 = vst.msk [vmem:[#allocation4 + $0x48] sm:$0xff] %vm3874, %v3851
      %3885 = vst.msk [vmem:[#allocation4 + $0x50] sm:$0xff] %vm3874, %v3852
      %3886 = vst.msk [vmem:[#allocation4 + $0x58] sm:$0xff] %vm3874, %v3853
      %3887 = vst.msk [vmem:[#allocation4 + $0x60] sm:$0xff] %vm3874, %v3854
      %3888 = vst.msk [vmem:[#allocation4 + $0x68] sm:$0xff] %vm3874, %v3855
      %3889 = vst.msk [vmem:[#allocation4 + $0x70] sm:$0xff] %vm3874, %v3856
      %3890 = vst.msk [vmem:[#allocation4 + $0x78] sm:$0xff] %vm3874, %v3857
      %3891 = vst.msk [vmem:[#allocation4 + $0x80] sm:$0xff] %vm3874, %v3858
      %3892 = vst.msk [vmem:[#allocation4 + $0x88] sm:$0xff] %vm3874, %v3859
      %3893 = vst.msk [vmem:[#allocation4 + $0x90] sm:$0xff] %vm3874, %v3860
      %3894 = vst.msk [vmem:[#allocation4 + $0x98] sm:$0xff] %vm3874, %v3861
      %3895 = vst.msk [vmem:[#allocation4 + $0xa0] sm:$0xff] %vm3874, %v3862
      %3896 = vst.msk [vmem:[#allocation4 + $0xa8] sm:$0xff] %vm3874, %v3863
      %3897 = vst.msk [vmem:[#allocation4 + $0xb0] sm:$0xff] %vm3874, %v3864
      %3898 = vst.msk [vmem:[#allocation4 + $0xb8] sm:$0xff] %vm3874, %v3865
      %3899 = vst.msk [vmem:[#allocation4 + $0xc0] sm:$0xff] %vm3874, %v3866
      %3900 = vst.msk [vmem:[#allocation4 + $0xc8] sm:$0xff] %vm3874, %v3867
      %3901 = vst.msk [vmem:[#allocation4 + $0xd0] sm:$0xff] %vm3874, %v3868
      %3902 = vst.msk [vmem:[#allocation4 + $0xd8] sm:$0xff] %vm3874, %v3869
      %3903 = vst.msk [vmem:[#allocation4 + $0xe0] sm:$0xff] %vm3874, %v3870
      %3904 = vst.msk [vmem:[#allocation4 + $0xe8] sm:$0xff] %vm3874, %v3871
      %3905 = vst.msk [vmem:[#allocation4 + $0xf0] sm:$0xff] %vm3874, %v3872
      %3906 = vst.msk [vmem:[#allocation4 + $0xf8] sm:$0xff] %vm3874, %v3873
      %v3907 = vmul.f32 %v1188, %v3490
      %v3908 = vmul.f32 %v1189, %v3491
      %v3909 = vmul.f32 %v1190, %v3492
      %v3910 = vmul.f32 %v1191, %v3493
      %v3911 = vmul.f32 %v1192, %v3494
      %v3912 = vmul.f32 %v1193, %v3495
      %v3913 = vmul.f32 %v1194, %v3496
      %v3914 = vmul.f32 %v1195, %v3497
      %v3915 = vmul.f32 %v1196, %v3498
      %v3916 = vmul.f32 %v1197, %v3499
      %v3917 = vmul.f32 %v1198, %v3500
      %v3918 = vmul.f32 %v1199, %v3501
      %v3919 = vmul.f32 %v1200, %v3502
      %v3920 = vmul.f32 %v1201, %v3503
      %v3921 = vmul.f32 %v1202, %v3504
      %v3922 = vmul.f32 %v1203, %v3505
      %v3923 = vmul.f32 %v1204, %v3506
      %v3924 = vmul.f32 %v1205, %v3507
      %v3925 = vmul.f32 %v1206, %v3508
      %v3926 = vmul.f32 %v1207, %v3509
      %v3927 = vmul.f32 %v1208, %v3510
      %v3928 = vmul.f32 %v1209, %v3511
      %v3929 = vmul.f32 %v1210, %v3512
      %v3930 = vmul.f32 %v1211, %v3513
      %v3931 = vmul.f32 %v1212, %v3514
      %v3932 = vmul.f32 %v1213, %v3515
      %v3933 = vmul.f32 %v1214, %v3516
      %v3934 = vmul.f32 %v1215, %v3517
      %v3935 = vmul.f32 %v1216, %v3518
      %v3936 = vmul.f32 %v1217, %v3519
      %v3937 = vmul.f32 %v1218, %v3520
      %v3938 = vmul.f32 %v1219, %v3521
      %v3939 = vmul.f32 %v1220, %v3522
      %v3940 = vmul.f32 %v1221, %v3523
      %v3941 = vmul.f32 %v1222, %v3524
      %v3942 = vmul.f32 %v1223, %v3525
      %v3943 = vmul.f32 %v1224, %v3526
      %v3944 = vmul.f32 %v1225, %v3527
      %v3945 = vmul.f32 %v1226, %v3528
      %v3946 = vmul.f32 %v1227, %v3529
      %v3947 = vmul.f32 %v1228, %v3530
      %v3948 = vmul.f32 %v1229, %v3531
      %v3949 = vmul.f32 %v1230, %v3532
      %v3950 = vmul.f32 %v1231, %v3533
      %v3951 = vmul.f32 %v1232, %v3534
      %v3952 = vmul.f32 %v1233, %v3535
      %v3953 = vmul.f32 %v1234, %v3536
      %v3954 = vmul.f32 %v1235, %v3537
      %v3955 = vmul.f32 %v1236, %v3538
      %v3956 = vmul.f32 %v1237, %v3539
      %v3957 = vmul.f32 %v1238, %v3540
      %v3958 = vmul.f32 %v1239, %v3541
      %v3959 = vmul.f32 %v1240, %v3542
      %v3960 = vmul.f32 %v1241, %v3543
      %v3961 = vmul.f32 %v1242, %v3544
      %v3962 = vmul.f32 %v1243, %v3545
      %v3963 = vmul.f32 %v1244, %v3546
      %v3964 = vmul.f32 %v1245, %v3547
      %v3965 = vmul.f32 %v1246, %v3548
      %v3966 = vmul.f32 %v1247, %v3549
      %v3967 = vmul.f32 %v1248, %v3550
      %v3968 = vmul.f32 %v1249, %v3551
      %v3969 = vmul.f32 %v1250, %v3552
      %v3970 = vmul.f32 %v1251, %v3553
      %v3971 = vadd.f32 %v3907, %v3908
      %3972 = vadd.xlane.f32.xlu0 %v3971
      %v3973 = vpop.xlane.xlu0 %3972
      %v3974 = vadd.f32 %v3909, %v3910
      %3975 = vadd.xlane.f32.xlu0 %v3974
      %v3976 = vpop.xlane.xlu0 %3975
      %v3977 = vadd.f32 %v3911, %v3912
      %3978 = vadd.xlane.f32.xlu0 %v3977
      %v3979 = vpop.xlane.xlu0 %3978
      %v3980 = vadd.f32 %v3913, %v3914
      %3981 = vadd.xlane.f32.xlu0 %v3980
      %v3982 = vpop.xlane.xlu0 %3981
      %v3983 = vadd.f32 %v3915, %v3916
      %3984 = vadd.xlane.f32.xlu0 %v3983
      %v3985 = vpop.xlane.xlu0 %3984
      %v3986 = vadd.f32 %v3917, %v3918
      %3987 = vadd.xlane.f32.xlu0 %v3986
      %v3988 = vpop.xlane.xlu0 %3987
      %v3989 = vadd.f32 %v3919, %v3920
      %3990 = vadd.xlane.f32.xlu0 %v3989
      %v3991 = vpop.xlane.xlu0 %3990
      %v3992 = vadd.f32 %v3921, %v3922
      %3993 = vadd.xlane.f32.xlu0 %v3992
      %v3994 = vpop.xlane.xlu0 %3993
      %v3995 = vadd.f32 %v3923, %v3924
      %3996 = vadd.xlane.f32.xlu0 %v3995
      %v3997 = vpop.xlane.xlu0 %3996
      %v3998 = vadd.f32 %v3925, %v3926
      %3999 = vadd.xlane.f32.xlu0 %v3998
      %v4000 = vpop.xlane.xlu0 %3999
      %v4001 = vadd.f32 %v3927, %v3928
      %4002 = vadd.xlane.f32.xlu0 %v4001
      %v4003 = vpop.xlane.xlu0 %4002
      %v4004 = vadd.f32 %v3929, %v3930
      %4005 = vadd.xlane.f32.xlu0 %v4004
      %v4006 = vpop.xlane.xlu0 %4005
      %v4007 = vadd.f32 %v3931, %v3932
      %4008 = vadd.xlane.f32.xlu0 %v4007
      %v4009 = vpop.xlane.xlu0 %4008
      %v4010 = vadd.f32 %v3933, %v3934
      %4011 = vadd.xlane.f32.xlu0 %v4010
      %v4012 = vpop.xlane.xlu0 %4011
      %v4013 = vadd.f32 %v3935, %v3936
      %4014 = vadd.xlane.f32.xlu0 %v4013
      %v4015 = vpop.xlane.xlu0 %4014
      %v4016 = vadd.f32 %v3937, %v3938
      %4017 = vadd.xlane.f32.xlu0 %v4016
      %v4018 = vpop.xlane.xlu0 %4017
      %v4019 = vadd.f32 %v3939, %v3940
      %4020 = vadd.xlane.f32.xlu0 %v4019
      %v4021 = vpop.xlane.xlu0 %4020
      %v4022 = vadd.f32 %v3941, %v3942
      %4023 = vadd.xlane.f32.xlu0 %v4022
      %v4024 = vpop.xlane.xlu0 %4023
      %v4025 = vadd.f32 %v3943, %v3944
      %4026 = vadd.xlane.f32.xlu0 %v4025
      %v4027 = vpop.xlane.xlu0 %4026
      %v4028 = vadd.f32 %v3945, %v3946
      %4029 = vadd.xlane.f32.xlu0 %v4028
      %v4030 = vpop.xlane.xlu0 %4029
      %v4031 = vadd.f32 %v3947, %v3948
      %4032 = vadd.xlane.f32.xlu0 %v4031
      %v4033 = vpop.xlane.xlu0 %4032
      %v4034 = vadd.f32 %v3949, %v3950
      %4035 = vadd.xlane.f32.xlu0 %v4034
      %v4036 = vpop.xlane.xlu0 %4035
      %v4037 = vadd.f32 %v3951, %v3952
      %4038 = vadd.xlane.f32.xlu0 %v4037
      %v4039 = vpop.xlane.xlu0 %4038
      %v4040 = vadd.f32 %v3953, %v3954
      %4041 = vadd.xlane.f32.xlu0 %v4040
      %v4042 = vpop.xlane.xlu0 %4041
      %v4043 = vadd.f32 %v3955, %v3956
      %4044 = vadd.xlane.f32.xlu0 %v4043
      %v4045 = vpop.xlane.xlu0 %4044
      %v4046 = vadd.f32 %v3957, %v3958
      %4047 = vadd.xlane.f32.xlu0 %v4046
      %v4048 = vpop.xlane.xlu0 %4047
      %v4049 = vadd.f32 %v3959, %v3960
      %4050 = vadd.xlane.f32.xlu0 %v4049
      %v4051 = vpop.xlane.xlu0 %4050
      %v4052 = vadd.f32 %v3961, %v3962
      %4053 = vadd.xlane.f32.xlu0 %v4052
      %v4054 = vpop.xlane.xlu0 %4053
      %v4055 = vadd.f32 %v3963, %v3964
      %4056 = vadd.xlane.f32.xlu0 %v4055
      %v4057 = vpop.xlane.xlu0 %4056
      %v4058 = vadd.f32 %v3965, %v3966
      %4059 = vadd.xlane.f32.xlu0 %v4058
      %v4060 = vpop.xlane.xlu0 %4059
      %v4061 = vadd.f32 %v3967, %v3968
      %4062 = vadd.xlane.f32.xlu0 %v4061
      %v4063 = vpop.xlane.xlu0 %4062
      %v4064 = vadd.f32 %v3969, %v3970
      %4065 = vadd.xlane.f32.xlu0 %v4064
      %v4066 = vpop.xlane.xlu0 %4065
      %v4067 = vld [vmem:[#allocation5] sm:$0xff]
      %v4068 = vld [vmem:[#allocation5 + $0x8] sm:$0xff]
      %v4069 = vld [vmem:[#allocation5 + $0x10] sm:$0xff]
      %v4070 = vld [vmem:[#allocation5 + $0x18] sm:$0xff]
      %v4071 = vld [vmem:[#allocation5 + $0x20] sm:$0xff]
      %v4072 = vld [vmem:[#allocation5 + $0x28] sm:$0xff]
      %v4073 = vld [vmem:[#allocation5 + $0x30] sm:$0xff]
      %v4074 = vld [vmem:[#allocation5 + $0x38] sm:$0xff]
      %v4075 = vld [vmem:[#allocation5 + $0x40] sm:$0xff]
      %v4076 = vld [vmem:[#allocation5 + $0x48] sm:$0xff]
      %v4077 = vld [vmem:[#allocation5 + $0x50] sm:$0xff]
      %v4078 = vld [vmem:[#allocation5 + $0x58] sm:$0xff]
      %v4079 = vld [vmem:[#allocation5 + $0x60] sm:$0xff]
      %v4080 = vld [vmem:[#allocation5 + $0x68] sm:$0xff]
      %v4081 = vld [vmem:[#allocation5 + $0x70] sm:$0xff]
      %v4082 = vld [vmem:[#allocation5 + $0x78] sm:$0xff]
      %v4083 = vld [vmem:[#allocation5 + $0x80] sm:$0xff]
      %v4084 = vld [vmem:[#allocation5 + $0x88] sm:$0xff]
      %v4085 = vld [vmem:[#allocation5 + $0x90] sm:$0xff]
      %v4086 = vld [vmem:[#allocation5 + $0x98] sm:$0xff]
      %v4087 = vld [vmem:[#allocation5 + $0xa0] sm:$0xff]
      %v4088 = vld [vmem:[#allocation5 + $0xa8] sm:$0xff]
      %v4089 = vld [vmem:[#allocation5 + $0xb0] sm:$0xff]
      %v4090 = vld [vmem:[#allocation5 + $0xb8] sm:$0xff]
      %v4091 = vld [vmem:[#allocation5 + $0xc0] sm:$0xff]
      %v4092 = vld [vmem:[#allocation5 + $0xc8] sm:$0xff]
      %v4093 = vld [vmem:[#allocation5 + $0xd0] sm:$0xff]
      %v4094 = vld [vmem:[#allocation5 + $0xd8] sm:$0xff]
      %v4095 = vld [vmem:[#allocation5 + $0xe0] sm:$0xff]
      %v4096 = vld [vmem:[#allocation5 + $0xe8] sm:$0xff]
      %v4097 = vld [vmem:[#allocation5 + $0xf0] sm:$0xff]
      %v4098 = vld [vmem:[#allocation5 + $0xf8] sm:$0xff]
      %v4099 = vld [vmem:[#allocation6] sm:$0xff]
      %v4100 = vld [vmem:[#allocation6 + $0x8] sm:$0xff]
      %v4101 = vld [vmem:[#allocation6 + $0x10] sm:$0xff]
      %v4102 = vld [vmem:[#allocation6 + $0x18] sm:$0xff]
      %v4103 = vld [vmem:[#allocation6 + $0x20] sm:$0xff]
      %v4104 = vld [vmem:[#allocation6 + $0x28] sm:$0xff]
      %v4105 = vld [vmem:[#allocation6 + $0x30] sm:$0xff]
      %v4106 = vld [vmem:[#allocation6 + $0x38] sm:$0xff]
      %v4107 = vld [vmem:[#allocation6 + $0x40] sm:$0xff]
      %v4108 = vld [vmem:[#allocation6 + $0x48] sm:$0xff]
      %v4109 = vld [vmem:[#allocation6 + $0x50] sm:$0xff]
      %v4110 = vld [vmem:[#allocation6 + $0x58] sm:$0xff]
      %v4111 = vld [vmem:[#allocation6 + $0x60] sm:$0xff]
      %v4112 = vld [vmem:[#allocation6 + $0x68] sm:$0xff]
      %v4113 = vld [vmem:[#allocation6 + $0x70] sm:$0xff]
      %v4114 = vld [vmem:[#allocation6 + $0x78] sm:$0xff]
      %v4115 = vld [vmem:[#allocation6 + $0x80] sm:$0xff]
      %v4116 = vld [vmem:[#allocation6 + $0x88] sm:$0xff]
      %v4117 = vld [vmem:[#allocation6 + $0x90] sm:$0xff]
      %v4118 = vld [vmem:[#allocation6 + $0x98] sm:$0xff]
      %v4119 = vld [vmem:[#allocation6 + $0xa0] sm:$0xff]
      %v4120 = vld [vmem:[#allocation6 + $0xa8] sm:$0xff]
      %v4121 = vld [vmem:[#allocation6 + $0xb0] sm:$0xff]
      %v4122 = vld [vmem:[#allocation6 + $0xb8] sm:$0xff]
      %v4123 = vld [vmem:[#allocation6 + $0xc0] sm:$0xff]
      %v4124 = vld [vmem:[#allocation6 + $0xc8] sm:$0xff]
      %v4125 = vld [vmem:[#allocation6 + $0xd0] sm:$0xff]
      %v4126 = vld [vmem:[#allocation6 + $0xd8] sm:$0xff]
      %v4127 = vld [vmem:[#allocation6 + $0xe0] sm:$0xff]
      %v4128 = vld [vmem:[#allocation6 + $0xe8] sm:$0xff]
      %v4129 = vld [vmem:[#allocation6 + $0xf0] sm:$0xff]
      %v4130 = vld [vmem:[#allocation6 + $0xf8] sm:$0xff]
      %v4131 = vmul.f32 %v4099, %v3234
      %v4132 = vmul.f32 %v4100, %v3235
      %v4133 = vmul.f32 %v4101, %v3236
      %v4134 = vmul.f32 %v4102, %v3237
      %v4135 = vmul.f32 %v4103, %v3238
      %v4136 = vmul.f32 %v4104, %v3239
      %v4137 = vmul.f32 %v4105, %v3240
      %v4138 = vmul.f32 %v4106, %v3241
      %v4139 = vmul.f32 %v4107, %v3242
      %v4140 = vmul.f32 %v4108, %v3243
      %v4141 = vmul.f32 %v4109, %v3244
      %v4142 = vmul.f32 %v4110, %v3245
      %v4143 = vmul.f32 %v4111, %v3246
      %v4144 = vmul.f32 %v4112, %v3247
      %v4145 = vmul.f32 %v4113, %v3248
      %v4146 = vmul.f32 %v4114, %v3249
      %v4147 = vmul.f32 %v4115, %v3250
      %v4148 = vmul.f32 %v4116, %v3251
      %v4149 = vmul.f32 %v4117, %v3252
      %v4150 = vmul.f32 %v4118, %v3253
      %v4151 = vmul.f32 %v4119, %v3254
      %v4152 = vmul.f32 %v4120, %v3255
      %v4153 = vmul.f32 %v4121, %v3256
      %v4154 = vmul.f32 %v4122, %v3257
      %v4155 = vmul.f32 %v4123, %v3258
      %v4156 = vmul.f32 %v4124, %v3259
      %v4157 = vmul.f32 %v4125, %v3260
      %v4158 = vmul.f32 %v4126, %v3261
      %v4159 = vmul.f32 %v4127, %v3262
      %v4160 = vmul.f32 %v4128, %v3263
      %v4161 = vmul.f32 %v4129, %v3264
      %v4162 = vmul.f32 %v4130, %v3265
      %v4163 = vadd.f32 %v4067, %v4131
      %v4164 = vadd.f32 %v4068, %v4132
      %v4165 = vadd.f32 %v4069, %v4133
      %v4166 = vadd.f32 %v4070, %v4134
      %v4167 = vadd.f32 %v4071, %v4135
      %v4168 = vadd.f32 %v4072, %v4136
      %v4169 = vadd.f32 %v4073, %v4137
      %v4170 = vadd.f32 %v4074, %v4138
      %v4171 = vadd.f32 %v4075, %v4139
      %v4172 = vadd.f32 %v4076, %v4140
      %v4173 = vadd.f32 %v4077, %v4141
      %v4174 = vadd.f32 %v4078, %v4142
      %v4175 = vadd.f32 %v4079, %v4143
      %v4176 = vadd.f32 %v4080, %v4144
      %v4177 = vadd.f32 %v4081, %v4145
      %v4178 = vadd.f32 %v4082, %v4146
      %v4179 = vadd.f32 %v4083, %v4147
      %v4180 = vadd.f32 %v4084, %v4148
      %v4181 = vadd.f32 %v4085, %v4149
      %v4182 = vadd.f32 %v4086, %v4150
      %v4183 = vadd.f32 %v4087, %v4151
      %v4184 = vadd.f32 %v4088, %v4152
      %v4185 = vadd.f32 %v4089, %v4153
      %v4186 = vadd.f32 %v4090, %v4154
      %v4187 = vadd.f32 %v4091, %v4155
      %v4188 = vadd.f32 %v4092, %v4156
      %v4189 = vadd.f32 %v4093, %v4157
      %v4190 = vadd.f32 %v4094, %v4158
      %v4191 = vadd.f32 %v4095, %v4159
      %v4192 = vadd.f32 %v4096, %v4160
      %v4193 = vadd.f32 %v4097, %v4161
      %v4194 = vadd.f32 %v4098, %v4162
      %v4195 = vadd.f32 %v4163, %v3973
      %v4196 = vadd.f32 %v4164, %v3976
      %v4197 = vadd.f32 %v4165, %v3979
      %v4198 = vadd.f32 %v4166, %v3982
      %v4199 = vadd.f32 %v4167, %v3985
      %v4200 = vadd.f32 %v4168, %v3988
      %v4201 = vadd.f32 %v4169, %v3991
      %v4202 = vadd.f32 %v4170, %v3994
      %v4203 = vadd.f32 %v4171, %v3997
      %v4204 = vadd.f32 %v4172, %v4000
      %v4205 = vadd.f32 %v4173, %v4003
      %v4206 = vadd.f32 %v4174, %v4006
      %v4207 = vadd.f32 %v4175, %v4009
      %v4208 = vadd.f32 %v4176, %v4012
      %v4209 = vadd.f32 %v4177, %v4015
      %v4210 = vadd.f32 %v4178, %v4018
      %v4211 = vadd.f32 %v4179, %v4021
      %v4212 = vadd.f32 %v4180, %v4024
      %v4213 = vadd.f32 %v4181, %v4027
      %v4214 = vadd.f32 %v4182, %v4030
      %v4215 = vadd.f32 %v4183, %v4033
      %v4216 = vadd.f32 %v4184, %v4036
      %v4217 = vadd.f32 %v4185, %v4039
      %v4218 = vadd.f32 %v4186, %v4042
      %v4219 = vadd.f32 %v4187, %v4045
      %v4220 = vadd.f32 %v4188, %v4048
      %v4221 = vadd.f32 %v4189, %v4051
      %v4222 = vadd.f32 %v4190, %v4054
      %v4223 = vadd.f32 %v4191, %v4057
      %v4224 = vadd.f32 %v4192, %v4060
      %v4225 = vadd.f32 %v4193, %v4063
      %v4226 = vadd.f32 %v4194, %v4066
      %4227 = vst.msk [vmem:[#allocation5] sm:$0xff] %vm3874, %v4195
      %4228 = vst.msk [vmem:[#allocation5 + $0x8] sm:$0xff] %vm3874, %v4196
      %4229 = vst.msk [vmem:[#allocation5 + $0x10] sm:$0xff] %vm3874, %v4197
      %4230 = vst.msk [vmem:[#allocation5 + $0x18] sm:$0xff] %vm3874, %v4198
      %4231 = vst.msk [vmem:[#allocation5 + $0x20] sm:$0xff] %vm3874, %v4199
      %4232 = vst.msk [vmem:[#allocation5 + $0x28] sm:$0xff] %vm3874, %v4200
      %4233 = vst.msk [vmem:[#allocation5 + $0x30] sm:$0xff] %vm3874, %v4201
      %4234 = vst.msk [vmem:[#allocation5 + $0x38] sm:$0xff] %vm3874, %v4202
      %4235 = vst.msk [vmem:[#allocation5 + $0x40] sm:$0xff] %vm3874, %v4203
      %4236 = vst.msk [vmem:[#allocation5 + $0x48] sm:$0xff] %vm3874, %v4204
      %4237 = vst.msk [vmem:[#allocation5 + $0x50] sm:$0xff] %vm3874, %v4205
      %4238 = vst.msk [vmem:[#allocation5 + $0x58] sm:$0xff] %vm3874, %v4206
      %4239 = vst.msk [vmem:[#allocation5 + $0x60] sm:$0xff] %vm3874, %v4207
      %4240 = vst.msk [vmem:[#allocation5 + $0x68] sm:$0xff] %vm3874, %v4208
      %4241 = vst.msk [vmem:[#allocation5 + $0x70] sm:$0xff] %vm3874, %v4209
      %4242 = vst.msk [vmem:[#allocation5 + $0x78] sm:$0xff] %vm3874, %v4210
      %4243 = vst.msk [vmem:[#allocation5 + $0x80] sm:$0xff] %vm3874, %v4211
      %4244 = vst.msk [vmem:[#allocation5 + $0x88] sm:$0xff] %vm3874, %v4212
      %4245 = vst.msk [vmem:[#allocation5 + $0x90] sm:$0xff] %vm3874, %v4213
      %4246 = vst.msk [vmem:[#allocation5 + $0x98] sm:$0xff] %vm3874, %v4214
      %4247 = vst.msk [vmem:[#allocation5 + $0xa0] sm:$0xff] %vm3874, %v4215
      %4248 = vst.msk [vmem:[#allocation5 + $0xa8] sm:$0xff] %vm3874, %v4216
      %4249 = vst.msk [vmem:[#allocation5 + $0xb0] sm:$0xff] %vm3874, %v4217
      %4250 = vst.msk [vmem:[#allocation5 + $0xb8] sm:$0xff] %vm3874, %v4218
      %4251 = vst.msk [vmem:[#allocation5 + $0xc0] sm:$0xff] %vm3874, %v4219
      %4252 = vst.msk [vmem:[#allocation5 + $0xc8] sm:$0xff] %vm3874, %v4220
      %4253 = vst.msk [vmem:[#allocation5 + $0xd0] sm:$0xff] %vm3874, %v4221
      %4254 = vst.msk [vmem:[#allocation5 + $0xd8] sm:$0xff] %vm3874, %v4222
      %4255 = vst.msk [vmem:[#allocation5 + $0xe0] sm:$0xff] %vm3874, %v4223
      %4256 = vst.msk [vmem:[#allocation5 + $0xe8] sm:$0xff] %vm3874, %v4224
      %4257 = vst.msk [vmem:[#allocation5 + $0xf0] sm:$0xff] %vm3874, %v4225
      %4258 = vst.msk [vmem:[#allocation5 + $0xf8] sm:$0xff] %vm3874, %v4226
      %v4259 = vld [vmem:[#allocation6] sm:$0xff]
      %v4260 = vld [vmem:[#allocation6 + $0x8] sm:$0xff]
      %v4261 = vld [vmem:[#allocation6 + $0x10] sm:$0xff]
      %v4262 = vld [vmem:[#allocation6 + $0x18] sm:$0xff]
      %v4263 = vld [vmem:[#allocation6 + $0x20] sm:$0xff]
      %v4264 = vld [vmem:[#allocation6 + $0x28] sm:$0xff]
      %v4265 = vld [vmem:[#allocation6 + $0x30] sm:$0xff]
      %v4266 = vld [vmem:[#allocation6 + $0x38] sm:$0xff]
      %v4267 = vld [vmem:[#allocation6 + $0x40] sm:$0xff]
      %v4268 = vld [vmem:[#allocation6 + $0x48] sm:$0xff]
      %v4269 = vld [vmem:[#allocation6 + $0x50] sm:$0xff]
      %v4270 = vld [vmem:[#allocation6 + $0x58] sm:$0xff]
      %v4271 = vld [vmem:[#allocation6 + $0x60] sm:$0xff]
      %v4272 = vld [vmem:[#allocation6 + $0x68] sm:$0xff]
      %v4273 = vld [vmem:[#allocation6 + $0x70] sm:$0xff]
      %v4274 = vld [vmem:[#allocation6 + $0x78] sm:$0xff]
      %v4275 = vld [vmem:[#allocation6 + $0x80] sm:$0xff]
      %v4276 = vld [vmem:[#allocation6 + $0x88] sm:$0xff]
      %v4277 = vld [vmem:[#allocation6 + $0x90] sm:$0xff]
      %v4278 = vld [vmem:[#allocation6 + $0x98] sm:$0xff]
      %v4279 = vld [vmem:[#allocation6 + $0xa0] sm:$0xff]
      %v4280 = vld [vmem:[#allocation6 + $0xa8] sm:$0xff]
      %v4281 = vld [vmem:[#allocation6 + $0xb0] sm:$0xff]
      %v4282 = vld [vmem:[#allocation6 + $0xb8] sm:$0xff]
      %v4283 = vld [vmem:[#allocation6 + $0xc0] sm:$0xff]
      %v4284 = vld [vmem:[#allocation6 + $0xc8] sm:$0xff]
      %v4285 = vld [vmem:[#allocation6 + $0xd0] sm:$0xff]
      %v4286 = vld [vmem:[#allocation6 + $0xd8] sm:$0xff]
      %v4287 = vld [vmem:[#allocation6 + $0xe0] sm:$0xff]
      %v4288 = vld [vmem:[#allocation6 + $0xe8] sm:$0xff]
      %v4289 = vld [vmem:[#allocation6 + $0xf0] sm:$0xff]
      %v4290 = vld [vmem:[#allocation6 + $0xf8] sm:$0xff]
      %v4291 = vadd.f32 %v1188, %v1189
      %4292 = vadd.xlane.f32.xlu0 %v4291
      %v4293 = vpop.xlane.xlu0 %4292
      %v4294 = vadd.f32 %v1190, %v1191
      %4295 = vadd.xlane.f32.xlu0 %v4294
      %v4296 = vpop.xlane.xlu0 %4295
      %v4297 = vadd.f32 %v1192, %v1193
      %4298 = vadd.xlane.f32.xlu0 %v4297
      %v4299 = vpop.xlane.xlu0 %4298
      %v4300 = vadd.f32 %v1194, %v1195
      %4301 = vadd.xlane.f32.xlu0 %v4300
      %v4302 = vpop.xlane.xlu0 %4301
      %v4303 = vadd.f32 %v1196, %v1197
      %4304 = vadd.xlane.f32.xlu0 %v4303
      %v4305 = vpop.xlane.xlu0 %4304
      %v4306 = vadd.f32 %v1198, %v1199
      %4307 = vadd.xlane.f32.xlu0 %v4306
      %v4308 = vpop.xlane.xlu0 %4307
      %v4309 = vadd.f32 %v1200, %v1201
      %4310 = vadd.xlane.f32.xlu0 %v4309
      %v4311 = vpop.xlane.xlu0 %4310
      %v4312 = vadd.f32 %v1202, %v1203
      %4313 = vadd.xlane.f32.xlu0 %v4312
      %v4314 = vpop.xlane.xlu0 %4313
      %v4315 = vadd.f32 %v1204, %v1205
      %4316 = vadd.xlane.f32.xlu0 %v4315
      %v4317 = vpop.xlane.xlu0 %4316
      %v4318 = vadd.f32 %v1206, %v1207
      %4319 = vadd.xlane.f32.xlu0 %v4318
      %v4320 = vpop.xlane.xlu0 %4319
      %v4321 = vadd.f32 %v1208, %v1209
      %4322 = vadd.xlane.f32.xlu0 %v4321
      %v4323 = vpop.xlane.xlu0 %4322
      %v4324 = vadd.f32 %v1210, %v1211
      %4325 = vadd.xlane.f32.xlu0 %v4324
      %v4326 = vpop.xlane.xlu0 %4325
      %v4327 = vadd.f32 %v1212, %v1213
      %4328 = vadd.xlane.f32.xlu0 %v4327
      %v4329 = vpop.xlane.xlu0 %4328
      %v4330 = vadd.f32 %v1214, %v1215
      %4331 = vadd.xlane.f32.xlu0 %v4330
      %v4332 = vpop.xlane.xlu0 %4331
      %v4333 = vadd.f32 %v1216, %v1217
      %4334 = vadd.xlane.f32.xlu0 %v4333
      %v4335 = vpop.xlane.xlu0 %4334
      %v4336 = vadd.f32 %v1218, %v1219
      %4337 = vadd.xlane.f32.xlu0 %v4336
      %v4338 = vpop.xlane.xlu0 %4337
      %v4339 = vadd.f32 %v1220, %v1221
      %4340 = vadd.xlane.f32.xlu0 %v4339
      %v4341 = vpop.xlane.xlu0 %4340
      %v4342 = vadd.f32 %v1222, %v1223
      %4343 = vadd.xlane.f32.xlu0 %v4342
      %v4344 = vpop.xlane.xlu0 %4343
      %v4345 = vadd.f32 %v1224, %v1225
      %4346 = vadd.xlane.f32.xlu0 %v4345
      %v4347 = vpop.xlane.xlu0 %4346
      %v4348 = vadd.f32 %v1226, %v1227
      %4349 = vadd.xlane.f32.xlu0 %v4348
      %v4350 = vpop.xlane.xlu0 %4349
      %v4351 = vadd.f32 %v1228, %v1229
      %4352 = vadd.xlane.f32.xlu0 %v4351
      %v4353 = vpop.xlane.xlu0 %4352
      %v4354 = vadd.f32 %v1230, %v1231
      %4355 = vadd.xlane.f32.xlu0 %v4354
      %v4356 = vpop.xlane.xlu0 %4355
      %v4357 = vadd.f32 %v1232, %v1233
      %4358 = vadd.xlane.f32.xlu0 %v4357
      %v4359 = vpop.xlane.xlu0 %4358
      %v4360 = vadd.f32 %v1234, %v1235
      %4361 = vadd.xlane.f32.xlu0 %v4360
      %v4362 = vpop.xlane.xlu0 %4361
      %v4363 = vadd.f32 %v1236, %v1237
      %4364 = vadd.xlane.f32.xlu0 %v4363
      %v4365 = vpop.xlane.xlu0 %4364
      %v4366 = vadd.f32 %v1238, %v1239
      %4367 = vadd.xlane.f32.xlu0 %v4366
      %v4368 = vpop.xlane.xlu0 %4367
      %v4369 = vadd.f32 %v1240, %v1241
      %4370 = vadd.xlane.f32.xlu0 %v4369
      %v4371 = vpop.xlane.xlu0 %4370
      %v4372 = vadd.f32 %v1242, %v1243
      %4373 = vadd.xlane.f32.xlu0 %v4372
      %v4374 = vpop.xlane.xlu0 %4373
      %v4375 = vadd.f32 %v1244, %v1245
      %4376 = vadd.xlane.f32.xlu0 %v4375
      %v4377 = vpop.xlane.xlu0 %4376
      %v4378 = vadd.f32 %v1246, %v1247
      %4379 = vadd.xlane.f32.xlu0 %v4378
      %v4380 = vpop.xlane.xlu0 %4379
      %v4381 = vadd.f32 %v1248, %v1249
      %4382 = vadd.xlane.f32.xlu0 %v4381
      %v4383 = vpop.xlane.xlu0 %4382
      %v4384 = vadd.f32 %v1250, %v1251
      %4385 = vadd.xlane.f32.xlu0 %v4384
      %v4386 = vpop.xlane.xlu0 %4385
      %v4387 = vadd.f32 %v4259, %v4293
      %v4388 = vadd.f32 %v4260, %v4296
      %v4389 = vadd.f32 %v4261, %v4299
      %v4390 = vadd.f32 %v4262, %v4302
      %v4391 = vadd.f32 %v4263, %v4305
      %v4392 = vadd.f32 %v4264, %v4308
      %v4393 = vadd.f32 %v4265, %v4311
      %v4394 = vadd.f32 %v4266, %v4314
      %v4395 = vadd.f32 %v4267, %v4317
      %v4396 = vadd.f32 %v4268, %v4320
      %v4397 = vadd.f32 %v4269, %v4323
      %v4398 = vadd.f32 %v4270, %v4326
      %v4399 = vadd.f32 %v4271, %v4329
      %v4400 = vadd.f32 %v4272, %v4332
      %v4401 = vadd.f32 %v4273, %v4335
      %v4402 = vadd.f32 %v4274, %v4338
      %v4403 = vadd.f32 %v4275, %v4341
      %v4404 = vadd.f32 %v4276, %v4344
      %v4405 = vadd.f32 %v4277, %v4347
      %v4406 = vadd.f32 %v4278, %v4350
      %v4407 = vadd.f32 %v4279, %v4353
      %v4408 = vadd.f32 %v4280, %v4356
      %v4409 = vadd.f32 %v4281, %v4359
      %v4410 = vadd.f32 %v4282, %v4362
      %v4411 = vadd.f32 %v4283, %v4365
      %v4412 = vadd.f32 %v4284, %v4368
      %v4413 = vadd.f32 %v4285, %v4371
      %v4414 = vadd.f32 %v4286, %v4374
      %v4415 = vadd.f32 %v4287, %v4377
      %v4416 = vadd.f32 %v4288, %v4380
      %v4417 = vadd.f32 %v4289, %v4383
      %v4418 = vadd.f32 %v4290, %v4386
      %4419 = vst.msk [vmem:[#allocation6] sm:$0xff] %vm3874, %v4387
      %4420 = vst.msk [vmem:[#allocation6 + $0x8] sm:$0xff] %vm3874, %v4388
      %4421 = vst.msk [vmem:[#allocation6 + $0x10] sm:$0xff] %vm3874, %v4389
      %4422 = vst.msk [vmem:[#allocation6 + $0x18] sm:$0xff] %vm3874, %v4390
      %4423 = vst.msk [vmem:[#allocation6 + $0x20] sm:$0xff] %vm3874, %v4391
      %4424 = vst.msk [vmem:[#allocation6 + $0x28] sm:$0xff] %vm3874, %v4392
      %4425 = vst.msk [vmem:[#allocation6 + $0x30] sm:$0xff] %vm3874, %v4393
      %4426 = vst.msk [vmem:[#allocation6 + $0x38] sm:$0xff] %vm3874, %v4394
      %4427 = vst.msk [vmem:[#allocation6 + $0x40] sm:$0xff] %vm3874, %v4395
      %4428 = vst.msk [vmem:[#allocation6 + $0x48] sm:$0xff] %vm3874, %v4396
      %4429 = vst.msk [vmem:[#allocation6 + $0x50] sm:$0xff] %vm3874, %v4397
      %4430 = vst.msk [vmem:[#allocation6 + $0x58] sm:$0xff] %vm3874, %v4398
      %4431 = vst.msk [vmem:[#allocation6 + $0x60] sm:$0xff] %vm3874, %v4399
      %4432 = vst.msk [vmem:[#allocation6 + $0x68] sm:$0xff] %vm3874, %v4400
      %4433 = vst.msk [vmem:[#allocation6 + $0x70] sm:$0xff] %vm3874, %v4401
      %4434 = vst.msk [vmem:[#allocation6 + $0x78] sm:$0xff] %vm3874, %v4402
      %4435 = vst.msk [vmem:[#allocation6 + $0x80] sm:$0xff] %vm3874, %v4403
      %4436 = vst.msk [vmem:[#allocation6 + $0x88] sm:$0xff] %vm3874, %v4404
      %4437 = vst.msk [vmem:[#allocation6 + $0x90] sm:$0xff] %vm3874, %v4405
      %4438 = vst.msk [vmem:[#allocation6 + $0x98] sm:$0xff] %vm3874, %v4406
      %4439 = vst.msk [vmem:[#allocation6 + $0xa0] sm:$0xff] %vm3874, %v4407
      %4440 = vst.msk [vmem:[#allocation6 + $0xa8] sm:$0xff] %vm3874, %v4408
      %4441 = vst.msk [vmem:[#allocation6 + $0xb0] sm:$0xff] %vm3874, %v4409
      %4442 = vst.msk [vmem:[#allocation6 + $0xb8] sm:$0xff] %vm3874, %v4410
      %4443 = vst.msk [vmem:[#allocation6 + $0xc0] sm:$0xff] %vm3874, %v4411
      %4444 = vst.msk [vmem:[#allocation6 + $0xc8] sm:$0xff] %vm3874, %v4412
      %4445 = vst.msk [vmem:[#allocation6 + $0xd0] sm:$0xff] %vm3874, %v4413
      %4446 = vst.msk [vmem:[#allocation6 + $0xd8] sm:$0xff] %vm3874, %v4414
      %4447 = vst.msk [vmem:[#allocation6 + $0xe0] sm:$0xff] %vm3874, %v4415
      %4448 = vst.msk [vmem:[#allocation6 + $0xe8] sm:$0xff] %vm3874, %v4416
      %4449 = vst.msk [vmem:[#allocation6 + $0xf0] sm:$0xff] %vm3874, %v4417
      %4450 = vst.msk [vmem:[#allocation6 + $0xf8] sm:$0xff] %vm3874, %v4418
      %4451 = vst.msk [vmem:[#allocation3] sm:$0xff] %vm3874, %v3202
      %4452 = vst.msk [vmem:[#allocation3 + $0x8] sm:$0xff] %vm3874, %v3203
      %4453 = vst.msk [vmem:[#allocation3 + $0x10] sm:$0xff] %vm3874, %v3204
      %4454 = vst.msk [vmem:[#allocation3 + $0x18] sm:$0xff] %vm3874, %v3205
      %4455 = vst.msk [vmem:[#allocation3 + $0x20] sm:$0xff] %vm3874, %v3206
      %4456 = vst.msk [vmem:[#allocation3 + $0x28] sm:$0xff] %vm3874, %v3207
      %4457 = vst.msk [vmem:[#allocation3 + $0x30] sm:$0xff] %vm3874, %v3208
      %4458 = vst.msk [vmem:[#allocation3 + $0x38] sm:$0xff] %vm3874, %v3209
      %4459 = vst.msk [vmem:[#allocation3 + $0x40] sm:$0xff] %vm3874, %v3210
      %4460 = vst.msk [vmem:[#allocation3 + $0x48] sm:$0xff] %vm3874, %v3211
      %4461 = vst.msk [vmem:[#allocation3 + $0x50] sm:$0xff] %vm3874, %v3212
      %4462 = vst.msk [vmem:[#allocation3 + $0x58] sm:$0xff] %vm3874, %v3213
      %4463 = vst.msk [vmem:[#allocation3 + $0x60] sm:$0xff] %vm3874, %v3214
      %4464 = vst.msk [vmem:[#allocation3 + $0x68] sm:$0xff] %vm3874, %v3215
      %4465 = vst.msk [vmem:[#allocation3 + $0x70] sm:$0xff] %vm3874, %v3216
      %4466 = vst.msk [vmem:[#allocation3 + $0x78] sm:$0xff] %vm3874, %v3217
      %4467 = vst.msk [vmem:[#allocation3 + $0x80] sm:$0xff] %vm3874, %v3218
      %4468 = vst.msk [vmem:[#allocation3 + $0x88] sm:$0xff] %vm3874, %v3219
      %4469 = vst.msk [vmem:[#allocation3 + $0x90] sm:$0xff] %vm3874, %v3220
      %4470 = vst.msk [vmem:[#allocation3 + $0x98] sm:$0xff] %vm3874, %v3221
      %4471 = vst.msk [vmem:[#allocation3 + $0xa0] sm:$0xff] %vm3874, %v3222
      %4472 = vst.msk [vmem:[#allocation3 + $0xa8] sm:$0xff] %vm3874, %v3223
      %4473 = vst.msk [vmem:[#allocation3 + $0xb0] sm:$0xff] %vm3874, %v3224
      %4474 = vst.msk [vmem:[#allocation3 + $0xb8] sm:$0xff] %vm3874, %v3225
      %4475 = vst.msk [vmem:[#allocation3 + $0xc0] sm:$0xff] %vm3874, %v3226
      %4476 = vst.msk [vmem:[#allocation3 + $0xc8] sm:$0xff] %vm3874, %v3227
      %4477 = vst.msk [vmem:[#allocation3 + $0xd0] sm:$0xff] %vm3874, %v3228
      %4478 = vst.msk [vmem:[#allocation3 + $0xd8] sm:$0xff] %vm3874, %v3229
      %4479 = vst.msk [vmem:[#allocation3 + $0xe0] sm:$0xff] %vm3874, %v3230
      %4480 = vst.msk [vmem:[#allocation3 + $0xe8] sm:$0xff] %vm3874, %v3231
      %4481 = vst.msk [vmem:[#allocation3 + $0xf0] sm:$0xff] %vm3874, %v3232
      %4482 = vst.msk [vmem:[#allocation3 + $0xf8] sm:$0xff] %vm3874, %v3233
    $region29: #{tpu_custom_call.1} parent=1 // pred_fallthru
      _
    // Predicated region
    $region30: #{tpu_custom_call.1} parent=1 // pred_check
      %p4483 = pneg %p19
    $region31: #{tpu_custom_call.1} parent=1 // pred_check_branch
      %4485 = sbr.rel (%p4483) target = $region33
    $region32: #{tpu_custom_call.1} parent=1 // pred_region
      %v4486 = vld [vmem:[#allocation6] sm:$0xff]
      %v4487 = vld [vmem:[#allocation6 + $0x8] sm:$0xff]
      %v4488 = vld [vmem:[#allocation6 + $0x10] sm:$0xff]
      %v4489 = vld [vmem:[#allocation6 + $0x18] sm:$0xff]
      %v4490 = vld [vmem:[#allocation6 + $0x20] sm:$0xff]
      %v4491 = vld [vmem:[#allocation6 + $0x28] sm:$0xff]
      %v4492 = vld [vmem:[#allocation6 + $0x30] sm:$0xff]
      %v4493 = vld [vmem:[#allocation6 + $0x38] sm:$0xff]
      %v4494 = vld [vmem:[#allocation6 + $0x40] sm:$0xff]
      %v4495 = vld [vmem:[#allocation6 + $0x48] sm:$0xff]
      %v4496 = vld [vmem:[#allocation6 + $0x50] sm:$0xff]
      %v4497 = vld [vmem:[#allocation6 + $0x58] sm:$0xff]
      %v4498 = vld [vmem:[#allocation6 + $0x60] sm:$0xff]
      %v4499 = vld [vmem:[#allocation6 + $0x68] sm:$0xff]
      %v4500 = vld [vmem:[#allocation6 + $0x70] sm:$0xff]
      %v4501 = vld [vmem:[#allocation6 + $0x78] sm:$0xff]
      %v4502 = vld [vmem:[#allocation6 + $0x80] sm:$0xff]
      %v4503 = vld [vmem:[#allocation6 + $0x88] sm:$0xff]
      %v4504 = vld [vmem:[#allocation6 + $0x90] sm:$0xff]
      %v4505 = vld [vmem:[#allocation6 + $0x98] sm:$0xff]
      %v4506 = vld [vmem:[#allocation6 + $0xa0] sm:$0xff]
      %v4507 = vld [vmem:[#allocation6 + $0xa8] sm:$0xff]
      %v4508 = vld [vmem:[#allocation6 + $0xb0] sm:$0xff]
      %v4509 = vld [vmem:[#allocation6 + $0xb8] sm:$0xff]
      %v4510 = vld [vmem:[#allocation6 + $0xc0] sm:$0xff]
      %v4511 = vld [vmem:[#allocation6 + $0xc8] sm:$0xff]
      %v4512 = vld [vmem:[#allocation6 + $0xd0] sm:$0xff]
      %v4513 = vld [vmem:[#allocation6 + $0xd8] sm:$0xff]
      %v4514 = vld [vmem:[#allocation6 + $0xe0] sm:$0xff]
      %v4515 = vld [vmem:[#allocation6 + $0xe8] sm:$0xff]
      %v4516 = vld [vmem:[#allocation6 + $0xf0] sm:$0xff]
      %v4517 = vld [vmem:[#allocation6 + $0xf8] sm:$0xff]
      %vm4518 = vcmp.lt.f32.partialorder %v4486, 1e-06
      %vm4519 = vcmp.lt.f32.partialorder %v4487, 1e-06
      %vm4520 = vcmp.lt.f32.partialorder %v4488, 1e-06
      %vm4521 = vcmp.lt.f32.partialorder %v4489, 1e-06
      %vm4522 = vcmp.lt.f32.partialorder %v4490, 1e-06
      %vm4523 = vcmp.lt.f32.partialorder %v4491, 1e-06
      %vm4524 = vcmp.lt.f32.partialorder %v4492, 1e-06
      %vm4525 = vcmp.lt.f32.partialorder %v4493, 1e-06
      %vm4526 = vcmp.lt.f32.partialorder %v4494, 1e-06
      %vm4527 = vcmp.lt.f32.partialorder %v4495, 1e-06
      %vm4528 = vcmp.lt.f32.partialorder %v4496, 1e-06
      %vm4529 = vcmp.lt.f32.partialorder %v4497, 1e-06
      %vm4530 = vcmp.lt.f32.partialorder %v4498, 1e-06
      %vm4531 = vcmp.lt.f32.partialorder %v4499, 1e-06
      %vm4532 = vcmp.lt.f32.partialorder %v4500, 1e-06
      %vm4533 = vcmp.lt.f32.partialorder %v4501, 1e-06
      %vm4534 = vcmp.lt.f32.partialorder %v4502, 1e-06
      %vm4535 = vcmp.lt.f32.partialorder %v4503, 1e-06
      %vm4536 = vcmp.lt.f32.partialorder %v4504, 1e-06
      %vm4537 = vcmp.lt.f32.partialorder %v4505, 1e-06
      %vm4538 = vcmp.lt.f32.partialorder %v4506, 1e-06
      %vm4539 = vcmp.lt.f32.partialorder %v4507, 1e-06
      %vm4540 = vcmp.lt.f32.partialorder %v4508, 1e-06
      %vm4541 = vcmp.lt.f32.partialorder %v4509, 1e-06
      %vm4542 = vcmp.lt.f32.partialorder %v4510, 1e-06
      %vm4543 = vcmp.lt.f32.partialorder %v4511, 1e-06
      %vm4544 = vcmp.lt.f32.partialorder %v4512, 1e-06
      %vm4545 = vcmp.lt.f32.partialorder %v4513, 1e-06
      %vm4546 = vcmp.lt.f32.partialorder %v4514, 1e-06
      %vm4547 = vcmp.lt.f32.partialorder %v4515, 1e-06
      %vm4548 = vcmp.lt.f32.partialorder %v4516, 1e-06
      %vm4549 = vcmp.lt.f32.partialorder %v4517, 1e-06
      %v4550 = vsel %vm4518, 1.0, %v4486
      %v4551 = vsel %vm4519, 1.0, %v4487
      %v4552 = vsel %vm4520, 1.0, %v4488
      %v4553 = vsel %vm4521, 1.0, %v4489
      %v4554 = vsel %vm4522, 1.0, %v4490
      %v4555 = vsel %vm4523, 1.0, %v4491
      %v4556 = vsel %vm4524, 1.0, %v4492
      %v4557 = vsel %vm4525, 1.0, %v4493
      %v4558 = vsel %vm4526, 1.0, %v4494
      %v4559 = vsel %vm4527, 1.0, %v4495
      %v4560 = vsel %vm4528, 1.0, %v4496
      %v4561 = vsel %vm4529, 1.0, %v4497
      %v4562 = vsel %vm4530, 1.0, %v4498
      %v4563 = vsel %vm4531, 1.0, %v4499
      %v4564 = vsel %vm4532, 1.0, %v4500
      %v4565 = vsel %vm4533, 1.0, %v4501
      %v4566 = vsel %vm4534, 1.0, %v4502
      %v4567 = vsel %vm4535, 1.0, %v4503
      %v4568 = vsel %vm4536, 1.0, %v4504
      %v4569 = vsel %vm4537, 1.0, %v4505
      %v4570 = vsel %vm4538, 1.0, %v4506
      %v4571 = vsel %vm4539, 1.0, %v4507
      %v4572 = vsel %vm4540, 1.0, %v4508
      %v4573 = vsel %vm4541, 1.0, %v4509
      %v4574 = vsel %vm4542, 1.0, %v4510
      %v4575 = vsel %vm4543, 1.0, %v4511
      %v4576 = vsel %vm4544, 1.0, %v4512
      %v4577 = vsel %vm4545, 1.0, %v4513
      %v4578 = vsel %vm4546, 1.0, %v4514
      %v4579 = vsel %vm4547, 1.0, %v4515
      %v4580 = vsel %vm4548, 1.0, %v4516
      %v4581 = vsel %vm4549, 1.0, %v4517
      %v4582 = vld [vmem:[#allocation5] sm:$0xff]
      %v4583 = vld [vmem:[#allocation5 + $0x8] sm:$0xff]
      %v4584 = vld [vmem:[#allocation5 + $0x10] sm:$0xff]
      %v4585 = vld [vmem:[#allocation5 + $0x18] sm:$0xff]
      %v4586 = vld [vmem:[#allocation5 + $0x20] sm:$0xff]
      %v4587 = vld [vmem:[#allocation5 + $0x28] sm:$0xff]
      %v4588 = vld [vmem:[#allocation5 + $0x30] sm:$0xff]
      %v4589 = vld [vmem:[#allocation5 + $0x38] sm:$0xff]
      %v4590 = vld [vmem:[#allocation5 + $0x40] sm:$0xff]
      %v4591 = vld [vmem:[#allocation5 + $0x48] sm:$0xff]
      %v4592 = vld [vmem:[#allocation5 + $0x50] sm:$0xff]
      %v4593 = vld [vmem:[#allocation5 + $0x58] sm:$0xff]
      %v4594 = vld [vmem:[#allocation5 + $0x60] sm:$0xff]
      %v4595 = vld [vmem:[#allocation5 + $0x68] sm:$0xff]
      %v4596 = vld [vmem:[#allocation5 + $0x70] sm:$0xff]
      %v4597 = vld [vmem:[#allocation5 + $0x78] sm:$0xff]
      %v4598 = vld [vmem:[#allocation5 + $0x80] sm:$0xff]
      %v4599 = vld [vmem:[#allocation5 + $0x88] sm:$0xff]
      %v4600 = vld [vmem:[#allocation5 + $0x90] sm:$0xff]
      %v4601 = vld [vmem:[#allocation5 + $0x98] sm:$0xff]
      %v4602 = vld [vmem:[#allocation5 + $0xa0] sm:$0xff]
      %v4603 = vld [vmem:[#allocation5 + $0xa8] sm:$0xff]
      %v4604 = vld [vmem:[#allocation5 + $0xb0] sm:$0xff]
      %v4605 = vld [vmem:[#allocation5 + $0xb8] sm:$0xff]
      %v4606 = vld [vmem:[#allocation5 + $0xc0] sm:$0xff]
      %v4607 = vld [vmem:[#allocation5 + $0xc8] sm:$0xff]
      %v4608 = vld [vmem:[#allocation5 + $0xd0] sm:$0xff]
      %v4609 = vld [vmem:[#allocation5 + $0xd8] sm:$0xff]
      %v4610 = vld [vmem:[#allocation5 + $0xe0] sm:$0xff]
      %v4611 = vld [vmem:[#allocation5 + $0xe8] sm:$0xff]
      %v4612 = vld [vmem:[#allocation5 + $0xf0] sm:$0xff]
      %v4613 = vld [vmem:[#allocation5 + $0xf8] sm:$0xff]
      %v4614 = vld [vmem:[#allocation4] sm:$0xff]
      %v4615 = vld [vmem:[#allocation4 + $0x8] sm:$0xff]
      %v4616 = vld [vmem:[#allocation4 + $0x10] sm:$0xff]
      %v4617 = vld [vmem:[#allocation4 + $0x18] sm:$0xff]
      %v4618 = vld [vmem:[#allocation4 + $0x20] sm:$0xff]
      %v4619 = vld [vmem:[#allocation4 + $0x28] sm:$0xff]
      %v4620 = vld [vmem:[#allocation4 + $0x30] sm:$0xff]
      %v4621 = vld [vmem:[#allocation4 + $0x38] sm:$0xff]
      %v4622 = vld [vmem:[#allocation4 + $0x40] sm:$0xff]
      %v4623 = vld [vmem:[#allocation4 + $0x48] sm:$0xff]
      %v4624 = vld [vmem:[#allocation4 + $0x50] sm:$0xff]
      %v4625 = vld [vmem:[#allocation4 + $0x58] sm:$0xff]
      %v4626 = vld [vmem:[#allocation4 + $0x60] sm:$0xff]
      %v4627 = vld [vmem:[#allocation4 + $0x68] sm:$0xff]
      %v4628 = vld [vmem:[#allocation4 + $0x70] sm:$0xff]
      %v4629 = vld [vmem:[#allocation4 + $0x78] sm:$0xff]
      %v4630 = vld [vmem:[#allocation4 + $0x80] sm:$0xff]
      %v4631 = vld [vmem:[#allocation4 + $0x88] sm:$0xff]
      %v4632 = vld [vmem:[#allocation4 + $0x90] sm:$0xff]
      %v4633 = vld [vmem:[#allocation4 + $0x98] sm:$0xff]
      %v4634 = vld [vmem:[#allocation4 + $0xa0] sm:$0xff]
      %v4635 = vld [vmem:[#allocation4 + $0xa8] sm:$0xff]
      %v4636 = vld [vmem:[#allocation4 + $0xb0] sm:$0xff]
      %v4637 = vld [vmem:[#allocation4 + $0xb8] sm:$0xff]
      %v4638 = vld [vmem:[#allocation4 + $0xc0] sm:$0xff]
      %v4639 = vld [vmem:[#allocation4 + $0xc8] sm:$0xff]
      %v4640 = vld [vmem:[#allocation4 + $0xd0] sm:$0xff]
      %v4641 = vld [vmem:[#allocation4 + $0xd8] sm:$0xff]
      %v4642 = vld [vmem:[#allocation4 + $0xe0] sm:$0xff]
      %v4643 = vld [vmem:[#allocation4 + $0xe8] sm:$0xff]
      %v4644 = vld [vmem:[#allocation4 + $0xf0] sm:$0xff]
      %v4645 = vld [vmem:[#allocation4 + $0xf8] sm:$0xff]
      %v4646 = vlog2.pop %v4614
      %v4647 = vmul.f32 %v4646, 0.6931472
      %v4648 = vlog2.pop %v4615
      %v4649 = vmul.f32 %v4648, 0.6931472
      %v4650 = vlog2.pop %v4616
      %v4651 = vmul.f32 %v4650, 0.6931472
      %v4652 = vlog2.pop %v4617
      %v4653 = vmul.f32 %v4652, 0.6931472
      %v4654 = vlog2.pop %v4618
      %v4655 = vmul.f32 %v4654, 0.6931472
      %v4656 = vlog2.pop %v4619
      %v4657 = vmul.f32 %v4656, 0.6931472
      %v4658 = vlog2.pop %v4620
      %v4659 = vmul.f32 %v4658, 0.6931472
      %v4660 = vlog2.pop %v4621
      %v4661 = vmul.f32 %v4660, 0.6931472
      %v4662 = vlog2.pop %v4622
      %v4663 = vmul.f32 %v4662, 0.6931472
      %v4664 = vlog2.pop %v4623
      %v4665 = vmul.f32 %v4664, 0.6931472
      %v4666 = vlog2.pop %v4624
      %v4667 = vmul.f32 %v4666, 0.6931472
      %v4668 = vlog2.pop %v4625
      %v4669 = vmul.f32 %v4668, 0.6931472
      %v4670 = vlog2.pop %v4626
      %v4671 = vmul.f32 %v4670, 0.6931472
      %v4672 = vlog2.pop %v4627
      %v4673 = vmul.f32 %v4672, 0.6931472
      %v4674 = vlog2.pop %v4628
      %v4675 = vmul.f32 %v4674, 0.6931472
      %v4676 = vlog2.pop %v4629
      %v4677 = vmul.f32 %v4676, 0.6931472
      %v4678 = vlog2.pop %v4630
      %v4679 = vmul.f32 %v4678, 0.6931472
      %v4680 = vlog2.pop %v4631
      %v4681 = vmul.f32 %v4680, 0.6931472
      %v4682 = vlog2.pop %v4632
      %v4683 = vmul.f32 %v4682, 0.6931472
      %v4684 = vlog2.pop %v4633
      %v4685 = vmul.f32 %v4684, 0.6931472
      %v4686 = vlog2.pop %v4634
      %v4687 = vmul.f32 %v4686, 0.6931472
      %v4688 = vlog2.pop %v4635
      %v4689 = vmul.f32 %v4688, 0.6931472
      %v4690 = vlog2.pop %v4636
      %v4691 = vmul.f32 %v4690, 0.6931472
      %v4692 = vlog2.pop %v4637
      %v4693 = vmul.f32 %v4692, 0.6931472
      %v4694 = vlog2.pop %v4638
      %v4695 = vmul.f32 %v4694, 0.6931472
      %v4696 = vlog2.pop %v4639
      %v4697 = vmul.f32 %v4696, 0.6931472
      %v4698 = vlog2.pop %v4640
      %v4699 = vmul.f32 %v4698, 0.6931472
      %v4700 = vlog2.pop %v4641
      %v4701 = vmul.f32 %v4700, 0.6931472
      %v4702 = vlog2.pop %v4642
      %v4703 = vmul.f32 %v4702, 0.6931472
      %v4704 = vlog2.pop %v4643
      %v4705 = vmul.f32 %v4704, 0.6931472
      %v4706 = vlog2.pop %v4644
      %v4707 = vmul.f32 %v4706, 0.6931472
      %v4708 = vlog2.pop %v4645
      %v4709 = vmul.f32 %v4708, 0.6931472
      %v4710 = vmul.f32 %v4486, %v4647
      %v4711 = vmul.f32 %v4487, %v4649
      %v4712 = vmul.f32 %v4488, %v4651
      %v4713 = vmul.f32 %v4489, %v4653
      %v4714 = vmul.f32 %v4490, %v4655
      %v4715 = vmul.f32 %v4491, %v4657
      %v4716 = vmul.f32 %v4492, %v4659
      %v4717 = vmul.f32 %v4493, %v4661
      %v4718 = vmul.f32 %v4494, %v4663
      %v4719 = vmul.f32 %v4495, %v4665
      %v4720 = vmul.f32 %v4496, %v4667
      %v4721 = vmul.f32 %v4497, %v4669
      %v4722 = vmul.f32 %v4498, %v4671
      %v4723 = vmul.f32 %v4499, %v4673
      %v4724 = vmul.f32 %v4500, %v4675
      %v4725 = vmul.f32 %v4501, %v4677
      %v4726 = vmul.f32 %v4502, %v4679
      %v4727 = vmul.f32 %v4503, %v4681
      %v4728 = vmul.f32 %v4504, %v4683
      %v4729 = vmul.f32 %v4505, %v4685
      %v4730 = vmul.f32 %v4506, %v4687
      %v4731 = vmul.f32 %v4507, %v4689
      %v4732 = vmul.f32 %v4508, %v4691
      %v4733 = vmul.f32 %v4509, %v4693
      %v4734 = vmul.f32 %v4510, %v4695
      %v4735 = vmul.f32 %v4511, %v4697
      %v4736 = vmul.f32 %v4512, %v4699
      %v4737 = vmul.f32 %v4513, %v4701
      %v4738 = vmul.f32 %v4514, %v4703
      %v4739 = vmul.f32 %v4515, %v4705
      %v4740 = vmul.f32 %v4516, %v4707
      %v4741 = vmul.f32 %v4517, %v4709
      %v4742 = vsub.f32 %v4582, %v4710
      %v4743 = vsub.f32 %v4583, %v4711
      %v4744 = vsub.f32 %v4584, %v4712
      %v4745 = vsub.f32 %v4585, %v4713
      %v4746 = vsub.f32 %v4586, %v4714
      %v4747 = vsub.f32 %v4587, %v4715
      %v4748 = vsub.f32 %v4588, %v4716
      %v4749 = vsub.f32 %v4589, %v4717
      %v4750 = vsub.f32 %v4590, %v4718
      %v4751 = vsub.f32 %v4591, %v4719
      %v4752 = vsub.f32 %v4592, %v4720
      %v4753 = vsub.f32 %v4593, %v4721
      %v4754 = vsub.f32 %v4594, %v4722
      %v4755 = vsub.f32 %v4595, %v4723
      %v4756 = vsub.f32 %v4596, %v4724
      %v4757 = vsub.f32 %v4597, %v4725
      %v4758 = vsub.f32 %v4598, %v4726
      %v4759 = vsub.f32 %v4599, %v4727
      %v4760 = vsub.f32 %v4600, %v4728
      %v4761 = vsub.f32 %v4601, %v4729
      %v4762 = vsub.f32 %v4602, %v4730
      %v4763 = vsub.f32 %v4603, %v4731
      %v4764 = vsub.f32 %v4604, %v4732
      %v4765 = vsub.f32 %v4605, %v4733
      %v4766 = vsub.f32 %v4606, %v4734
      %v4767 = vsub.f32 %v4607, %v4735
      %v4768 = vsub.f32 %v4608, %v4736
      %v4769 = vsub.f32 %v4609, %v4737
      %v4770 = vsub.f32 %v4610, %v4738
      %v4771 = vsub.f32 %v4611, %v4739
      %v4772 = vsub.f32 %v4612, %v4740
      %v4773 = vsub.f32 %v4613, %v4741
      %v4774 = vrcp.pop %v4550
      %v4775 = vmul.f32 %v4742, %v4774
      %v4776 = vrcp.pop %v4551
      %v4777 = vmul.f32 %v4743, %v4776
      %v4778 = vrcp.pop %v4552
      %v4779 = vmul.f32 %v4744, %v4778
      %v4780 = vrcp.pop %v4553
      %v4781 = vmul.f32 %v4745, %v4780
      %v4782 = vrcp.pop %v4554
      %v4783 = vmul.f32 %v4746, %v4782
      %v4784 = vrcp.pop %v4555
      %v4785 = vmul.f32 %v4747, %v4784
      %v4786 = vrcp.pop %v4556
      %v4787 = vmul.f32 %v4748, %v4786
      %v4788 = vrcp.pop %v4557
      %v4789 = vmul.f32 %v4749, %v4788
      %v4790 = vrcp.pop %v4558
      %v4791 = vmul.f32 %v4750, %v4790
      %v4792 = vrcp.pop %v4559
      %v4793 = vmul.f32 %v4751, %v4792
      %v4794 = vrcp.pop %v4560
      %v4795 = vmul.f32 %v4752, %v4794
      %v4796 = vrcp.pop %v4561
      %v4797 = vmul.f32 %v4753, %v4796
      %v4798 = vrcp.pop %v4562
      %v4799 = vmul.f32 %v4754, %v4798
      %v4800 = vrcp.pop %v4563
      %v4801 = vmul.f32 %v4755, %v4800
      %v4802 = vrcp.pop %v4564
      %v4803 = vmul.f32 %v4756, %v4802
      %v4804 = vrcp.pop %v4565
      %v4805 = vmul.f32 %v4757, %v4804
      %v4806 = vrcp.pop %v4566
      %v4807 = vmul.f32 %v4758, %v4806
      %v4808 = vrcp.pop %v4567
      %v4809 = vmul.f32 %v4759, %v4808
      %v4810 = vrcp.pop %v4568
      %v4811 = vmul.f32 %v4760, %v4810
      %v4812 = vrcp.pop %v4569
      %v4813 = vmul.f32 %v4761, %v4812
      %v4814 = vrcp.pop %v4570
      %v4815 = vmul.f32 %v4762, %v4814
      %v4816 = vrcp.pop %v4571
      %v4817 = vmul.f32 %v4763, %v4816
      %v4818 = vrcp.pop %v4572
      %v4819 = vmul.f32 %v4764, %v4818
      %v4820 = vrcp.pop %v4573
      %v4821 = vmul.f32 %v4765, %v4820
      %v4822 = vrcp.pop %v4574
      %v4823 = vmul.f32 %v4766, %v4822
      %v4824 = vrcp.pop %v4575
      %v4825 = vmul.f32 %v4767, %v4824
      %v4826 = vrcp.pop %v4576
      %v4827 = vmul.f32 %v4768, %v4826
      %v4828 = vrcp.pop %v4577
      %v4829 = vmul.f32 %v4769, %v4828
      %v4830 = vrcp.pop %v4578
      %v4831 = vmul.f32 %v4770, %v4830
      %v4832 = vrcp.pop %v4579
      %v4833 = vmul.f32 %v4771, %v4832
      %v4834 = vrcp.pop %v4580
      %v4835 = vmul.f32 %v4772, %v4834
      %v4836 = vrcp.pop %v4581
      %v4837 = vmul.f32 %v4773, %v4836
      %v4838 = vmul.f32 %v4775, -1.0
      %v4839 = vmul.f32 %v4777, -1.0
      %v4840 = vmul.f32 %v4779, -1.0
      %v4841 = vmul.f32 %v4781, -1.0
      %v4842 = vmul.f32 %v4783, -1.0
      %v4843 = vmul.f32 %v4785, -1.0
      %v4844 = vmul.f32 %v4787, -1.0
      %v4845 = vmul.f32 %v4789, -1.0
      %v4846 = vmul.f32 %v4791, -1.0
      %v4847 = vmul.f32 %v4793, -1.0
      %v4848 = vmul.f32 %v4795, -1.0
      %v4849 = vmul.f32 %v4797, -1.0
      %v4850 = vmul.f32 %v4799, -1.0
      %v4851 = vmul.f32 %v4801, -1.0
      %v4852 = vmul.f32 %v4803, -1.0
      %v4853 = vmul.f32 %v4805, -1.0
      %v4854 = vmul.f32 %v4807, -1.0
      %v4855 = vmul.f32 %v4809, -1.0
      %v4856 = vmul.f32 %v4811, -1.0
      %v4857 = vmul.f32 %v4813, -1.0
      %v4858 = vmul.f32 %v4815, -1.0
      %v4859 = vmul.f32 %v4817, -1.0
      %v4860 = vmul.f32 %v4819, -1.0
      %v4861 = vmul.f32 %v4821, -1.0
      %v4862 = vmul.f32 %v4823, -1.0
      %v4863 = vmul.f32 %v4825, -1.0
      %v4864 = vmul.f32 %v4827, -1.0
      %v4865 = vmul.f32 %v4829, -1.0
      %v4866 = vmul.f32 %v4831, -1.0
      %v4867 = vmul.f32 %v4833, -1.0
      %v4868 = vmul.f32 %v4835, -1.0
      %v4869 = vmul.f32 %v4837, -1.0
      %4871 = vset.pattern.permute.xlu0 0
      %4872 = vperm.xlu0 %4871, %v4838
      %v4873 = vpop.permute.xlu0 %4872
      %4876 = vset.pattern.permute.xlu0 0
      %4877 = vperm.xlu0 %4876, %v4839
      %v4878 = vpop.permute.xlu0 %4877
      %4881 = vset.pattern.permute.xlu0 0
      %4882 = vperm.xlu0 %4881, %v4840
      %v4883 = vpop.permute.xlu0 %4882
      %4886 = vset.pattern.permute.xlu0 0
      %4887 = vperm.xlu0 %4886, %v4841
      %v4888 = vpop.permute.xlu0 %4887
      %4891 = vset.pattern.permute.xlu0 0
      %4892 = vperm.xlu0 %4891, %v4842
      %v4893 = vpop.permute.xlu0 %4892
      %4896 = vset.pattern.permute.xlu0 0
      %4897 = vperm.xlu0 %4896, %v4843
      %v4898 = vpop.permute.xlu0 %4897
      %4901 = vset.pattern.permute.xlu0 0
      %4902 = vperm.xlu0 %4901, %v4844
      %v4903 = vpop.permute.xlu0 %4902
      %4906 = vset.pattern.permute.xlu0 0
      %4907 = vperm.xlu0 %4906, %v4845
      %v4908 = vpop.permute.xlu0 %4907
      %4911 = vset.pattern.permute.xlu0 0
      %4912 = vperm.xlu0 %4911, %v4846
      %v4913 = vpop.permute.xlu0 %4912
      %4916 = vset.pattern.permute.xlu0 0
      %4917 = vperm.xlu0 %4916, %v4847
      %v4918 = vpop.permute.xlu0 %4917
      %4921 = vset.pattern.permute.xlu0 0
      %4922 = vperm.xlu0 %4921, %v4848
      %v4923 = vpop.permute.xlu0 %4922
      %4926 = vset.pattern.permute.xlu0 0
      %4927 = vperm.xlu0 %4926, %v4849
      %v4928 = vpop.permute.xlu0 %4927
      %4931 = vset.pattern.permute.xlu0 0
      %4932 = vperm.xlu0 %4931, %v4850
      %v4933 = vpop.permute.xlu0 %4932
      %4936 = vset.pattern.permute.xlu0 0
      %4937 = vperm.xlu0 %4936, %v4851
      %v4938 = vpop.permute.xlu0 %4937
      %4941 = vset.pattern.permute.xlu0 0
      %4942 = vperm.xlu0 %4941, %v4852
      %v4943 = vpop.permute.xlu0 %4942
      %4946 = vset.pattern.permute.xlu0 0
      %4947 = vperm.xlu0 %4946, %v4853
      %v4948 = vpop.permute.xlu0 %4947
      %4951 = vset.pattern.permute.xlu0 0
      %4952 = vperm.xlu0 %4951, %v4854
      %v4953 = vpop.permute.xlu0 %4952
      %4956 = vset.pattern.permute.xlu0 0
      %4957 = vperm.xlu0 %4956, %v4855
      %v4958 = vpop.permute.xlu0 %4957
      %4961 = vset.pattern.permute.xlu0 0
      %4962 = vperm.xlu0 %4961, %v4856
      %v4963 = vpop.permute.xlu0 %4962
      %4966 = vset.pattern.permute.xlu0 0
      %4967 = vperm.xlu0 %4966, %v4857
      %v4968 = vpop.permute.xlu0 %4967
      %4971 = vset.pattern.permute.xlu0 0
      %4972 = vperm.xlu0 %4971, %v4858
      %v4973 = vpop.permute.xlu0 %4972
      %4976 = vset.pattern.permute.xlu0 0
      %4977 = vperm.xlu0 %4976, %v4859
      %v4978 = vpop.permute.xlu0 %4977
      %4981 = vset.pattern.permute.xlu0 0
      %4982 = vperm.xlu0 %4981, %v4860
      %v4983 = vpop.permute.xlu0 %4982
      %4986 = vset.pattern.permute.xlu0 0
      %4987 = vperm.xlu0 %4986, %v4861
      %v4988 = vpop.permute.xlu0 %4987
      %4991 = vset.pattern.permute.xlu0 0
      %4992 = vperm.xlu0 %4991, %v4862
      %v4993 = vpop.permute.xlu0 %4992
      %4996 = vset.pattern.permute.xlu0 0
      %4997 = vperm.xlu0 %4996, %v4863
      %v4998 = vpop.permute.xlu0 %4997
      %5001 = vset.pattern.permute.xlu0 0
      %5002 = vperm.xlu0 %5001, %v4864
      %v5003 = vpop.permute.xlu0 %5002
      %5006 = vset.pattern.permute.xlu0 0
      %5007 = vperm.xlu0 %5006, %v4865
      %v5008 = vpop.permute.xlu0 %5007
      %5011 = vset.pattern.permute.xlu0 0
      %5012 = vperm.xlu0 %5011, %v4866
      %v5013 = vpop.permute.xlu0 %5012
      %5016 = vset.pattern.permute.xlu0 0
      %5017 = vperm.xlu0 %5016, %v4867
      %v5018 = vpop.permute.xlu0 %5017
      %5021 = vset.pattern.permute.xlu0 0
      %5022 = vperm.xlu0 %5021, %v4868
      %v5023 = vpop.permute.xlu0 %5022
      %5026 = vset.pattern.permute.xlu0 0
      %5027 = vperm.xlu0 %5026, %v4869
      %v5028 = vpop.permute.xlu0 %5027
      %5030 = vst [vmem:[#allocation7] sm:$0xff] %v4873
      %5031 = vst [vmem:[#allocation7 + $0x8] sm:$0xff] %v4878
      %5032 = vst [vmem:[#allocation7 + $0x10] sm:$0xff] %v4883
      %5033 = vst [vmem:[#allocation7 + $0x18] sm:$0xff] %v4888
      %5034 = vst [vmem:[#allocation7 + $0x20] sm:$0xff] %v4893
      %5035 = vst [vmem:[#allocation7 + $0x28] sm:$0xff] %v4898
      %5036 = vst [vmem:[#allocation7 + $0x30] sm:$0xff] %v4903
      %5037 = vst [vmem:[#allocation7 + $0x38] sm:$0xff] %v4908
      %5038 = vst [vmem:[#allocation7 + $0x40] sm:$0xff] %v4913
      %5039 = vst [vmem:[#allocation7 + $0x48] sm:$0xff] %v4918
      %5040 = vst [vmem:[#allocation7 + $0x50] sm:$0xff] %v4923
      %5041 = vst [vmem:[#allocation7 + $0x58] sm:$0xff] %v4928
      %5042 = vst [vmem:[#allocation7 + $0x60] sm:$0xff] %v4933
      %5043 = vst [vmem:[#allocation7 + $0x68] sm:$0xff] %v4938
      %5044 = vst [vmem:[#allocation7 + $0x70] sm:$0xff] %v4943
      %5045 = vst [vmem:[#allocation7 + $0x78] sm:$0xff] %v4948
      %5046 = vst [vmem:[#allocation7 + $0x80] sm:$0xff] %v4953
      %5047 = vst [vmem:[#allocation7 + $0x88] sm:$0xff] %v4958
      %5048 = vst [vmem:[#allocation7 + $0x90] sm:$0xff] %v4963
      %5049 = vst [vmem:[#allocation7 + $0x98] sm:$0xff] %v4968
      %5050 = vst [vmem:[#allocation7 + $0xa0] sm:$0xff] %v4973
      %5051 = vst [vmem:[#allocation7 + $0xa8] sm:$0xff] %v4978
      %5052 = vst [vmem:[#allocation7 + $0xb0] sm:$0xff] %v4983
      %5053 = vst [vmem:[#allocation7 + $0xb8] sm:$0xff] %v4988
      %5054 = vst [vmem:[#allocation7 + $0xc0] sm:$0xff] %v4993
      %5055 = vst [vmem:[#allocation7 + $0xc8] sm:$0xff] %v4998
      %5056 = vst [vmem:[#allocation7 + $0xd0] sm:$0xff] %v5003
      %5057 = vst [vmem:[#allocation7 + $0xd8] sm:$0xff] %v5008
      %5058 = vst [vmem:[#allocation7 + $0xe0] sm:$0xff] %v5013
      %5059 = vst [vmem:[#allocation7 + $0xe8] sm:$0xff] %v5018
      %5060 = vst [vmem:[#allocation7 + $0xf0] sm:$0xff] %v5023
      %5061 = vst [vmem:[#allocation7 + $0xf8] sm:$0xff] %v5028
    $region33: #{tpu_custom_call.1} parent=1 // pred_fallthru
      _
    // Predicated region
    $region34: #{tpu_custom_call.1} parent=1 // pred_check
      _
    $region35: #{tpu_custom_call.1} parent=1 // pred_check_branch
      %5063 = sbr.rel (0) target = $region37
    $region36: #{tpu_custom_call.1} parent=1 // pred_region
      %s5065 = ssub.s32 4096, 4096
      %5066 = vsyncadd [#allocation8], %s5065
      %s5067 = sshll.u32 [#allocation7], 4
      %s5068 = int_to_ptr.vmem [resolvable:$true] %s5067
      %5073 = dma.vmem_to_hbm [thread:$0]  %s5068, 4096, %s4, [#allocation8], 128, 128, 8
    $region37: #{tpu_custom_call.1} parent=1 // pred_fallthru
      _
    // Predicated region
    $region38: #{tpu_custom_call.1} parent=1 // pred_check
      _
    $region39: #{tpu_custom_call.1} parent=1 // pred_check_branch
      %5075 = sbr.rel (0) target = $region41
    $region40: #{tpu_custom_call.1} parent=1 // pred_region
      %5076 = dma.done [#allocation8], 4096
    $region41: #{tpu_custom_call.1} parent=1 // pred_fallthru
      _
    %5077 = vsyncpa [#allocation8], 1

</llo_original>
